<compile_context>
chip_gen: v5e
topology: v5e:2x2
jax: 0.10.0
libtpu: 0.0.40
codegen_flags: <defaults>
</compile_context>

<pallas_src>
import functools

import jax
import jax.numpy as jnp
from jax.experimental import pallas as pl
from jax.experimental.pallas import tpu as pltpu

NEG_SLOPE = 0.2          # GATConv default LeakyReLU negative slope
MASK_VAL = -1e9
_VMEM_LIMIT = 64 * 1024 * 1024


def _round_up(a, b):
    return ((a + b - 1) // b) * b


def _elementwise_dtype():
    """bf16 softmax/elementwise path on v6e/v7x (bf16 VPU+EUP); f32 on v5e and older."""
    try:
        kind = jax.devices()[0].device_kind.lower()
    except Exception:
        return jnp.bfloat16
    if any(v in kind for v in ("v2", "v3", "v4", "v5")):
        return jnp.float32
    return jnp.bfloat16


# --------------------------------------------------------------------------- #
# Kernel 1: layer-1 feature transform + attention scores (per node-row tile). #
# --------------------------------------------------------------------------- #
def _gat1_transform_kernel(x_ref, w1_ref, a1d_ref, a1s_ref,
                           h1_ref, s1d_ref, s1s_ref, *, heads):
    x = x_ref[...]                                            # (T, Kp) bf16
    for h in range(heads):                                    # small static loop, matmuls only
        h1_ref[h] = jnp.dot(x, w1_ref[h],
                            preferred_element_type=jnp.float32).astype(h1_ref.dtype)
        s1d_ref[h] = jnp.dot(x, a1d_ref[h],                   # (T, 1) dst scores
                             preferred_element_type=jnp.float32)
        s1s_ref[h] = jax.lax.dot_general(                     # (1, T) src scores
            a1s_ref[h], x, (((1,), (1,)), ((), ())),
            preferred_element_type=jnp.float32)


# --------------------------------------------------------------------------- #
# Kernel 2: GATConv1 attention (per dst-row tile) fused with layer-2 transform #
# --------------------------------------------------------------------------- #
def _gat1_attn_kernel(bias_ref, s1d_ref, s1s_ref, h1_ref,
                      b1_ref, w2_ref, a2d_ref, a2s_ref,
                      h2_ref, s2d_ref, s2s_ref,
                      *, heads, hidden, cdt):
    t, n = bias_ref.shape

    def head_body(h, carry):
        h2_acc, s2d_acc, s2s_acc = carry
        dst = s1d_ref[h].astype(cdt)                          # (t, 1)
        src = s1s_ref[h].astype(cdt)                          # (1, n)
        e = dst + src                                         # (t, n)
        e = jnp.maximum(e, NEG_SLOPE * e)                     # LeakyReLU(0.2)
        logits = e + bias_ref[...]                            # additive adjacency mask
        m = jnp.max(logits, axis=-1, keepdims=True)
        p = jnp.exp(logits - m)                               # masked entries -> 0
        num = jnp.dot(p.astype(jnp.bfloat16), h1_ref[h],      # (t, hidden) f32 acc
                      preferred_element_type=jnp.float32)
        den = jnp.sum(p.astype(jnp.float32), axis=-1, keepdims=True)
        agg = num * pl.reciprocal(den, approx=True)           # normalize after matmul
        # GATConv bias + torch.relu per head block (concat+relu factorizes).
        x1h = jnp.maximum(agg + b1_ref[h], 0.0).astype(jnp.bfloat16)
        # Layer-2 transform folded in: concat(x1) @ W2 == sum_h x1_h @ W2_h.
        h2_acc = h2_acc + jnp.dot(x1h, w2_ref[h], preferred_element_type=jnp.float32)
        s2d_acc = s2d_acc + jnp.dot(x1h, a2d_ref[h], preferred_element_type=jnp.float32)
        s2s_acc = s2s_acc + jax.lax.dot_general(
            a2s_ref[h], x1h, (((1,), (1,)), ((), ())),
            preferred_element_type=jnp.float32)
        return h2_acc, s2d_acc, s2s_acc

    init = (jnp.zeros((t, hidden), jnp.float32),
            jnp.zeros((t, 128), jnp.float32),
            jnp.zeros((1, t), jnp.float32))
    h2_acc, s2d_acc, s2s_acc = jax.lax.fori_loop(0, heads, head_body, init)
    h2_ref[...] = h2_acc.astype(h2_ref.dtype)
    s2d_ref[...] = s2d_acc
    s2s_ref[...] = s2s_acc


# --------------------------------------------------------------------------- #
# Kernel 3: GATConv2 attention + MLP head (per dst-row tile).                  #
# --------------------------------------------------------------------------- #
def _gat2_mlp_kernel(bias_ref, s2d_ref, s2s_ref, h2_ref,
                     b2_ref, w3_ref, b3_ref, w4_ref, b4_ref,
                     out_ref, *, cdt):
    dst = s2d_ref[:, 0:1].astype(cdt)                         # (t, 1)
    src = s2s_ref[...].astype(cdt)                            # (1, n)
    e = dst + src
    e = jnp.maximum(e, NEG_SLOPE * e)
    logits = e + bias_ref[...]
    m = jnp.max(logits, axis=-1, keepdims=True)
    p = jnp.exp(logits - m)
    num = jnp.dot(p.astype(jnp.bfloat16), h2_ref[...],
                  preferred_element_type=jnp.float32)
    den = jnp.sum(p.astype(jnp.float32), axis=-1, keepdims=True)
    x2 = num * pl.reciprocal(den, approx=True) + b2_ref[...]  # (t, hidden)
    # MLP: ReLU -> Linear(hidden, 64) -> ReLU -> Linear(64, out_pad)
    z = jnp.maximum(x2, 0.0).astype(jnp.bfloat16)
    z = jnp.dot(z, w3_ref[...], preferred_element_type=jnp.float32) + b3_ref[...]
    z = jnp.maximum(z, 0.0).astype(jnp.bfloat16)
    z = jnp.dot(z, w4_ref[...], preferred_element_type=jnp.float32) + b4_ref[...]
    out_ref[...] = z.astype(out_ref.dtype)                    # lane-dense (t, 128)


# --------------------------------------------------------------------------- #
# Wrapper                                                                      #
# --------------------------------------------------------------------------- #
def gat_classifier_forward(x, edge_index, params, *, heads=4, hidden=128, tile_n=128):
    assert tile_n % 128 == 0
    N, in_dim = x.shape
    out_dim = params["w4"].shape[1]
    HC = heads * hidden
    cdt = _elementwise_dtype()

    # ---- padding / tiling geometry ----------------------------------------
    Kp = _round_up(in_dim, 128)
    if N <= tile_n:
        Np = _round_up(N, 8)
        tile = Np
    else:
        Np = _round_up(N, tile_n)
        tile = tile_n
    nt = Np // tile

    # ---- graph glue: dense additive mask with self loops (bf16) ------------
    # NOTE: duplicate edges are de-duplicated here; PyG counts each copy.
    src_idx, dst_idx = edge_index[0], edge_index[1]
    adj = jnp.zeros((Np, Np), jnp.float32).at[dst_idx, src_idx].set(1.0)
    adj = jnp.maximum(adj, jnp.eye(Np, dtype=jnp.float32))
    bias = jnp.where(adj > 0, 0.0, MASK_VAL).astype(jnp.bfloat16)

    x_pad = jnp.pad(x, ((0, Np - N), (0, Kp - in_dim))).astype(jnp.bfloat16)

    # ---- fold attention vectors through the layer weights ------------------
    w1 = params["w1"]                                                   # (in_dim, HC)
    w1h = w1.reshape(in_dim, heads, hidden).transpose(1, 0, 2)          # (heads, in_dim, hidden)
    a1d = jnp.einsum("hkd,hd->hk", w1h, params["a1_dst"])[:, :, None]   # (heads, in_dim, 1)
    a1s = jnp.einsum("hkd,hd->hk", w1h, params["a1_src"])[:, None, :]   # (heads, 1, in_dim)
    w1h_p = jnp.pad(w1h, ((0, 0), (0, Kp - in_dim), (0, 0))).astype(jnp.bfloat16)
    a1d_p = jnp.pad(a1d, ((0, 0), (0, Kp - in_dim), (0, 0))).astype(jnp.bfloat16)
    a1s_p = jnp.pad(a1s, ((0, 0), (0, 0), (0, Kp - in_dim))).astype(jnp.bfloat16)
    b1h = params["b1"].reshape(heads, 1, hidden)                        # f32

    w2 = params["w2"]                                                   # (HC, hidden)
    w2h = w2.reshape(heads, hidden, hidden).astype(jnp.bfloat16)
    a2d = (w2 @ params["a2_dst"].T).reshape(heads, hidden, 1)
    a2d_p = jnp.pad(a2d, ((0, 0), (0, 0), (0, 127))).astype(jnp.bfloat16)   # (heads, hidden, 128)
    a2s = (w2 @ params["a2_src"].T).reshape(heads, 1, hidden).astype(jnp.bfloat16)
    b2 = params["b2"]                                                   # (1, hidden) f32

    w3 = params["w3"].astype(jnp.bfloat16)                              # (hidden, 64)
    b3 = params["b3"]
    OUT_PAD = 128
    w4p = jnp.pad(params["w4"], ((0, 0), (0, OUT_PAD - out_dim))).astype(jnp.bfloat16)
    b4p = jnp.pad(params["b4"], ((0, 0), (0, OUT_PAD - out_dim)))

    whole = pl.BlockSpec(memory_space=pltpu.MemorySpace.VMEM)
    cparams = pltpu.CompilerParams(
        dimension_semantics=("parallel",),       # v7x: shard dst-row tiles across both TCs
        vmem_limit_bytes=_VMEM_LIMIT)

    # ---- call 1: layer-1 transform + attention scores ----------------------
    h1, s1d, s1s = pl.pallas_call(
        functools.partial(_gat1_transform_kernel, heads=heads),
        grid=(nt,),
        in_specs=[pl.BlockSpec((tile, Kp), lambda i: (i, 0)),
                  whole, whole, whole],
        out_specs=[pl.BlockSpec((heads, tile, hidden), lambda i: (0, i, 0)),
                   pl.BlockSpec((heads, tile, 1), lambda i: (0, i, 0)),
                   pl.BlockSpec((heads, 1, tile), lambda i: (0, 0, i))],
        out_shape=[jax.ShapeDtypeStruct((heads, Np, hidden), jnp.bfloat16),
                   jax.ShapeDtypeStruct((heads, Np, 1), jnp.float32),
                   jax.ShapeDtypeStruct((heads, 1, Np), jnp.float32)],
        compiler_params=cparams,
    )(x_pad, w1h_p, a1d_p, a1s_p)

    # ---- call 2: GATConv1 attention + layer-2 transform --------------------
    h2, s2d, s2s = pl.pallas_call(
        functools.partial(_gat1_attn_kernel, heads=heads, hidden=hidden, cdt=cdt),
        grid=(nt,),
        in_specs=[pl.BlockSpec((tile, Np), lambda i: (i, 0)),           # bias tile
                  pl.BlockSpec((heads, tile, 1), lambda i: (0, i, 0)),  # dst scores tile
                  whole,                                                # src scores (all)
                  whole,                                                # h1 (all sources)
                  whole, whole, whole, whole],                          # b1, w2, a2d, a2s
        out_specs=[pl.BlockSpec((tile, hidden), lambda i: (i, 0)),
                   pl.BlockSpec((tile, 128), lambda i: (i, 0)),
                   pl.BlockSpec((1, tile), lambda i: (0, i))],
        out_shape=[jax.ShapeDtypeStruct((Np, hidden), jnp.bfloat16),
                   jax.ShapeDtypeStruct((Np, 128), jnp.float32),
                   jax.ShapeDtypeStruct((1, Np), jnp.float32)],
        compiler_params=cparams,
    )(bias, s1d, s1s, h1, b1h, w2h, a2d_p, a2s)

    # ---- call 3: GATConv2 attention + MLP head ------------------------------
    out = pl.pallas_call(
        functools.partial(_gat2_mlp_kernel, cdt=cdt),
        grid=(nt,),
        in_specs=[pl.BlockSpec((tile, Np), lambda i: (i, 0)),           # bias tile
                  pl.BlockSpec((tile, 128), lambda i: (i, 0)),          # dst scores tile
                  whole, whole,                                         # src scores, h2
                  whole, whole, whole, whole, whole],                   # b2, w3, b3, w4, b4
        out_specs=pl.BlockSpec((tile, 128), lambda i: (i, 0)),
        out_shape=jax.ShapeDtypeStruct((Np, 128), jnp.float32),
        compiler_params=cparams,
    )(bias, s2d, s2s, h2, b2, w3, b3, w4p, b4p)

    return out[:N, :out_dim]


def init_params(key, in_dim=521, hidden=128, out_dim=4, heads=4):
    ks = jax.random.split(key, 10)

    def glorot(k, shape):
        fan_in, fan_out = shape[0], shape[-1]
        scale = jnp.sqrt(2.0 / (fan_in + fan_out))
        return scale * jax.random.normal(k, shape, jnp.float32)

    return dict(
        # GATConv 1
        w1=glorot(ks[0], (in_dim, heads * hidden)),
        a1_src=glorot(ks[1], (heads, hidden)),
        a1_dst=glorot(ks[2], (heads, hidden)),
        b1=jnp.zeros((1, heads * hidden), jnp.float32),
        # GATConv 2
        w2=glorot(ks[3], (heads * hidden, hidden)),
        a2_src=glorot(ks[4], (1, hidden)),
        a2_dst=glorot(ks[5], (1, hidden)),
        b2=jnp.zeros((1, hidden), jnp.float32),
        # MLP
        w3=glorot(ks[6], (hidden, 64)),
        b3=0.01 * jax.random.normal(ks[7], (1, 64), jnp.float32),
        w4=glorot(ks[8], (64, out_dim)),
        b4=0.01 * jax.random.normal(ks[9], (1, out_dim), jnp.float32),
    )


if __name__ == "__main__":
    key = jax.random.PRNGKey(0)
    k_x, k_e, k_p = jax.random.split(key, 3)

    # Small graph, module-default feature dims.
    N, E = 16, 48
    in_dim, hidden, out_dim, heads = 521, 128, 4, 4

    x = jax.random.normal(k_x, (N, in_dim), dtype=jnp.float32)
    edge_index = jax.random.randint(k_e, (2, E), 0, N, dtype=jnp.int32)
    params = init_params(k_p, in_dim=in_dim, hidden=hidden,
                         out_dim=out_dim, heads=heads)

    out = gat_classifier_forward(x, edge_index, params, heads=heads, hidden=hidden)
    out = jax.block_until_ready(out)
    assert out.shape == (N, out_dim) and out.dtype == jnp.float32
    assert bool(jnp.all(jnp.isfinite(out)))
    print("KERNEL_OK")
</pallas_src>

<mosaic_0001>
module attributes {stable_mosaic.version = 11 : i64} {
  func.func @_gat1_transform_kernel(%arg0: i32, %arg1: memref<16x640xbf16, #tpu.memory_space<vmem>>, %arg2: memref<4x640x128xbf16, #tpu.memory_space<vmem>>, %arg3: memref<4x640x1xbf16, #tpu.memory_space<vmem>>, %arg4: memref<4x1x640xbf16, #tpu.memory_space<vmem>>, %arg5: memref<4x16x128xbf16, #tpu.memory_space<vmem>>, %arg6: memref<4x16x1xf32, #tpu.memory_space<vmem>>, %arg7: memref<4x1x16xf32, #tpu.memory_space<vmem>>) attributes {dimension_semantics = [#tpu.dimension_semantics<parallel>], iteration_bounds = array<i64: 1>, scalar_prefetch = 0 : i64, scratch_operands = 0 : i64, tpu.core_type = #tpu.core_type<tc>, window_params = [{transform_indices = @transform_0, window_bounds = array<i64: 16, 640>}, {pipeline_mode = #tpu.pipeline_mode<synchronous>, transform_indices = @transform_1, window_bounds = array<i64: 4, 640, 128>}, {pipeline_mode = #tpu.pipeline_mode<synchronous>, transform_indices = @transform_2, window_bounds = array<i64: 4, 640, 1>}, {pipeline_mode = #tpu.pipeline_mode<synchronous>, transform_indices = @transform_3, window_bounds = array<i64: 4, 1, 640>}, {transform_indices = @transform_4, window_bounds = array<i64: 4, 16, 128>}, {transform_indices = @transform_5, window_bounds = array<i64: 4, 16, 1>}, {transform_indices = @transform_6, window_bounds = array<i64: 4, 1, 16>}]} {
    %c0 = arith.constant 0 : index
    %c0_0 = arith.constant 0 : index
    %0 = vector.load %arg1[%c0, %c0_0] : memref<16x640xbf16, #tpu.memory_space<vmem>>, vector<16x640xbf16>
    %c0_1 = arith.constant 0 : index
    %c0_2 = arith.constant 0 : index
    %c0_3 = arith.constant 0 : index
    %1 = vector.load %arg2[%c0_1, %c0_2, %c0_3] : memref<4x640x128xbf16, #tpu.memory_space<vmem>>, vector<1x640x128xbf16>
    %2 = vector.shape_cast %1 : vector<1x640x128xbf16> to vector<640x128xbf16>
    %cst = arith.constant dense<0.000000e+00> : vector<16x128xf32>
    %3 = tpu.matmul %0, %2, %cst {dimension_numbers = #tpu.dot_dimension_numbers<[1], [0], [0], [1], [0, 0, 1, 1], [], []>} : vector<16x640xbf16>, vector<640x128xbf16>, vector<16x128xf32> -> vector<16x128xf32>
    %4 = arith.truncf %3 : vector<16x128xf32> to vector<16x128xbf16>
    %c0_4 = arith.constant 0 : index
    %c0_5 = arith.constant 0 : index
    %c0_6 = arith.constant 0 : index
    %5 = vector.load %arg5[%c0_4, %c0_5, %c0_6] : memref<4x16x128xbf16, #tpu.memory_space<vmem>>, vector<1x16x128xbf16>
    %6 = vector.shape_cast %5 : vector<1x16x128xbf16> to vector<16x128xbf16>
    %7 = vector.shape_cast %4 : vector<16x128xbf16> to vector<1x16x128xbf16>
    tpu.vector_store %arg5[%c0_4, %c0_5, %c0_6], %7 {strides = array<i32>} : memref<4x16x128xbf16, #tpu.memory_space<vmem>>, vector<1x16x128xbf16>,
    %c0_7 = arith.constant 0 : index
    %c0_8 = arith.constant 0 : index
    %c0_9 = arith.constant 0 : index
    %8 = vector.load %arg3[%c0_7, %c0_8, %c0_9] : memref<4x640x1xbf16, #tpu.memory_space<vmem>>, vector<1x640x1xbf16>
    %9 = vector.shape_cast %8 : vector<1x640x1xbf16> to vector<640x1xbf16>
    %cst_10 = arith.constant dense<0.000000e+00> : vector<16x1xf32>
    %10 = tpu.matmul %0, %9, %cst_10 {dimension_numbers = #tpu.dot_dimension_numbers<[1], [0], [0], [1], [0, 0, 1, 1], [], []>} : vector<16x640xbf16>, vector<640x1xbf16>, vector<16x1xf32> -> vector<16x1xf32>
    %c0_11 = arith.constant 0 : index
    %c0_12 = arith.constant 0 : index
    %c0_13 = arith.constant 0 : index
    %11 = vector.load %arg6[%c0_11, %c0_12, %c0_13] : memref<4x16x1xf32, #tpu.memory_space<vmem>>, vector<1x16x1xf32>
    %12 = vector.shape_cast %11 : vector<1x16x1xf32> to vector<16x1xf32>
    %13 = vector.shape_cast %10 : vector<16x1xf32> to vector<1x16x1xf32>
    tpu.vector_store %arg6[%c0_11, %c0_12, %c0_13], %13 {strides = array<i32>} : memref<4x16x1xf32, #tpu.memory_space<vmem>>, vector<1x16x1xf32>,
    %c0_14 = arith.constant 0 : index
    %c0_15 = arith.constant 0 : index
    %c0_16 = arith.constant 0 : index
    %14 = vector.load %arg4[%c0_14, %c0_15, %c0_16] : memref<4x1x640xbf16, #tpu.memory_space<vmem>>, vector<1x1x640xbf16>
    %15 = vector.shape_cast %14 : vector<1x1x640xbf16> to vector<1x640xbf16>
    %cst_17 = arith.constant dense<0.000000e+00> : vector<1x16xf32>
    %16 = tpu.matmul %15, %0, %cst_17 {dimension_numbers = #tpu.dot_dimension_numbers<[1], [1], [0], [0], [0, 0, 1, 0], [], []>} : vector<1x640xbf16>, vector<16x640xbf16>, vector<1x16xf32> -> vector<1x16xf32>
    %c0_18 = arith.constant 0 : index
    %c0_19 = arith.constant 0 : index
    %c0_20 = arith.constant 0 : index
    %17 = vector.load %arg7[%c0_18, %c0_19, %c0_20] : memref<4x1x16xf32, #tpu.memory_space<vmem>>, vector<1x1x16xf32>
    %18 = vector.shape_cast %17 : vector<1x1x16xf32> to vector<1x16xf32>
    %19 = vector.shape_cast %16 : vector<1x16xf32> to vector<1x1x16xf32>
    tpu.vector_store %arg7[%c0_18, %c0_19, %c0_20], %19 {strides = array<i32>} : memref<4x1x16xf32, #tpu.memory_space<vmem>>, vector<1x1x16xf32>,
    %c1 = arith.constant 1 : index
    %c0_21 = arith.constant 0 : index
    %c0_22 = arith.constant 0 : index
    %20 = vector.load %arg2[%c1, %c0_21, %c0_22] : memref<4x640x128xbf16, #tpu.memory_space<vmem>>, vector<1x640x128xbf16>
    %21 = vector.shape_cast %20 : vector<1x640x128xbf16> to vector<640x128xbf16>
    %cst_23 = arith.constant dense<0.000000e+00> : vector<16x128xf32>
    %22 = tpu.matmul %0, %21, %cst_23 {dimension_numbers = #tpu.dot_dimension_numbers<[1], [0], [0], [1], [0, 0, 1, 1], [], []>} : vector<16x640xbf16>, vector<640x128xbf16>, vector<16x128xf32> -> vector<16x128xf32>
    %23 = arith.truncf %22 : vector<16x128xf32> to vector<16x128xbf16>
    %c1_24 = arith.constant 1 : index
    %c0_25 = arith.constant 0 : index
    %c0_26 = arith.constant 0 : index
    %24 = vector.load %arg5[%c1_24, %c0_25, %c0_26] : memref<4x16x128xbf16, #tpu.memory_space<vmem>>, vector<1x16x128xbf16>
    %25 = vector.shape_cast %24 : vector<1x16x128xbf16> to vector<16x128xbf16>
    %26 = vector.shape_cast %23 : vector<16x128xbf16> to vector<1x16x128xbf16>
    tpu.vector_store %arg5[%c1_24, %c0_25, %c0_26], %26 {strides = array<i32>} : memref<4x16x128xbf16, #tpu.memory_space<vmem>>, vector<1x16x128xbf16>,
    %c1_27 = arith.constant 1 : index
    %c0_28 = arith.constant 0 : index
    %c0_29 = arith.constant 0 : index
    %27 = vector.load %arg3[%c1_27, %c0_28, %c0_29] : memref<4x640x1xbf16, #tpu.memory_space<vmem>>, vector<1x640x1xbf16>
    %28 = vector.shape_cast %27 : vector<1x640x1xbf16> to vector<640x1xbf16>
    %cst_30 = arith.constant dense<0.000000e+00> : vector<16x1xf32>
    %29 = tpu.matmul %0, %28, %cst_30 {dimension_numbers = #tpu.dot_dimension_numbers<[1], [0], [0], [1], [0, 0, 1, 1], [], []>} : vector<16x640xbf16>, vector<640x1xbf16>, vector<16x1xf32> -> vector<16x1xf32>
    %c1_31 = arith.constant 1 : index
    %c0_32 = arith.constant 0 : index
    %c0_33 = arith.constant 0 : index
    %30 = vector.load %arg6[%c1_31, %c0_32, %c0_33] : memref<4x16x1xf32, #tpu.memory_space<vmem>>, vector<1x16x1xf32>
    %31 = vector.shape_cast %30 : vector<1x16x1xf32> to vector<16x1xf32>
    %32 = vector.shape_cast %29 : vector<16x1xf32> to vector<1x16x1xf32>
    tpu.vector_store %arg6[%c1_31, %c0_32, %c0_33], %32 {strides = array<i32>} : memref<4x16x1xf32, #tpu.memory_space<vmem>>, vector<1x16x1xf32>,
    %c1_34 = arith.constant 1 : index
    %c0_35 = arith.constant 0 : index
    %c0_36 = arith.constant 0 : index
    %33 = vector.load %arg4[%c1_34, %c0_35, %c0_36] : memref<4x1x640xbf16, #tpu.memory_space<vmem>>, vector<1x1x640xbf16>
    %34 = vector.shape_cast %33 : vector<1x1x640xbf16> to vector<1x640xbf16>
    %cst_37 = arith.constant dense<0.000000e+00> : vector<1x16xf32>
    %35 = tpu.matmul %34, %0, %cst_37 {dimension_numbers = #tpu.dot_dimension_numbers<[1], [1], [0], [0], [0, 0, 1, 0], [], []>} : vector<1x640xbf16>, vector<16x640xbf16>, vector<1x16xf32> -> vector<1x16xf32>
    %c1_38 = arith.constant 1 : index
    %c0_39 = arith.constant 0 : index
    %c0_40 = arith.constant 0 : index
    %36 = vector.load %arg7[%c1_38, %c0_39, %c0_40] : memref<4x1x16xf32, #tpu.memory_space<vmem>>, vector<1x1x16xf32>
    %37 = vector.shape_cast %36 : vector<1x1x16xf32> to vector<1x16xf32>
    %38 = vector.shape_cast %35 : vector<1x16xf32> to vector<1x1x16xf32>
    tpu.vector_store %arg7[%c1_38, %c0_39, %c0_40], %38 {strides = array<i32>} : memref<4x1x16xf32, #tpu.memory_space<vmem>>, vector<1x1x16xf32>,
    %c2 = arith.constant 2 : index
    %c0_41 = arith.constant 0 : index
    %c0_42 = arith.constant 0 : index
    %39 = vector.load %arg2[%c2, %c0_41, %c0_42] : memref<4x640x128xbf16, #tpu.memory_space<vmem>>, vector<1x640x128xbf16>
    %40 = vector.shape_cast %39 : vector<1x640x128xbf16> to vector<640x128xbf16>
    %cst_43 = arith.constant dense<0.000000e+00> : vector<16x128xf32>
    %41 = tpu.matmul %0, %40, %cst_43 {dimension_numbers = #tpu.dot_dimension_numbers<[1], [0], [0], [1], [0, 0, 1, 1], [], []>} : vector<16x640xbf16>, vector<640x128xbf16>, vector<16x128xf32> -> vector<16x128xf32>
    %42 = arith.truncf %41 : vector<16x128xf32> to vector<16x128xbf16>
    %c2_44 = arith.constant 2 : index
    %c0_45 = arith.constant 0 : index
    %c0_46 = arith.constant 0 : index
    %43 = vector.load %arg5[%c2_44, %c0_45, %c0_46] : memref<4x16x128xbf16, #tpu.memory_space<vmem>>, vector<1x16x128xbf16>
    %44 = vector.shape_cast %43 : vector<1x16x128xbf16> to vector<16x128xbf16>
    %45 = vector.shape_cast %42 : vector<16x128xbf16> to vector<1x16x128xbf16>
    tpu.vector_store %arg5[%c2_44, %c0_45, %c0_46], %45 {strides = array<i32>} : memref<4x16x128xbf16, #tpu.memory_space<vmem>>, vector<1x16x128xbf16>,
    %c2_47 = arith.constant 2 : index
    %c0_48 = arith.constant 0 : index
    %c0_49 = arith.constant 0 : index
    %46 = vector.load %arg3[%c2_47, %c0_48, %c0_49] : memref<4x640x1xbf16, #tpu.memory_space<vmem>>, vector<1x640x1xbf16>
    %47 = vector.shape_cast %46 : vector<1x640x1xbf16> to vector<640x1xbf16>
    %cst_50 = arith.constant dense<0.000000e+00> : vector<16x1xf32>
    %48 = tpu.matmul %0, %47, %cst_50 {dimension_numbers = #tpu.dot_dimension_numbers<[1], [0], [0], [1], [0, 0, 1, 1], [], []>} : vector<16x640xbf16>, vector<640x1xbf16>, vector<16x1xf32> -> vector<16x1xf32>
    %c2_51 = arith.constant 2 : index
    %c0_52 = arith.constant 0 : index
    %c0_53 = arith.constant 0 : index
    %49 = vector.load %arg6[%c2_51, %c0_52, %c0_53] : memref<4x16x1xf32, #tpu.memory_space<vmem>>, vector<1x16x1xf32>
    %50 = vector.shape_cast %49 : vector<1x16x1xf32> to vector<16x1xf32>
    %51 = vector.shape_cast %48 : vector<16x1xf32> to vector<1x16x1xf32>
    tpu.vector_store %arg6[%c2_51, %c0_52, %c0_53], %51 {strides = array<i32>} : memref<4x16x1xf32, #tpu.memory_space<vmem>>, vector<1x16x1xf32>,
    %c2_54 = arith.constant 2 : index
    %c0_55 = arith.constant 0 : index
    %c0_56 = arith.constant 0 : index
    %52 = vector.load %arg4[%c2_54, %c0_55, %c0_56] : memref<4x1x640xbf16, #tpu.memory_space<vmem>>, vector<1x1x640xbf16>
    %53 = vector.shape_cast %52 : vector<1x1x640xbf16> to vector<1x640xbf16>
    %cst_57 = arith.constant dense<0.000000e+00> : vector<1x16xf32>
    %54 = tpu.matmul %53, %0, %cst_57 {dimension_numbers = #tpu.dot_dimension_numbers<[1], [1], [0], [0], [0, 0, 1, 0], [], []>} : vector<1x640xbf16>, vector<16x640xbf16>, vector<1x16xf32> -> vector<1x16xf32>
    %c2_58 = arith.constant 2 : index
    %c0_59 = arith.constant 0 : index
    %c0_60 = arith.constant 0 : index
    %55 = vector.load %arg7[%c2_58, %c0_59, %c0_60] : memref<4x1x16xf32, #tpu.memory_space<vmem>>, vector<1x1x16xf32>
    %56 = vector.shape_cast %55 : vector<1x1x16xf32> to vector<1x16xf32>
    %57 = vector.shape_cast %54 : vector<1x16xf32> to vector<1x1x16xf32>
    tpu.vector_store %arg7[%c2_58, %c0_59, %c0_60], %57 {strides = array<i32>} : memref<4x1x16xf32, #tpu.memory_space<vmem>>, vector<1x1x16xf32>,
    %c3 = arith.constant 3 : index
    %c0_61 = arith.constant 0 : index
    %c0_62 = arith.constant 0 : index
    %58 = vector.load %arg2[%c3, %c0_61, %c0_62] : memref<4x640x128xbf16, #tpu.memory_space<vmem>>, vector<1x640x128xbf16>
    %59 = vector.shape_cast %58 : vector<1x640x128xbf16> to vector<640x128xbf16>
    %cst_63 = arith.constant dense<0.000000e+00> : vector<16x128xf32>
    %60 = tpu.matmul %0, %59, %cst_63 {dimension_numbers = #tpu.dot_dimension_numbers<[1], [0], [0], [1], [0, 0, 1, 1], [], []>} : vector<16x640xbf16>, vector<640x128xbf16>, vector<16x128xf32> -> vector<16x128xf32>
    %61 = arith.truncf %60 : vector<16x128xf32> to vector<16x128xbf16>
    %c3_64 = arith.constant 3 : index
    %c0_65 = arith.constant 0 : index
    %c0_66 = arith.constant 0 : index
    %62 = vector.load %arg5[%c3_64, %c0_65, %c0_66] : memref<4x16x128xbf16, #tpu.memory_space<vmem>>, vector<1x16x128xbf16>
    %63 = vector.shape_cast %62 : vector<1x16x128xbf16> to vector<16x128xbf16>
    %64 = vector.shape_cast %61 : vector<16x128xbf16> to vector<1x16x128xbf16>
    tpu.vector_store %arg5[%c3_64, %c0_65, %c0_66], %64 {strides = array<i32>} : memref<4x16x128xbf16, #tpu.memory_space<vmem>>, vector<1x16x128xbf16>,
    %c3_67 = arith.constant 3 : index
    %c0_68 = arith.constant 0 : index
    %c0_69 = arith.constant 0 : index
    %65 = vector.load %arg3[%c3_67, %c0_68, %c0_69] : memref<4x640x1xbf16, #tpu.memory_space<vmem>>, vector<1x640x1xbf16>
    %66 = vector.shape_cast %65 : vector<1x640x1xbf16> to vector<640x1xbf16>
    %cst_70 = arith.constant dense<0.000000e+00> : vector<16x1xf32>
    %67 = tpu.matmul %0, %66, %cst_70 {dimension_numbers = #tpu.dot_dimension_numbers<[1], [0], [0], [1], [0, 0, 1, 1], [], []>} : vector<16x640xbf16>, vector<640x1xbf16>, vector<16x1xf32> -> vector<16x1xf32>
    %c3_71 = arith.constant 3 : index
    %c0_72 = arith.constant 0 : index
    %c0_73 = arith.constant 0 : index
    %68 = vector.load %arg6[%c3_71, %c0_72, %c0_73] : memref<4x16x1xf32, #tpu.memory_space<vmem>>, vector<1x16x1xf32>
    %69 = vector.shape_cast %68 : vector<1x16x1xf32> to vector<16x1xf32>
    %70 = vector.shape_cast %67 : vector<16x1xf32> to vector<1x16x1xf32>
    tpu.vector_store %arg6[%c3_71, %c0_72, %c0_73], %70 {strides = array<i32>} : memref<4x16x1xf32, #tpu.memory_space<vmem>>, vector<1x16x1xf32>,
    %c3_74 = arith.constant 3 : index
    %c0_75 = arith.constant 0 : index
    %c0_76 = arith.constant 0 : index
    %71 = vector.load %arg4[%c3_74, %c0_75, %c0_76] : memref<4x1x640xbf16, #tpu.memory_space<vmem>>, vector<1x1x640xbf16>
    %72 = vector.shape_cast %71 : vector<1x1x640xbf16> to vector<1x640xbf16>
    %cst_77 = arith.constant dense<0.000000e+00> : vector<1x16xf32>
    %73 = tpu.matmul %72, %0, %cst_77 {dimension_numbers = #tpu.dot_dimension_numbers<[1], [1], [0], [0], [0, 0, 1, 0], [], []>} : vector<1x640xbf16>, vector<16x640xbf16>, vector<1x16xf32> -> vector<1x16xf32>
    %c3_78 = arith.constant 3 : index
    %c0_79 = arith.constant 0 : index
    %c0_80 = arith.constant 0 : index
    %74 = vector.load %arg7[%c3_78, %c0_79, %c0_80] : memref<4x1x16xf32, #tpu.memory_space<vmem>>, vector<1x1x16xf32>
    %75 = vector.shape_cast %74 : vector<1x1x16xf32> to vector<1x16xf32>
    %76 = vector.shape_cast %73 : vector<1x16xf32> to vector<1x1x16xf32>
    tpu.vector_store %arg7[%c3_78, %c0_79, %c0_80], %76 {strides = array<i32>} : memref<4x1x16xf32, #tpu.memory_space<vmem>>, vector<1x1x16xf32>,
    return
  }
  func.func @transform_0(%arg0: i32) -> (i32, i32) {
    %c0_i32 = arith.constant 0 : i32
    %c0_i32_0 = arith.constant 0 : i32
    return %arg0, %c0_i32 : i32, i32
  }
  func.func @transform_1(%arg0: i32) -> (i32, i32, i32) {
    %c0_i32 = arith.constant 0 : i32
    %c0_i32_0 = arith.constant 0 : i32
    %c0_i32_1 = arith.constant 0 : i32
    %c0_i32_2 = arith.constant 0 : i32
    return %c0_i32, %c0_i32_0, %c0_i32_1 : i32, i32, i32
  }
  func.func @transform_2(%arg0: i32) -> (i32, i32, i32) {
    %c0_i32 = arith.constant 0 : i32
    %c0_i32_0 = arith.constant 0 : i32
    %c0_i32_1 = arith.constant 0 : i32
    %c0_i32_2 = arith.constant 0 : i32
    return %c0_i32, %c0_i32_0, %c0_i32_1 : i32, i32, i32
  }
  func.func @transform_3(%arg0: i32) -> (i32, i32, i32) {
    %c0_i32 = arith.constant 0 : i32
    %c0_i32_0 = arith.constant 0 : i32
    %c0_i32_1 = arith.constant 0 : i32
    %c0_i32_2 = arith.constant 0 : i32
    return %c0_i32, %c0_i32_0, %c0_i32_1 : i32, i32, i32
  }
  func.func @transform_4(%arg0: i32) -> (i32, i32, i32) {
    %c0_i32 = arith.constant 0 : i32
    %c0_i32_0 = arith.constant 0 : i32
    %c0_i32_1 = arith.constant 0 : i32
    return %c0_i32, %arg0, %c0_i32_0 : i32, i32, i32
  }
  func.func @transform_5(%arg0: i32) -> (i32, i32, i32) {
    %c0_i32 = arith.constant 0 : i32
    %c0_i32_0 = arith.constant 0 : i32
    %c0_i32_1 = arith.constant 0 : i32
    return %c0_i32, %arg0, %c0_i32_0 : i32, i32, i32
  }
  func.func @transform_6(%arg0: i32) -> (i32, i32, i32) {
    %c0_i32 = arith.constant 0 : i32
    %c0_i32_0 = arith.constant 0 : i32
    %c0_i32_1 = arith.constant 0 : i32
    return %c0_i32, %c0_i32_0, %arg0 : i32, i32, i32
  }
}

</mosaic_0001>

<llo_original>
// kernel: tpu_custom_call.1
$region0: #{tpu_custom_call.1}
  #allocation0 [shape = 'u32[]', space=smem, size = 0x4, offset = 0x4, fixed_abs, tag = 'smem constant byte address 0x4 - core index']
  #allocation1 [shape = 'u32[72,128]{1,0:T(1,128)}', space=vmem, size = 0x9000, scoped, tag = 'internal scratch']
  %s0 = inlined_call_operand.hbm [shape: bf16[16,640], index: 0, kind: input, shape index: {}]
  %s1 = inlined_call_operand.vmem [shape: bf16[4,640,128], index: 1, kind: input, shape index: {}]
  %s2 = inlined_call_operand.vmem [shape: bf16[4,640,1], index: 2, kind: input, shape index: {}]
  %s3 = inlined_call_operand.vmem [shape: bf16[4,1,640], index: 3, kind: input, shape index: {}]
  %s4 = inlined_call_operand.hbm [shape: bf16[4,16,128], index: 4, kind: output, shape index: {0}]
  %s5 = inlined_call_operand.vmem [shape: f32[4,16,1], index: 5, kind: output, shape index: {1}]
  %s6 = inlined_call_operand.hbm [shape: f32[4,1,16], index: 6, kind: output, shape index: {2}]
  %7 = xla_tuple %s4, %s5, %s6
  %s8 = sld [smem:[#allocation0]]
  $region46: #{tpu_custom_call.1} parent=0
    _
  %s10 = ssub.s32 1, %s8
  %s11 = scalar_select 0, %s10, %s8
  $region1: #{tpu_custom_call.1} parent=0
    #allocation2 [shape = 'u8[20480]{0}', space=vmem, size = 0x5000, scoped, tag = 'input window, operand 0, single buffered']
    #allocation3 [shape = 's32[1]{0}', space=sflag, size = 0x4, scoped, tag = 'scoped memory for tpu_custom_call.1']
    #allocation4 [shape = 's32[1]{0}', space=sflag, size = 0x4, scoped, tag = 'scoped memory for tpu_custom_call.1']
    #allocation5 [shape = 'u8[16384]{0}', space=vmem, size = 0x4000, scoped, tag = 'output window, operand 0, single buffered']
    #allocation6 [shape = 'u8[2048]{0}', space=vmem, size = 0x800, scoped, tag = 'output window, operand 2, single buffered']
    #allocation7 [shape = 's32[1]{0}', space=sflag, size = 0x4, scoped, tag = 'scoped memory for tpu_custom_call.1']
    %12 = vsyncpa [#allocation3], 0
    %13 = vsyncpa [#allocation4], 0
    %14 = vsyncpa [#allocation7], 0
    // Predicated region
    $region2: #{tpu_custom_call.1} parent=1 // pred_check
      _
    $region3: #{tpu_custom_call.1} parent=1 // pred_check_branch
      %16 = sbr.rel (0) target = $region5
    $region4: #{tpu_custom_call.1} parent=1 // pred_region
      %18 = vsyncadd [#allocation3], 0
      %s19 = sshll.u32 %s0, 4
      %s20 = int_to_ptr.hbm [resolvable:$true] %s19
      %s21 = sshll.u32 [#allocation2], 4
      %s22 = int_to_ptr.vmem [resolvable:$true] %s21
      %27 = dma.hbm_to_vmem [thread:$0]  %s20, 640, %s22, [#allocation3], 320, 320, 20
    $region5: #{tpu_custom_call.1} parent=1 // pred_fallthru
      _
    // Predicated region
    $region6: #{tpu_custom_call.1} parent=1 // pred_check
      _
    $region7: #{tpu_custom_call.1} parent=1 // pred_check_branch
      %29 = sbr.rel (0) target = $region9
    $region8: #{tpu_custom_call.1} parent=1 // pred_region
      _
    $region9: #{tpu_custom_call.1} parent=1 // pred_fallthru
      _
    // Predicated region
    $region10: #{tpu_custom_call.1} parent=1 // pred_check
      _
    $region11: #{tpu_custom_call.1} parent=1 // pred_check_branch
      %31 = sbr.rel (0) target = $region13
    $region12: #{tpu_custom_call.1} parent=1 // pred_region
      _
    $region13: #{tpu_custom_call.1} parent=1 // pred_fallthru
      _
    // Predicated region
    $region14: #{tpu_custom_call.1} parent=1 // pred_check
      _
    $region15: #{tpu_custom_call.1} parent=1 // pred_check_branch
      %33 = sbr.rel (0) target = $region17
    $region16: #{tpu_custom_call.1} parent=1 // pred_region
      _
    $region17: #{tpu_custom_call.1} parent=1 // pred_fallthru
      _
    // Predicated region
    $region18: #{tpu_custom_call.1} parent=1 // pred_check
      _
    $region19: #{tpu_custom_call.1} parent=1 // pred_check_branch
      %35 = sbr.rel (0) target = $region21
    $region20: #{tpu_custom_call.1} parent=1 // pred_region
      %37 = dma.done [#allocation3], 640
    $region21: #{tpu_custom_call.1} parent=1 // pred_fallthru
      _
    %v39 = vld [vmem:[#allocation2] sm:$0xff]
    %v40 = vld [vmem:[#allocation2 + $0x8] sm:$0xff]
    %v41 = vld [vmem:[#allocation2 + $0x10] sm:$0xf]
    %v42 = vld [vmem:[#allocation2 + $0x14] sm:$0xff]
    %v43 = vld [vmem:[#allocation2 + $0x1c] sm:$0xff]
    %v44 = vld [vmem:[#allocation2 + $0x24] sm:$0xf]
    %v45 = vld [vmem:[%s1] sm:$0xf]
    %v46 = vld [vmem:[%s1 + $0x4] sm:$0xf]
    %v47 = vld [vmem:[%s1 + $0x8] sm:$0xf]
    %v48 = vld [vmem:[%s1 + $0xc] sm:$0xf]
    %v49 = vld [vmem:[%s1 + $0x10] sm:$0xf]
    %v50 = vld [vmem:[%s1 + $0x14] sm:$0xf]
    %v51 = vld [vmem:[%s1 + $0x18] sm:$0xf]
    %v52 = vld [vmem:[%s1 + $0x1c] sm:$0xf]
    %v53 = vld [vmem:[%s1 + $0x20] sm:$0xf]
    %v54 = vld [vmem:[%s1 + $0x24] sm:$0xf]
    %v55 = vld [vmem:[%s1 + $0x28] sm:$0xf]
    %v56 = vld [vmem:[%s1 + $0x2c] sm:$0xf]
    %v57 = vld [vmem:[%s1 + $0x30] sm:$0xf]
    %v58 = vld [vmem:[%s1 + $0x34] sm:$0xf]
    %v59 = vld [vmem:[%s1 + $0x38] sm:$0xf]
    %v60 = vld [vmem:[%s1 + $0x3c] sm:$0xf]
    %v61 = vld [vmem:[%s1 + $0x40] sm:$0xf]
    %v62 = vld [vmem:[%s1 + $0x44] sm:$0xf]
    %v63 = vld [vmem:[%s1 + $0x48] sm:$0xf]
    %v64 = vld [vmem:[%s1 + $0x4c] sm:$0xf]
    %v65 = vld [vmem:[%s1 + $0x50] sm:$0xf]
    %v66 = vld [vmem:[%s1 + $0x54] sm:$0xf]
    %v67 = vld [vmem:[%s1 + $0x58] sm:$0xf]
    %v68 = vld [vmem:[%s1 + $0x5c] sm:$0xf]
    %v69 = vld [vmem:[%s1 + $0x60] sm:$0xf]
    %v70 = vld [vmem:[%s1 + $0x64] sm:$0xf]
    %v71 = vld [vmem:[%s1 + $0x68] sm:$0xf]
    %v72 = vld [vmem:[%s1 + $0x6c] sm:$0xf]
    %v73 = vld [vmem:[%s1 + $0x70] sm:$0xf]
    %v74 = vld [vmem:[%s1 + $0x74] sm:$0xf]
    %v75 = vld [vmem:[%s1 + $0x78] sm:$0xf]
    %v76 = vld [vmem:[%s1 + $0x7c] sm:$0xf]
    %v77 = vld [vmem:[%s1 + $0x80] sm:$0xf]
    %v78 = vld [vmem:[%s1 + $0x84] sm:$0xf]
    %v79 = vld [vmem:[%s1 + $0x88] sm:$0xf]
    %v80 = vld [vmem:[%s1 + $0x8c] sm:$0xf]
    %v81 = vld [vmem:[%s1 + $0x90] sm:$0xf]
    %v82 = vld [vmem:[%s1 + $0x94] sm:$0xf]
    %v83 = vld [vmem:[%s1 + $0x98] sm:$0xf]
    %v84 = vld [vmem:[%s1 + $0x9c] sm:$0xf]
    %v85 = vld [vmem:[%s1 + $0xa0] sm:$0xf]
    %v86 = vld [vmem:[%s1 + $0xa4] sm:$0xf]
    %v87 = vld [vmem:[%s1 + $0xa8] sm:$0xf]
    %v88 = vld [vmem:[%s1 + $0xac] sm:$0xf]
    %v89 = vld [vmem:[%s1 + $0xb0] sm:$0xf]
    %v90 = vld [vmem:[%s1 + $0xb4] sm:$0xf]
    %v91 = vld [vmem:[%s1 + $0xb8] sm:$0xf]
    %v92 = vld [vmem:[%s1 + $0xbc] sm:$0xf]
    %v93 = vld [vmem:[%s1 + $0xc0] sm:$0xf]
    %v94 = vld [vmem:[%s1 + $0xc4] sm:$0xf]
    %v95 = vld [vmem:[%s1 + $0xc8] sm:$0xf]
    %v96 = vld [vmem:[%s1 + $0xcc] sm:$0xf]
    %v97 = vld [vmem:[%s1 + $0xd0] sm:$0xf]
    %v98 = vld [vmem:[%s1 + $0xd4] sm:$0xf]
    %v99 = vld [vmem:[%s1 + $0xd8] sm:$0xf]
    %v100 = vld [vmem:[%s1 + $0xdc] sm:$0xf]
    %v101 = vld [vmem:[%s1 + $0xe0] sm:$0xf]
    %v102 = vld [vmem:[%s1 + $0xe4] sm:$0xf]
    %v103 = vld [vmem:[%s1 + $0xe8] sm:$0xf]
    %v104 = vld [vmem:[%s1 + $0xec] sm:$0xf]
    %v105 = vld [vmem:[%s1 + $0xf0] sm:$0xf]
    %v106 = vld [vmem:[%s1 + $0xf4] sm:$0xf]
    %v107 = vld [vmem:[%s1 + $0xf8] sm:$0xf]
    %v108 = vld [vmem:[%s1 + $0xfc] sm:$0xf]
    %v109 = vld [vmem:[%s1 + $0x100] sm:$0xf]
    %v110 = vld [vmem:[%s1 + $0x104] sm:$0xf]
    %v111 = vld [vmem:[%s1 + $0x108] sm:$0xf]
    %v112 = vld [vmem:[%s1 + $0x10c] sm:$0xf]
    %v113 = vld [vmem:[%s1 + $0x110] sm:$0xf]
    %v114 = vld [vmem:[%s1 + $0x114] sm:$0xf]
    %v115 = vld [vmem:[%s1 + $0x118] sm:$0xf]
    %v116 = vld [vmem:[%s1 + $0x11c] sm:$0xf]
    %v117 = vld [vmem:[%s1 + $0x120] sm:$0xf]
    %v118 = vld [vmem:[%s1 + $0x124] sm:$0xf]
    %v119 = vld [vmem:[%s1 + $0x128] sm:$0xf]
    %v120 = vld [vmem:[%s1 + $0x12c] sm:$0xf]
    %v121 = vld [vmem:[%s1 + $0x130] sm:$0xf]
    %v122 = vld [vmem:[%s1 + $0x134] sm:$0xf]
    %v123 = vld [vmem:[%s1 + $0x138] sm:$0xf]
    %v124 = vld [vmem:[%s1 + $0x13c] sm:$0xf]
    %v131 = vunpack.c.l.b16 %v39
    %v132 = vunpack.c.h.b16 %v39
    %v133 = vunpack.c.l.b16 %v40
    %v134 = vunpack.c.h.b16 %v40
    %v135 = vunpack.c.l.b16 %v41
    %v136 = vunpack.c.l.b16 %v42
    %v137 = vunpack.c.h.b16 %v42
    %v138 = vunpack.c.l.b16 %v43
    %v139 = vunpack.c.h.b16 %v43
    %v140 = vunpack.c.l.b16 %v44
    %v141 = vpack.c.b16 %v136, %v131
    %v142 = vpack.c.b16 %v137, %v132
    %v143 = vpack.c.b16 %v138, %v133
    %v144 = vpack.c.b16 %v139, %v134
    %v145 = vpack.c.b16 %v140, %v135
    %v231 = vunpack.c.l.b16 %v45
    %v232 = vunpack.c.l.b16 %v46
    %v233 = vunpack.c.l.b16 %v47
    %v234 = vunpack.c.l.b16 %v48
    %v235 = vunpack.c.l.b16 %v49
    %v236 = vunpack.c.l.b16 %v50
    %v237 = vunpack.c.l.b16 %v51
    %v238 = vunpack.c.l.b16 %v52
    %v239 = vunpack.c.l.b16 %v53
    %v240 = vunpack.c.l.b16 %v54
    %v241 = vunpack.c.l.b16 %v55
    %v242 = vunpack.c.l.b16 %v56
    %v243 = vunpack.c.l.b16 %v57
    %v244 = vunpack.c.l.b16 %v58
    %v245 = vunpack.c.l.b16 %v59
    %v246 = vunpack.c.l.b16 %v60
    %v247 = vunpack.c.l.b16 %v61
    %v248 = vunpack.c.l.b16 %v62
    %v249 = vunpack.c.l.b16 %v63
    %v250 = vunpack.c.l.b16 %v64
    %v251 = vunpack.c.l.b16 %v65
    %v252 = vunpack.c.l.b16 %v66
    %v253 = vunpack.c.l.b16 %v67
    %v254 = vunpack.c.l.b16 %v68
    %v255 = vunpack.c.l.b16 %v69
    %v256 = vunpack.c.l.b16 %v70
    %v257 = vunpack.c.l.b16 %v71
    %v258 = vunpack.c.l.b16 %v72
    %v259 = vunpack.c.l.b16 %v73
    %v260 = vunpack.c.l.b16 %v74
    %v261 = vunpack.c.l.b16 %v75
    %v262 = vunpack.c.l.b16 %v76
    %v263 = vunpack.c.l.b16 %v77
    %v264 = vunpack.c.l.b16 %v78
    %v265 = vunpack.c.l.b16 %v79
    %v266 = vunpack.c.l.b16 %v80
    %v267 = vunpack.c.l.b16 %v81
    %v268 = vunpack.c.l.b16 %v82
    %v269 = vunpack.c.l.b16 %v83
    %v270 = vunpack.c.l.b16 %v84
    %v271 = vunpack.c.l.b16 %v85
    %v272 = vunpack.c.l.b16 %v86
    %v273 = vunpack.c.l.b16 %v87
    %v274 = vunpack.c.l.b16 %v88
    %v275 = vunpack.c.l.b16 %v89
    %v276 = vunpack.c.l.b16 %v90
    %v277 = vunpack.c.l.b16 %v91
    %v278 = vunpack.c.l.b16 %v92
    %v279 = vunpack.c.l.b16 %v93
    %v280 = vunpack.c.l.b16 %v94
    %v281 = vunpack.c.l.b16 %v95
    %v282 = vunpack.c.l.b16 %v96
    %v283 = vunpack.c.l.b16 %v97
    %v284 = vunpack.c.l.b16 %v98
    %v285 = vunpack.c.l.b16 %v99
    %v286 = vunpack.c.l.b16 %v100
    %v287 = vunpack.c.l.b16 %v101
    %v288 = vunpack.c.l.b16 %v102
    %v289 = vunpack.c.l.b16 %v103
    %v290 = vunpack.c.l.b16 %v104
    %v291 = vunpack.c.l.b16 %v105
    %v292 = vunpack.c.l.b16 %v106
    %v293 = vunpack.c.l.b16 %v107
    %v294 = vunpack.c.l.b16 %v108
    %v295 = vunpack.c.l.b16 %v109
    %v296 = vunpack.c.l.b16 %v110
    %v297 = vunpack.c.l.b16 %v111
    %v298 = vunpack.c.l.b16 %v112
    %v299 = vunpack.c.l.b16 %v113
    %v300 = vunpack.c.l.b16 %v114
    %v301 = vunpack.c.l.b16 %v115
    %v302 = vunpack.c.l.b16 %v116
    %v303 = vunpack.c.l.b16 %v117
    %v304 = vunpack.c.l.b16 %v118
    %v305 = vunpack.c.l.b16 %v119
    %v306 = vunpack.c.l.b16 %v120
    %v307 = vunpack.c.l.b16 %v121
    %v308 = vunpack.c.l.b16 %v122
    %v309 = vunpack.c.l.b16 %v123
    %v310 = vunpack.c.l.b16 %v124
    %v311 = vpack.c.b16 %v232, %v231
    %v312 = vpack.c.b16 %v234, %v233
    %v313 = vpack.c.b16 %v236, %v235
    %v314 = vpack.c.b16 %v238, %v237
    %v315 = vpack.c.b16 %v240, %v239
    %v316 = vpack.c.b16 %v242, %v241
    %v317 = vpack.c.b16 %v244, %v243
    %v318 = vpack.c.b16 %v246, %v245
    %v319 = vpack.c.b16 %v248, %v247
    %v320 = vpack.c.b16 %v250, %v249
    %v321 = vpack.c.b16 %v252, %v251
    %v322 = vpack.c.b16 %v254, %v253
    %v323 = vpack.c.b16 %v256, %v255
    %v324 = vpack.c.b16 %v258, %v257
    %v325 = vpack.c.b16 %v260, %v259
    %v326 = vpack.c.b16 %v262, %v261
    %v327 = vpack.c.b16 %v264, %v263
    %v328 = vpack.c.b16 %v266, %v265
    %v329 = vpack.c.b16 %v268, %v267
    %v330 = vpack.c.b16 %v270, %v269
    %v331 = vpack.c.b16 %v272, %v271
    %v332 = vpack.c.b16 %v274, %v273
    %v333 = vpack.c.b16 %v276, %v275
    %v334 = vpack.c.b16 %v278, %v277
    %v335 = vpack.c.b16 %v280, %v279
    %v336 = vpack.c.b16 %v282, %v281
    %v337 = vpack.c.b16 %v284, %v283
    %v338 = vpack.c.b16 %v286, %v285
    %v339 = vpack.c.b16 %v288, %v287
    %v340 = vpack.c.b16 %v290, %v289
    %v341 = vpack.c.b16 %v292, %v291
    %v342 = vpack.c.b16 %v294, %v293
    %v343 = vpack.c.b16 %v296, %v295
    %v344 = vpack.c.b16 %v298, %v297
    %v345 = vpack.c.b16 %v300, %v299
    %v346 = vpack.c.b16 %v302, %v301
    %v347 = vpack.c.b16 %v304, %v303
    %v348 = vpack.c.b16 %v306, %v305
    %v349 = vpack.c.b16 %v308, %v307
    %v350 = vpack.c.b16 %v310, %v309
    %391 = vmatpush.bf16.msra.mxu0 %v318
    %392 = vmatpush.bf16.msra.mxu0 %v317
    %393 = vmatpush.bf16.msra.mxu0 %v316
    %394 = vmatpush.bf16.msra.mxu0 %v315
    %395 = vmatpush.bf16.msra.mxu0 %v314
    %396 = vmatpush.bf16.msra.mxu0 %v313
    %397 = vmatpush.bf16.msra.mxu0 %v312
    %398 = vmatpush.bf16.msra.mxu0 %v311
    %399 = vmatmul.bf16.gmra.mxu0 %v141
    %v400 = vpop.f32.mrf.mxu0
    %v401 = vadd.f32 0.0, %v400
    %v402 = vpop.f32.mrf.mxu0
    %v403 = vadd.f32 0.0, %v402
    %404 = vdwg.mxu0
    %405 = vmatpush.bf16.msra.mxu0 %v326
    %406 = vmatpush.bf16.msra.mxu0 %v325
    %407 = vmatpush.bf16.msra.mxu0 %v324
    %408 = vmatpush.bf16.msra.mxu0 %v323
    %409 = vmatpush.bf16.msra.mxu0 %v322
    %410 = vmatpush.bf16.msra.mxu0 %v321
    %411 = vmatpush.bf16.msra.mxu0 %v320
    %412 = vmatpush.bf16.msra.mxu0 %v319
    %413 = vmatmul.bf16.gmra.mxu0 %v142
    %v414 = vpop.f32.mrf.mxu0
    %v415 = vadd.f32 %v401, %v414
    %v416 = vpop.f32.mrf.mxu0
    %v417 = vadd.f32 %v403, %v416
    %418 = vdwg.mxu0
    %419 = vmatpush.bf16.msra.mxu0 %v334
    %420 = vmatpush.bf16.msra.mxu0 %v333
    %421 = vmatpush.bf16.msra.mxu0 %v332
    %422 = vmatpush.bf16.msra.mxu0 %v331
    %423 = vmatpush.bf16.msra.mxu0 %v330
    %424 = vmatpush.bf16.msra.mxu0 %v329
    %425 = vmatpush.bf16.msra.mxu0 %v328
    %426 = vmatpush.bf16.msra.mxu0 %v327
    %427 = vmatmul.bf16.gmra.mxu0 %v143
    %v428 = vpop.f32.mrf.mxu0
    %v429 = vadd.f32 %v415, %v428
    %v430 = vpop.f32.mrf.mxu0
    %v431 = vadd.f32 %v417, %v430
    %432 = vdwg.mxu0
    %433 = vmatpush.bf16.msra.mxu0 %v342
    %434 = vmatpush.bf16.msra.mxu0 %v341
    %435 = vmatpush.bf16.msra.mxu0 %v340
    %436 = vmatpush.bf16.msra.mxu0 %v339
    %437 = vmatpush.bf16.msra.mxu0 %v338
    %438 = vmatpush.bf16.msra.mxu0 %v337
    %439 = vmatpush.bf16.msra.mxu0 %v336
    %440 = vmatpush.bf16.msra.mxu0 %v335
    %441 = vmatmul.bf16.gmra.mxu0 %v144
    %v442 = vpop.f32.mrf.mxu0
    %v443 = vadd.f32 %v429, %v442
    %v444 = vpop.f32.mrf.mxu0
    %v445 = vadd.f32 %v431, %v444
    %446 = vdwg.mxu0
    %447 = vmatpush.bf16.msra.mxu0 %v350
    %448 = vmatpush.bf16.msra.mxu0 %v349
    %449 = vmatpush.bf16.msra.mxu0 %v348
    %450 = vmatpush.bf16.msra.mxu0 %v347
    %451 = vmatpush.bf16.msra.mxu0 %v346
    %452 = vmatpush.bf16.msra.mxu0 %v345
    %453 = vmatpush.bf16.msra.mxu0 %v344
    %454 = vmatpush.bf16.msra.mxu0 %v343
    %455 = vmatmul.bf16.gmra.mxu0 %v145
    %v456 = vpop.f32.mrf.mxu0
    %v457 = vadd.f32 %v443, %v456
    %v458 = vpop.f32.mrf.mxu0
    %v459 = vadd.f32 %v445, %v458
    %460 = vdwg.mxu0
    %v461 = vpack.c.bf16 %v457, %v457
    %v462 = vpack.c.bf16 %v459, %v459
    %463 = vst [vmem:[#allocation5] sm:$0xf] %v461
    %464 = vst [vmem:[#allocation5 + $0x4] sm:$0xf] %v462
    %v465 = vld [vmem:[%s2] sm:$0xf]
    %v466 = vld [vmem:[%s2 + $0x4] sm:$0xf]
    %v467 = vld [vmem:[%s2 + $0x8] sm:$0xf]
    %v468 = vld [vmem:[%s2 + $0xc] sm:$0xf]
    %v469 = vld [vmem:[%s2 + $0x10] sm:$0xf]
    %v470 = vld [vmem:[%s2 + $0x14] sm:$0xf]
    %v471 = vld [vmem:[%s2 + $0x18] sm:$0xf]
    %v472 = vld [vmem:[%s2 + $0x1c] sm:$0xf]
    %v473 = vld [vmem:[%s2 + $0x20] sm:$0xf]
    %v474 = vld [vmem:[%s2 + $0x24] sm:$0xf]
    %v475 = vld [vmem:[%s2 + $0x28] sm:$0xf]
    %v476 = vld [vmem:[%s2 + $0x2c] sm:$0xf]
    %v477 = vld [vmem:[%s2 + $0x30] sm:$0xf]
    %v478 = vld [vmem:[%s2 + $0x34] sm:$0xf]
    %v479 = vld [vmem:[%s2 + $0x38] sm:$0xf]
    %v480 = vld [vmem:[%s2 + $0x3c] sm:$0xf]
    %v481 = vld [vmem:[%s2 + $0x40] sm:$0xf]
    %v482 = vld [vmem:[%s2 + $0x44] sm:$0xf]
    %v483 = vld [vmem:[%s2 + $0x48] sm:$0xf]
    %v484 = vld [vmem:[%s2 + $0x4c] sm:$0xf]
    %v485 = vld [vmem:[%s2 + $0x50] sm:$0xf]
    %v486 = vld [vmem:[%s2 + $0x54] sm:$0xf]
    %v487 = vld [vmem:[%s2 + $0x58] sm:$0xf]
    %v488 = vld [vmem:[%s2 + $0x5c] sm:$0xf]
    %v489 = vld [vmem:[%s2 + $0x60] sm:$0xf]
    %v490 = vld [vmem:[%s2 + $0x64] sm:$0xf]
    %v491 = vld [vmem:[%s2 + $0x68] sm:$0xf]
    %v492 = vld [vmem:[%s2 + $0x6c] sm:$0xf]
    %v493 = vld [vmem:[%s2 + $0x70] sm:$0xf]
    %v494 = vld [vmem:[%s2 + $0x74] sm:$0xf]
    %v495 = vld [vmem:[%s2 + $0x78] sm:$0xf]
    %v496 = vld [vmem:[%s2 + $0x7c] sm:$0xf]
    %v497 = vld [vmem:[%s2 + $0x80] sm:$0xf]
    %v498 = vld [vmem:[%s2 + $0x84] sm:$0xf]
    %v499 = vld [vmem:[%s2 + $0x88] sm:$0xf]
    %v500 = vld [vmem:[%s2 + $0x8c] sm:$0xf]
    %v501 = vld [vmem:[%s2 + $0x90] sm:$0xf]
    %v502 = vld [vmem:[%s2 + $0x94] sm:$0xf]
    %v503 = vld [vmem:[%s2 + $0x98] sm:$0xf]
    %v504 = vld [vmem:[%s2 + $0x9c] sm:$0xf]
    %v505 = vld [vmem:[%s2 + $0xa0] sm:$0xf]
    %v506 = vld [vmem:[%s2 + $0xa4] sm:$0xf]
    %v507 = vld [vmem:[%s2 + $0xa8] sm:$0xf]
    %v508 = vld [vmem:[%s2 + $0xac] sm:$0xf]
    %v509 = vld [vmem:[%s2 + $0xb0] sm:$0xf]
    %v510 = vld [vmem:[%s2 + $0xb4] sm:$0xf]
    %v511 = vld [vmem:[%s2 + $0xb8] sm:$0xf]
    %v512 = vld [vmem:[%s2 + $0xbc] sm:$0xf]
    %v513 = vld [vmem:[%s2 + $0xc0] sm:$0xf]
    %v514 = vld [vmem:[%s2 + $0xc4] sm:$0xf]
    %v515 = vld [vmem:[%s2 + $0xc8] sm:$0xf]
    %v516 = vld [vmem:[%s2 + $0xcc] sm:$0xf]
    %v517 = vld [vmem:[%s2 + $0xd0] sm:$0xf]
    %v518 = vld [vmem:[%s2 + $0xd4] sm:$0xf]
    %v519 = vld [vmem:[%s2 + $0xd8] sm:$0xf]
    %v520 = vld [vmem:[%s2 + $0xdc] sm:$0xf]
    %v521 = vld [vmem:[%s2 + $0xe0] sm:$0xf]
    %v522 = vld [vmem:[%s2 + $0xe4] sm:$0xf]
    %v523 = vld [vmem:[%s2 + $0xe8] sm:$0xf]
    %v524 = vld [vmem:[%s2 + $0xec] sm:$0xf]
    %v525 = vld [vmem:[%s2 + $0xf0] sm:$0xf]
    %v526 = vld [vmem:[%s2 + $0xf4] sm:$0xf]
    %v527 = vld [vmem:[%s2 + $0xf8] sm:$0xf]
    %v528 = vld [vmem:[%s2 + $0xfc] sm:$0xf]
    %v529 = vld [vmem:[%s2 + $0x100] sm:$0xf]
    %v530 = vld [vmem:[%s2 + $0x104] sm:$0xf]
    %v531 = vld [vmem:[%s2 + $0x108] sm:$0xf]
    %v532 = vld [vmem:[%s2 + $0x10c] sm:$0xf]
    %v533 = vld [vmem:[%s2 + $0x110] sm:$0xf]
    %v534 = vld [vmem:[%s2 + $0x114] sm:$0xf]
    %v535 = vld [vmem:[%s2 + $0x118] sm:$0xf]
    %v536 = vld [vmem:[%s2 + $0x11c] sm:$0xf]
    %v537 = vld [vmem:[%s2 + $0x120] sm:$0xf]
    %v538 = vld [vmem:[%s2 + $0x124] sm:$0xf]
    %v539 = vld [vmem:[%s2 + $0x128] sm:$0xf]
    %v540 = vld [vmem:[%s2 + $0x12c] sm:$0xf]
    %v541 = vld [vmem:[%s2 + $0x130] sm:$0xf]
    %v542 = vld [vmem:[%s2 + $0x134] sm:$0xf]
    %v543 = vld [vmem:[%s2 + $0x138] sm:$0xf]
    %v544 = vld [vmem:[%s2 + $0x13c] sm:$0xf]
    %v625 = vunpack.c.l.b16 %v465
    %v626 = vunpack.c.l.b16 %v466
    %v627 = vunpack.c.l.b16 %v467
    %v628 = vunpack.c.l.b16 %v468
    %v629 = vunpack.c.l.b16 %v469
    %v630 = vunpack.c.l.b16 %v470
    %v631 = vunpack.c.l.b16 %v471
    %v632 = vunpack.c.l.b16 %v472
    %v633 = vunpack.c.l.b16 %v473
    %v634 = vunpack.c.l.b16 %v474
    %v635 = vunpack.c.l.b16 %v475
    %v636 = vunpack.c.l.b16 %v476
    %v637 = vunpack.c.l.b16 %v477
    %v638 = vunpack.c.l.b16 %v478
    %v639 = vunpack.c.l.b16 %v479
    %v640 = vunpack.c.l.b16 %v480
    %v641 = vunpack.c.l.b16 %v481
    %v642 = vunpack.c.l.b16 %v482
    %v643 = vunpack.c.l.b16 %v483
    %v644 = vunpack.c.l.b16 %v484
    %v645 = vunpack.c.l.b16 %v485
    %v646 = vunpack.c.l.b16 %v486
    %v647 = vunpack.c.l.b16 %v487
    %v648 = vunpack.c.l.b16 %v488
    %v649 = vunpack.c.l.b16 %v489
    %v650 = vunpack.c.l.b16 %v490
    %v651 = vunpack.c.l.b16 %v491
    %v652 = vunpack.c.l.b16 %v492
    %v653 = vunpack.c.l.b16 %v493
    %v654 = vunpack.c.l.b16 %v494
    %v655 = vunpack.c.l.b16 %v495
    %v656 = vunpack.c.l.b16 %v496
    %v657 = vunpack.c.l.b16 %v497
    %v658 = vunpack.c.l.b16 %v498
    %v659 = vunpack.c.l.b16 %v499
    %v660 = vunpack.c.l.b16 %v500
    %v661 = vunpack.c.l.b16 %v501
    %v662 = vunpack.c.l.b16 %v502
    %v663 = vunpack.c.l.b16 %v503
    %v664 = vunpack.c.l.b16 %v504
    %v665 = vunpack.c.l.b16 %v505
    %v666 = vunpack.c.l.b16 %v506
    %v667 = vunpack.c.l.b16 %v507
    %v668 = vunpack.c.l.b16 %v508
    %v669 = vunpack.c.l.b16 %v509
    %v670 = vunpack.c.l.b16 %v510
    %v671 = vunpack.c.l.b16 %v511
    %v672 = vunpack.c.l.b16 %v512
    %v673 = vunpack.c.l.b16 %v513
    %v674 = vunpack.c.l.b16 %v514
    %v675 = vunpack.c.l.b16 %v515
    %v676 = vunpack.c.l.b16 %v516
    %v677 = vunpack.c.l.b16 %v517
    %v678 = vunpack.c.l.b16 %v518
    %v679 = vunpack.c.l.b16 %v519
    %v680 = vunpack.c.l.b16 %v520
    %v681 = vunpack.c.l.b16 %v521
    %v682 = vunpack.c.l.b16 %v522
    %v683 = vunpack.c.l.b16 %v523
    %v684 = vunpack.c.l.b16 %v524
    %v685 = vunpack.c.l.b16 %v525
    %v686 = vunpack.c.l.b16 %v526
    %v687 = vunpack.c.l.b16 %v527
    %v688 = vunpack.c.l.b16 %v528
    %v689 = vunpack.c.l.b16 %v529
    %v690 = vunpack.c.l.b16 %v530
    %v691 = vunpack.c.l.b16 %v531
    %v692 = vunpack.c.l.b16 %v532
    %v693 = vunpack.c.l.b16 %v533
    %v694 = vunpack.c.l.b16 %v534
    %v695 = vunpack.c.l.b16 %v535
    %v696 = vunpack.c.l.b16 %v536
    %v697 = vunpack.c.l.b16 %v537
    %v698 = vunpack.c.l.b16 %v538
    %v699 = vunpack.c.l.b16 %v539
    %v700 = vunpack.c.l.b16 %v540
    %v701 = vunpack.c.l.b16 %v541
    %v702 = vunpack.c.l.b16 %v542
    %v703 = vunpack.c.l.b16 %v543
    %v704 = vunpack.c.l.b16 %v544
    %v705 = vpack.c.b16 %v626, %v625
    %v706 = vpack.c.b16 %v628, %v627
    %v707 = vpack.c.b16 %v630, %v629
    %v708 = vpack.c.b16 %v632, %v631
    %v709 = vpack.c.b16 %v634, %v633
    %v710 = vpack.c.b16 %v636, %v635
    %v711 = vpack.c.b16 %v638, %v637
    %v712 = vpack.c.b16 %v640, %v639
    %v713 = vpack.c.b16 %v642, %v641
    %v714 = vpack.c.b16 %v644, %v643
    %v715 = vpack.c.b16 %v646, %v645
    %v716 = vpack.c.b16 %v648, %v647
    %v717 = vpack.c.b16 %v650, %v649
    %v718 = vpack.c.b16 %v652, %v651
    %v719 = vpack.c.b16 %v654, %v653
    %v720 = vpack.c.b16 %v656, %v655
    %v721 = vpack.c.b16 %v658, %v657
    %v722 = vpack.c.b16 %v660, %v659
    %v723 = vpack.c.b16 %v662, %v661
    %v724 = vpack.c.b16 %v664, %v663
    %v725 = vpack.c.b16 %v666, %v665
    %v726 = vpack.c.b16 %v668, %v667
    %v727 = vpack.c.b16 %v670, %v669
    %v728 = vpack.c.b16 %v672, %v671
    %v729 = vpack.c.b16 %v674, %v673
    %v730 = vpack.c.b16 %v676, %v675
    %v731 = vpack.c.b16 %v678, %v677
    %v732 = vpack.c.b16 %v680, %v679
    %v733 = vpack.c.b16 %v682, %v681
    %v734 = vpack.c.b16 %v684, %v683
    %v735 = vpack.c.b16 %v686, %v685
    %v736 = vpack.c.b16 %v688, %v687
    %v737 = vpack.c.b16 %v690, %v689
    %v738 = vpack.c.b16 %v692, %v691
    %v739 = vpack.c.b16 %v694, %v693
    %v740 = vpack.c.b16 %v696, %v695
    %v741 = vpack.c.b16 %v698, %v697
    %v742 = vpack.c.b16 %v700, %v699
    %v743 = vpack.c.b16 %v702, %v701
    %v744 = vpack.c.b16 %v704, %v703
    %785 = vmatpush.bf16.msra.mxu0 %v712
    %786 = vmatpush.bf16.msra.mxu0 %v711
    %787 = vmatpush.bf16.msra.mxu0 %v710
    %788 = vmatpush.bf16.msra.mxu0 %v709
    %789 = vmatpush.bf16.msra.mxu0 %v708
    %790 = vmatpush.bf16.msra.mxu0 %v707
    %791 = vmatpush.bf16.msra.mxu0 %v706
    %792 = vmatpush.bf16.msra.mxu0 %v705
    %793 = vmatmul.bf16.gmra.mxu0 %v141
    %v794 = vpop.f32.mrf.mxu0
    %v795 = vadd.f32 0.0, %v794
    %v796 = vpop.f32.mrf.mxu0
    %v797 = vadd.f32 0.0, %v796
    %798 = vdwg.mxu0
    %799 = vmatpush.bf16.msra.mxu0 %v720
    %800 = vmatpush.bf16.msra.mxu0 %v719
    %801 = vmatpush.bf16.msra.mxu0 %v718
    %802 = vmatpush.bf16.msra.mxu0 %v717
    %803 = vmatpush.bf16.msra.mxu0 %v716
    %804 = vmatpush.bf16.msra.mxu0 %v715
    %805 = vmatpush.bf16.msra.mxu0 %v714
    %806 = vmatpush.bf16.msra.mxu0 %v713
    %807 = vmatmul.bf16.gmra.mxu0 %v142
    %v808 = vpop.f32.mrf.mxu0
    %v809 = vadd.f32 %v795, %v808
    %v810 = vpop.f32.mrf.mxu0
    %v811 = vadd.f32 %v797, %v810
    %812 = vdwg.mxu0
    %813 = vmatpush.bf16.msra.mxu0 %v728
    %814 = vmatpush.bf16.msra.mxu0 %v727
    %815 = vmatpush.bf16.msra.mxu0 %v726
    %816 = vmatpush.bf16.msra.mxu0 %v725
    %817 = vmatpush.bf16.msra.mxu0 %v724
    %818 = vmatpush.bf16.msra.mxu0 %v723
    %819 = vmatpush.bf16.msra.mxu0 %v722
    %820 = vmatpush.bf16.msra.mxu0 %v721
    %821 = vmatmul.bf16.gmra.mxu0 %v143
    %v822 = vpop.f32.mrf.mxu0
    %v823 = vadd.f32 %v809, %v822
    %v824 = vpop.f32.mrf.mxu0
    %v825 = vadd.f32 %v811, %v824
    %826 = vdwg.mxu0
    %827 = vmatpush.bf16.msra.mxu0 %v736
    %828 = vmatpush.bf16.msra.mxu0 %v735
    %829 = vmatpush.bf16.msra.mxu0 %v734
    %830 = vmatpush.bf16.msra.mxu0 %v733
    %831 = vmatpush.bf16.msra.mxu0 %v732
    %832 = vmatpush.bf16.msra.mxu0 %v731
    %833 = vmatpush.bf16.msra.mxu0 %v730
    %834 = vmatpush.bf16.msra.mxu0 %v729
    %835 = vmatmul.bf16.gmra.mxu0 %v144
    %v836 = vpop.f32.mrf.mxu0
    %v837 = vadd.f32 %v823, %v836
    %v838 = vpop.f32.mrf.mxu0
    %v839 = vadd.f32 %v825, %v838
    %840 = vdwg.mxu0
    %841 = vmatpush.bf16.msra.mxu0 %v744
    %842 = vmatpush.bf16.msra.mxu0 %v743
    %843 = vmatpush.bf16.msra.mxu0 %v742
    %844 = vmatpush.bf16.msra.mxu0 %v741
    %845 = vmatpush.bf16.msra.mxu0 %v740
    %846 = vmatpush.bf16.msra.mxu0 %v739
    %847 = vmatpush.bf16.msra.mxu0 %v738
    %848 = vmatpush.bf16.msra.mxu0 %v737
    %849 = vmatmul.bf16.gmra.mxu0 %v145
    %v850 = vpop.f32.mrf.mxu0
    %v851 = vadd.f32 %v837, %v850
    %v852 = vpop.f32.mrf.mxu0
    %v853 = vadd.f32 %v839, %v852
    %854 = vdwg.mxu0
    %vm855 = vcmask 7168
    %856 = vst.msk [vmem:[%s5] sm:$0xff] %vm855, %v851
    %857 = vst.msk [vmem:[%s5 + $0x8] sm:$0xff] %vm855, %v853
    %v858 = vld [vmem:[%s3] sm:$0x1f]
    %860 = vst [vmem:[#allocation1] ss:$9 sm:$0xff] %v858
    %v861 = vld [vmem:[#allocation1] sm:$0xff]
    %v862 = vld [vmem:[#allocation1 + $0x9] sm:$0xff]
    %v863 = vld [vmem:[#allocation1 + $0x12] sm:$0xff]
    %v864 = vld [vmem:[#allocation1 + $0x1b] sm:$0xff]
    %v865 = vld [vmem:[#allocation1 + $0x24] sm:$0xff]
    %871 = vmatpush.bf16.xpose.msra.mxu0 0
    %872 = vmatpush.bf16.xpose.msra.mxu0 0
    %873 = vmatpush.bf16.xpose.msra.mxu0 0
    %874 = vmatpush.bf16.xpose.msra.mxu0 0
    %875 = vmatpush.bf16.xpose.msra.mxu0 0
    %876 = vmatpush.bf16.xpose.msra.mxu0 0
    %877 = vmatpush.bf16.xpose.msra.mxu0 0
    %878 = vmatpush.bf16.xpose.msra.mxu0 %v141
    %879 = vmatmul.bf16.gmra.mxu0 %v861
    %v880 = vpop.f32.mrf.mxu0
    %v881 = vadd.f32 0.0, %v880
    %v882 = vpop.f32.mrf.mxu0
    %883 = vdwg.mxu0
    %884 = vmatpush.bf16.xpose.msra.mxu0 0
    %885 = vmatpush.bf16.xpose.msra.mxu0 0
    %886 = vmatpush.bf16.xpose.msra.mxu0 0
    %887 = vmatpush.bf16.xpose.msra.mxu0 0
    %888 = vmatpush.bf16.xpose.msra.mxu0 0
    %889 = vmatpush.bf16.xpose.msra.mxu0 0
    %890 = vmatpush.bf16.xpose.msra.mxu0 0
    %891 = vmatpush.bf16.xpose.msra.mxu0 %v142
    %892 = vmatmul.bf16.gmra.mxu0 %v862
    %v893 = vpop.f32.mrf.mxu0
    %v894 = vadd.f32 %v881, %v893
    %v895 = vpop.f32.mrf.mxu0
    %896 = vdwg.mxu0
    %897 = vmatpush.bf16.xpose.msra.mxu0 0
    %898 = vmatpush.bf16.xpose.msra.mxu0 0
    %899 = vmatpush.bf16.xpose.msra.mxu0 0
    %900 = vmatpush.bf16.xpose.msra.mxu0 0
    %901 = vmatpush.bf16.xpose.msra.mxu0 0
    %902 = vmatpush.bf16.xpose.msra.mxu0 0
    %903 = vmatpush.bf16.xpose.msra.mxu0 0
    %904 = vmatpush.bf16.xpose.msra.mxu0 %v143
    %905 = vmatmul.bf16.gmra.mxu0 %v863
    %v906 = vpop.f32.mrf.mxu0
    %v907 = vadd.f32 %v894, %v906
    %v908 = vpop.f32.mrf.mxu0
    %909 = vdwg.mxu0
    %910 = vmatpush.bf16.xpose.msra.mxu0 0
    %911 = vmatpush.bf16.xpose.msra.mxu0 0
    %912 = vmatpush.bf16.xpose.msra.mxu0 0
    %913 = vmatpush.bf16.xpose.msra.mxu0 0
    %914 = vmatpush.bf16.xpose.msra.mxu0 0
    %915 = vmatpush.bf16.xpose.msra.mxu0 0
    %916 = vmatpush.bf16.xpose.msra.mxu0 0
    %917 = vmatpush.bf16.xpose.msra.mxu0 %v144
    %918 = vmatmul.bf16.gmra.mxu0 %v864
    %v919 = vpop.f32.mrf.mxu0
    %v920 = vadd.f32 %v907, %v919
    %v921 = vpop.f32.mrf.mxu0
    %922 = vdwg.mxu0
    %923 = vmatpush.bf16.xpose.msra.mxu0 0
    %924 = vmatpush.bf16.xpose.msra.mxu0 0
    %925 = vmatpush.bf16.xpose.msra.mxu0 0
    %926 = vmatpush.bf16.xpose.msra.mxu0 0
    %927 = vmatpush.bf16.xpose.msra.mxu0 0
    %928 = vmatpush.bf16.xpose.msra.mxu0 0
    %929 = vmatpush.bf16.xpose.msra.mxu0 0
    %930 = vmatpush.bf16.xpose.msra.mxu0 %v145
    %931 = vmatmul.bf16.gmra.mxu0 %v865
    %v932 = vpop.f32.mrf.mxu0
    %v933 = vadd.f32 %v920, %v932
    %v934 = vpop.f32.mrf.mxu0
    %935 = vdwg.mxu0
    %vm936 = vcmask 122880
    %937 = vst.msk [vmem:[#allocation6] sm:$0x1] %vm936, %v933
    %s938 = scalar_lea.vmem %s1, 320
    %v939 = vld [vmem:[%s938] sm:$0xf]
    %v940 = vld [vmem:[%s938 + $0x4] sm:$0xf]
    %v941 = vld [vmem:[%s938 + $0x8] sm:$0xf]
    %v942 = vld [vmem:[%s938 + $0xc] sm:$0xf]
    %v943 = vld [vmem:[%s938 + $0x10] sm:$0xf]
    %v944 = vld [vmem:[%s938 + $0x14] sm:$0xf]
    %v945 = vld [vmem:[%s938 + $0x18] sm:$0xf]
    %v946 = vld [vmem:[%s938 + $0x1c] sm:$0xf]
    %v947 = vld [vmem:[%s938 + $0x20] sm:$0xf]
    %v948 = vld [vmem:[%s938 + $0x24] sm:$0xf]
    %v949 = vld [vmem:[%s938 + $0x28] sm:$0xf]
    %v950 = vld [vmem:[%s938 + $0x2c] sm:$0xf]
    %v951 = vld [vmem:[%s938 + $0x30] sm:$0xf]
    %v952 = vld [vmem:[%s938 + $0x34] sm:$0xf]
    %v953 = vld [vmem:[%s938 + $0x38] sm:$0xf]
    %v954 = vld [vmem:[%s938 + $0x3c] sm:$0xf]
    %v955 = vld [vmem:[%s938 + $0x40] sm:$0xf]
    %v956 = vld [vmem:[%s938 + $0x44] sm:$0xf]
    %v957 = vld [vmem:[%s938 + $0x48] sm:$0xf]
    %v958 = vld [vmem:[%s938 + $0x4c] sm:$0xf]
    %v959 = vld [vmem:[%s938 + $0x50] sm:$0xf]
    %v960 = vld [vmem:[%s938 + $0x54] sm:$0xf]
    %v961 = vld [vmem:[%s938 + $0x58] sm:$0xf]
    %v962 = vld [vmem:[%s938 + $0x5c] sm:$0xf]
    %v963 = vld [vmem:[%s938 + $0x60] sm:$0xf]
    %v964 = vld [vmem:[%s938 + $0x64] sm:$0xf]
    %v965 = vld [vmem:[%s938 + $0x68] sm:$0xf]
    %v966 = vld [vmem:[%s938 + $0x6c] sm:$0xf]
    %v967 = vld [vmem:[%s938 + $0x70] sm:$0xf]
    %v968 = vld [vmem:[%s938 + $0x74] sm:$0xf]
    %v969 = vld [vmem:[%s938 + $0x78] sm:$0xf]
    %v970 = vld [vmem:[%s938 + $0x7c] sm:$0xf]
    %v971 = vld [vmem:[%s938 + $0x80] sm:$0xf]
    %v972 = vld [vmem:[%s938 + $0x84] sm:$0xf]
    %v973 = vld [vmem:[%s938 + $0x88] sm:$0xf]
    %v974 = vld [vmem:[%s938 + $0x8c] sm:$0xf]
    %v975 = vld [vmem:[%s938 + $0x90] sm:$0xf]
    %v976 = vld [vmem:[%s938 + $0x94] sm:$0xf]
    %v977 = vld [vmem:[%s938 + $0x98] sm:$0xf]
    %v978 = vld [vmem:[%s938 + $0x9c] sm:$0xf]
    %v979 = vld [vmem:[%s938 + $0xa0] sm:$0xf]
    %v980 = vld [vmem:[%s938 + $0xa4] sm:$0xf]
    %v981 = vld [vmem:[%s938 + $0xa8] sm:$0xf]
    %v982 = vld [vmem:[%s938 + $0xac] sm:$0xf]
    %v983 = vld [vmem:[%s938 + $0xb0] sm:$0xf]
    %v984 = vld [vmem:[%s938 + $0xb4] sm:$0xf]
    %v985 = vld [vmem:[%s938 + $0xb8] sm:$0xf]
    %v986 = vld [vmem:[%s938 + $0xbc] sm:$0xf]
    %v987 = vld [vmem:[%s938 + $0xc0] sm:$0xf]
    %v988 = vld [vmem:[%s938 + $0xc4] sm:$0xf]
    %v989 = vld [vmem:[%s938 + $0xc8] sm:$0xf]
    %v990 = vld [vmem:[%s938 + $0xcc] sm:$0xf]
    %v991 = vld [vmem:[%s938 + $0xd0] sm:$0xf]
    %v992 = vld [vmem:[%s938 + $0xd4] sm:$0xf]
    %v993 = vld [vmem:[%s938 + $0xd8] sm:$0xf]
    %v994 = vld [vmem:[%s938 + $0xdc] sm:$0xf]
    %v995 = vld [vmem:[%s938 + $0xe0] sm:$0xf]
    %v996 = vld [vmem:[%s938 + $0xe4] sm:$0xf]
    %v997 = vld [vmem:[%s938 + $0xe8] sm:$0xf]
    %v998 = vld [vmem:[%s938 + $0xec] sm:$0xf]
    %v999 = vld [vmem:[%s938 + $0xf0] sm:$0xf]
    %v1000 = vld [vmem:[%s938 + $0xf4] sm:$0xf]
    %v1001 = vld [vmem:[%s938 + $0xf8] sm:$0xf]
    %v1002 = vld [vmem:[%s938 + $0xfc] sm:$0xf]
    %v1003 = vld [vmem:[%s938 + $0x100] sm:$0xf]
    %v1004 = vld [vmem:[%s938 + $0x104] sm:$0xf]
    %v1005 = vld [vmem:[%s938 + $0x108] sm:$0xf]
    %v1006 = vld [vmem:[%s938 + $0x10c] sm:$0xf]
    %v1007 = vld [vmem:[%s938 + $0x110] sm:$0xf]
    %v1008 = vld [vmem:[%s938 + $0x114] sm:$0xf]
    %v1009 = vld [vmem:[%s938 + $0x118] sm:$0xf]
    %v1010 = vld [vmem:[%s938 + $0x11c] sm:$0xf]
    %v1011 = vld [vmem:[%s938 + $0x120] sm:$0xf]
    %v1012 = vld [vmem:[%s938 + $0x124] sm:$0xf]
    %v1013 = vld [vmem:[%s938 + $0x128] sm:$0xf]
    %v1014 = vld [vmem:[%s938 + $0x12c] sm:$0xf]
    %v1015 = vld [vmem:[%s938 + $0x130] sm:$0xf]
    %v1016 = vld [vmem:[%s938 + $0x134] sm:$0xf]
    %v1017 = vld [vmem:[%s938 + $0x138] sm:$0xf]
    %v1018 = vld [vmem:[%s938 + $0x13c] sm:$0xf]
    %v1099 = vunpack.c.l.b16 %v939
    %v1100 = vunpack.c.l.b16 %v940
    %v1101 = vunpack.c.l.b16 %v941
    %v1102 = vunpack.c.l.b16 %v942
    %v1103 = vunpack.c.l.b16 %v943
    %v1104 = vunpack.c.l.b16 %v944
    %v1105 = vunpack.c.l.b16 %v945
    %v1106 = vunpack.c.l.b16 %v946
    %v1107 = vunpack.c.l.b16 %v947
    %v1108 = vunpack.c.l.b16 %v948
    %v1109 = vunpack.c.l.b16 %v949
    %v1110 = vunpack.c.l.b16 %v950
    %v1111 = vunpack.c.l.b16 %v951
    %v1112 = vunpack.c.l.b16 %v952
    %v1113 = vunpack.c.l.b16 %v953
    %v1114 = vunpack.c.l.b16 %v954
    %v1115 = vunpack.c.l.b16 %v955
    %v1116 = vunpack.c.l.b16 %v956
    %v1117 = vunpack.c.l.b16 %v957
    %v1118 = vunpack.c.l.b16 %v958
    %v1119 = vunpack.c.l.b16 %v959
    %v1120 = vunpack.c.l.b16 %v960
    %v1121 = vunpack.c.l.b16 %v961
    %v1122 = vunpack.c.l.b16 %v962
    %v1123 = vunpack.c.l.b16 %v963
    %v1124 = vunpack.c.l.b16 %v964
    %v1125 = vunpack.c.l.b16 %v965
    %v1126 = vunpack.c.l.b16 %v966
    %v1127 = vunpack.c.l.b16 %v967
    %v1128 = vunpack.c.l.b16 %v968
    %v1129 = vunpack.c.l.b16 %v969
    %v1130 = vunpack.c.l.b16 %v970
    %v1131 = vunpack.c.l.b16 %v971
    %v1132 = vunpack.c.l.b16 %v972
    %v1133 = vunpack.c.l.b16 %v973
    %v1134 = vunpack.c.l.b16 %v974
    %v1135 = vunpack.c.l.b16 %v975
    %v1136 = vunpack.c.l.b16 %v976
    %v1137 = vunpack.c.l.b16 %v977
    %v1138 = vunpack.c.l.b16 %v978
    %v1139 = vunpack.c.l.b16 %v979
    %v1140 = vunpack.c.l.b16 %v980
    %v1141 = vunpack.c.l.b16 %v981
    %v1142 = vunpack.c.l.b16 %v982
    %v1143 = vunpack.c.l.b16 %v983
    %v1144 = vunpack.c.l.b16 %v984
    %v1145 = vunpack.c.l.b16 %v985
    %v1146 = vunpack.c.l.b16 %v986
    %v1147 = vunpack.c.l.b16 %v987
    %v1148 = vunpack.c.l.b16 %v988
    %v1149 = vunpack.c.l.b16 %v989
    %v1150 = vunpack.c.l.b16 %v990
    %v1151 = vunpack.c.l.b16 %v991
    %v1152 = vunpack.c.l.b16 %v992
    %v1153 = vunpack.c.l.b16 %v993
    %v1154 = vunpack.c.l.b16 %v994
    %v1155 = vunpack.c.l.b16 %v995
    %v1156 = vunpack.c.l.b16 %v996
    %v1157 = vunpack.c.l.b16 %v997
    %v1158 = vunpack.c.l.b16 %v998
    %v1159 = vunpack.c.l.b16 %v999
    %v1160 = vunpack.c.l.b16 %v1000
    %v1161 = vunpack.c.l.b16 %v1001
    %v1162 = vunpack.c.l.b16 %v1002
    %v1163 = vunpack.c.l.b16 %v1003
    %v1164 = vunpack.c.l.b16 %v1004
    %v1165 = vunpack.c.l.b16 %v1005
    %v1166 = vunpack.c.l.b16 %v1006
    %v1167 = vunpack.c.l.b16 %v1007
    %v1168 = vunpack.c.l.b16 %v1008
    %v1169 = vunpack.c.l.b16 %v1009
    %v1170 = vunpack.c.l.b16 %v1010
    %v1171 = vunpack.c.l.b16 %v1011
    %v1172 = vunpack.c.l.b16 %v1012
    %v1173 = vunpack.c.l.b16 %v1013
    %v1174 = vunpack.c.l.b16 %v1014
    %v1175 = vunpack.c.l.b16 %v1015
    %v1176 = vunpack.c.l.b16 %v1016
    %v1177 = vunpack.c.l.b16 %v1017
    %v1178 = vunpack.c.l.b16 %v1018
    %v1179 = vpack.c.b16 %v1100, %v1099
    %v1180 = vpack.c.b16 %v1102, %v1101
    %v1181 = vpack.c.b16 %v1104, %v1103
    %v1182 = vpack.c.b16 %v1106, %v1105
    %v1183 = vpack.c.b16 %v1108, %v1107
    %v1184 = vpack.c.b16 %v1110, %v1109
    %v1185 = vpack.c.b16 %v1112, %v1111
    %v1186 = vpack.c.b16 %v1114, %v1113
    %v1187 = vpack.c.b16 %v1116, %v1115
    %v1188 = vpack.c.b16 %v1118, %v1117
    %v1189 = vpack.c.b16 %v1120, %v1119
    %v1190 = vpack.c.b16 %v1122, %v1121
    %v1191 = vpack.c.b16 %v1124, %v1123
    %v1192 = vpack.c.b16 %v1126, %v1125
    %v1193 = vpack.c.b16 %v1128, %v1127
    %v1194 = vpack.c.b16 %v1130, %v1129
    %v1195 = vpack.c.b16 %v1132, %v1131
    %v1196 = vpack.c.b16 %v1134, %v1133
    %v1197 = vpack.c.b16 %v1136, %v1135
    %v1198 = vpack.c.b16 %v1138, %v1137
    %v1199 = vpack.c.b16 %v1140, %v1139
    %v1200 = vpack.c.b16 %v1142, %v1141
    %v1201 = vpack.c.b16 %v1144, %v1143
    %v1202 = vpack.c.b16 %v1146, %v1145
    %v1203 = vpack.c.b16 %v1148, %v1147
    %v1204 = vpack.c.b16 %v1150, %v1149
    %v1205 = vpack.c.b16 %v1152, %v1151
    %v1206 = vpack.c.b16 %v1154, %v1153
    %v1207 = vpack.c.b16 %v1156, %v1155
    %v1208 = vpack.c.b16 %v1158, %v1157
    %v1209 = vpack.c.b16 %v1160, %v1159
    %v1210 = vpack.c.b16 %v1162, %v1161
    %v1211 = vpack.c.b16 %v1164, %v1163
    %v1212 = vpack.c.b16 %v1166, %v1165
    %v1213 = vpack.c.b16 %v1168, %v1167
    %v1214 = vpack.c.b16 %v1170, %v1169
    %v1215 = vpack.c.b16 %v1172, %v1171
    %v1216 = vpack.c.b16 %v1174, %v1173
    %v1217 = vpack.c.b16 %v1176, %v1175
    %v1218 = vpack.c.b16 %v1178, %v1177
    %1259 = vmatpush.bf16.msra.mxu0 %v1186
    %1260 = vmatpush.bf16.msra.mxu0 %v1185
    %1261 = vmatpush.bf16.msra.mxu0 %v1184
    %1262 = vmatpush.bf16.msra.mxu0 %v1183
    %1263 = vmatpush.bf16.msra.mxu0 %v1182
    %1264 = vmatpush.bf16.msra.mxu0 %v1181
    %1265 = vmatpush.bf16.msra.mxu0 %v1180
    %1266 = vmatpush.bf16.msra.mxu0 %v1179
    %1267 = vmatmul.bf16.gmra.mxu0 %v141
    %v1268 = vpop.f32.mrf.mxu0
    %v1269 = vadd.f32 0.0, %v1268
    %v1270 = vpop.f32.mrf.mxu0
    %v1271 = vadd.f32 0.0, %v1270
    %1272 = vdwg.mxu0
    %1273 = vmatpush.bf16.msra.mxu0 %v1194
    %1274 = vmatpush.bf16.msra.mxu0 %v1193
    %1275 = vmatpush.bf16.msra.mxu0 %v1192
    %1276 = vmatpush.bf16.msra.mxu0 %v1191
    %1277 = vmatpush.bf16.msra.mxu0 %v1190
    %1278 = vmatpush.bf16.msra.mxu0 %v1189
    %1279 = vmatpush.bf16.msra.mxu0 %v1188
    %1280 = vmatpush.bf16.msra.mxu0 %v1187
    %1281 = vmatmul.bf16.gmra.mxu0 %v142
    %v1282 = vpop.f32.mrf.mxu0
    %v1283 = vadd.f32 %v1269, %v1282
    %v1284 = vpop.f32.mrf.mxu0
    %v1285 = vadd.f32 %v1271, %v1284
    %1286 = vdwg.mxu0
    %1287 = vmatpush.bf16.msra.mxu0 %v1202
    %1288 = vmatpush.bf16.msra.mxu0 %v1201
    %1289 = vmatpush.bf16.msra.mxu0 %v1200
    %1290 = vmatpush.bf16.msra.mxu0 %v1199
    %1291 = vmatpush.bf16.msra.mxu0 %v1198
    %1292 = vmatpush.bf16.msra.mxu0 %v1197
    %1293 = vmatpush.bf16.msra.mxu0 %v1196
    %1294 = vmatpush.bf16.msra.mxu0 %v1195
    %1295 = vmatmul.bf16.gmra.mxu0 %v143
    %v1296 = vpop.f32.mrf.mxu0
    %v1297 = vadd.f32 %v1283, %v1296
    %v1298 = vpop.f32.mrf.mxu0
    %v1299 = vadd.f32 %v1285, %v1298
    %1300 = vdwg.mxu0
    %1301 = vmatpush.bf16.msra.mxu0 %v1210
    %1302 = vmatpush.bf16.msra.mxu0 %v1209
    %1303 = vmatpush.bf16.msra.mxu0 %v1208
    %1304 = vmatpush.bf16.msra.mxu0 %v1207
    %1305 = vmatpush.bf16.msra.mxu0 %v1206
    %1306 = vmatpush.bf16.msra.mxu0 %v1205
    %1307 = vmatpush.bf16.msra.mxu0 %v1204
    %1308 = vmatpush.bf16.msra.mxu0 %v1203
    %1309 = vmatmul.bf16.gmra.mxu0 %v144
    %v1310 = vpop.f32.mrf.mxu0
    %v1311 = vadd.f32 %v1297, %v1310
    %v1312 = vpop.f32.mrf.mxu0
    %v1313 = vadd.f32 %v1299, %v1312
    %1314 = vdwg.mxu0
    %1315 = vmatpush.bf16.msra.mxu0 %v1218
    %1316 = vmatpush.bf16.msra.mxu0 %v1217
    %1317 = vmatpush.bf16.msra.mxu0 %v1216
    %1318 = vmatpush.bf16.msra.mxu0 %v1215
    %1319 = vmatpush.bf16.msra.mxu0 %v1214
    %1320 = vmatpush.bf16.msra.mxu0 %v1213
    %1321 = vmatpush.bf16.msra.mxu0 %v1212
    %1322 = vmatpush.bf16.msra.mxu0 %v1211
    %1323 = vmatmul.bf16.gmra.mxu0 %v145
    %v1324 = vpop.f32.mrf.mxu0
    %v1325 = vadd.f32 %v1311, %v1324
    %v1326 = vpop.f32.mrf.mxu0
    %v1327 = vadd.f32 %v1313, %v1326
    %1328 = vdwg.mxu0
    %v1329 = vpack.c.bf16 %v1325, %v1325
    %v1330 = vpack.c.bf16 %v1327, %v1327
    %s1331 = scalar_lea.vmem [#allocation5], 8
    %1332 = vst [vmem:[%s1331] sm:$0xf] %v1329
    %1333 = vst [vmem:[%s1331 + $0x4] sm:$0xf] %v1330
    %s1334 = scalar_lea.vmem %s2, 320
    %v1335 = vld [vmem:[%s1334] sm:$0xf]
    %v1336 = vld [vmem:[%s1334 + $0x4] sm:$0xf]
    %v1337 = vld [vmem:[%s1334 + $0x8] sm:$0xf]
    %v1338 = vld [vmem:[%s1334 + $0xc] sm:$0xf]
    %v1339 = vld [vmem:[%s1334 + $0x10] sm:$0xf]
    %v1340 = vld [vmem:[%s1334 + $0x14] sm:$0xf]
    %v1341 = vld [vmem:[%s1334 + $0x18] sm:$0xf]
    %v1342 = vld [vmem:[%s1334 + $0x1c] sm:$0xf]
    %v1343 = vld [vmem:[%s1334 + $0x20] sm:$0xf]
    %v1344 = vld [vmem:[%s1334 + $0x24] sm:$0xf]
    %v1345 = vld [vmem:[%s1334 + $0x28] sm:$0xf]
    %v1346 = vld [vmem:[%s1334 + $0x2c] sm:$0xf]
    %v1347 = vld [vmem:[%s1334 + $0x30] sm:$0xf]
    %v1348 = vld [vmem:[%s1334 + $0x34] sm:$0xf]
    %v1349 = vld [vmem:[%s1334 + $0x38] sm:$0xf]
    %v1350 = vld [vmem:[%s1334 + $0x3c] sm:$0xf]
    %v1351 = vld [vmem:[%s1334 + $0x40] sm:$0xf]
    %v1352 = vld [vmem:[%s1334 + $0x44] sm:$0xf]
    %v1353 = vld [vmem:[%s1334 + $0x48] sm:$0xf]
    %v1354 = vld [vmem:[%s1334 + $0x4c] sm:$0xf]
    %v1355 = vld [vmem:[%s1334 + $0x50] sm:$0xf]
    %v1356 = vld [vmem:[%s1334 + $0x54] sm:$0xf]
    %v1357 = vld [vmem:[%s1334 + $0x58] sm:$0xf]
    %v1358 = vld [vmem:[%s1334 + $0x5c] sm:$0xf]
    %v1359 = vld [vmem:[%s1334 + $0x60] sm:$0xf]
    %v1360 = vld [vmem:[%s1334 + $0x64] sm:$0xf]
    %v1361 = vld [vmem:[%s1334 + $0x68] sm:$0xf]
    %v1362 = vld [vmem:[%s1334 + $0x6c] sm:$0xf]
    %v1363 = vld [vmem:[%s1334 + $0x70] sm:$0xf]
    %v1364 = vld [vmem:[%s1334 + $0x74] sm:$0xf]
    %v1365 = vld [vmem:[%s1334 + $0x78] sm:$0xf]
    %v1366 = vld [vmem:[%s1334 + $0x7c] sm:$0xf]
    %v1367 = vld [vmem:[%s1334 + $0x80] sm:$0xf]
    %v1368 = vld [vmem:[%s1334 + $0x84] sm:$0xf]
    %v1369 = vld [vmem:[%s1334 + $0x88] sm:$0xf]
    %v1370 = vld [vmem:[%s1334 + $0x8c] sm:$0xf]
    %v1371 = vld [vmem:[%s1334 + $0x90] sm:$0xf]
    %v1372 = vld [vmem:[%s1334 + $0x94] sm:$0xf]
    %v1373 = vld [vmem:[%s1334 + $0x98] sm:$0xf]
    %v1374 = vld [vmem:[%s1334 + $0x9c] sm:$0xf]
    %v1375 = vld [vmem:[%s1334 + $0xa0] sm:$0xf]
    %v1376 = vld [vmem:[%s1334 + $0xa4] sm:$0xf]
    %v1377 = vld [vmem:[%s1334 + $0xa8] sm:$0xf]
    %v1378 = vld [vmem:[%s1334 + $0xac] sm:$0xf]
    %v1379 = vld [vmem:[%s1334 + $0xb0] sm:$0xf]
    %v1380 = vld [vmem:[%s1334 + $0xb4] sm:$0xf]
    %v1381 = vld [vmem:[%s1334 + $0xb8] sm:$0xf]
    %v1382 = vld [vmem:[%s1334 + $0xbc] sm:$0xf]
    %v1383 = vld [vmem:[%s1334 + $0xc0] sm:$0xf]
    %v1384 = vld [vmem:[%s1334 + $0xc4] sm:$0xf]
    %v1385 = vld [vmem:[%s1334 + $0xc8] sm:$0xf]
    %v1386 = vld [vmem:[%s1334 + $0xcc] sm:$0xf]
    %v1387 = vld [vmem:[%s1334 + $0xd0] sm:$0xf]
    %v1388 = vld [vmem:[%s1334 + $0xd4] sm:$0xf]
    %v1389 = vld [vmem:[%s1334 + $0xd8] sm:$0xf]
    %v1390 = vld [vmem:[%s1334 + $0xdc] sm:$0xf]
    %v1391 = vld [vmem:[%s1334 + $0xe0] sm:$0xf]
    %v1392 = vld [vmem:[%s1334 + $0xe4] sm:$0xf]
    %v1393 = vld [vmem:[%s1334 + $0xe8] sm:$0xf]
    %v1394 = vld [vmem:[%s1334 + $0xec] sm:$0xf]
    %v1395 = vld [vmem:[%s1334 + $0xf0] sm:$0xf]
    %v1396 = vld [vmem:[%s1334 + $0xf4] sm:$0xf]
    %v1397 = vld [vmem:[%s1334 + $0xf8] sm:$0xf]
    %v1398 = vld [vmem:[%s1334 + $0xfc] sm:$0xf]
    %v1399 = vld [vmem:[%s1334 + $0x100] sm:$0xf]
    %v1400 = vld [vmem:[%s1334 + $0x104] sm:$0xf]
    %v1401 = vld [vmem:[%s1334 + $0x108] sm:$0xf]
    %v1402 = vld [vmem:[%s1334 + $0x10c] sm:$0xf]
    %v1403 = vld [vmem:[%s1334 + $0x110] sm:$0xf]
    %v1404 = vld [vmem:[%s1334 + $0x114] sm:$0xf]
    %v1405 = vld [vmem:[%s1334 + $0x118] sm:$0xf]
    %v1406 = vld [vmem:[%s1334 + $0x11c] sm:$0xf]
    %v1407 = vld [vmem:[%s1334 + $0x120] sm:$0xf]
    %v1408 = vld [vmem:[%s1334 + $0x124] sm:$0xf]
    %v1409 = vld [vmem:[%s1334 + $0x128] sm:$0xf]
    %v1410 = vld [vmem:[%s1334 + $0x12c] sm:$0xf]
    %v1411 = vld [vmem:[%s1334 + $0x130] sm:$0xf]
    %v1412 = vld [vmem:[%s1334 + $0x134] sm:$0xf]
    %v1413 = vld [vmem:[%s1334 + $0x138] sm:$0xf]
    %v1414 = vld [vmem:[%s1334 + $0x13c] sm:$0xf]
    %v1495 = vunpack.c.l.b16 %v1335
    %v1496 = vunpack.c.l.b16 %v1336
    %v1497 = vunpack.c.l.b16 %v1337
    %v1498 = vunpack.c.l.b16 %v1338
    %v1499 = vunpack.c.l.b16 %v1339
    %v1500 = vunpack.c.l.b16 %v1340
    %v1501 = vunpack.c.l.b16 %v1341
    %v1502 = vunpack.c.l.b16 %v1342
    %v1503 = vunpack.c.l.b16 %v1343
    %v1504 = vunpack.c.l.b16 %v1344
    %v1505 = vunpack.c.l.b16 %v1345
    %v1506 = vunpack.c.l.b16 %v1346
    %v1507 = vunpack.c.l.b16 %v1347
    %v1508 = vunpack.c.l.b16 %v1348
    %v1509 = vunpack.c.l.b16 %v1349
    %v1510 = vunpack.c.l.b16 %v1350
    %v1511 = vunpack.c.l.b16 %v1351
    %v1512 = vunpack.c.l.b16 %v1352
    %v1513 = vunpack.c.l.b16 %v1353
    %v1514 = vunpack.c.l.b16 %v1354
    %v1515 = vunpack.c.l.b16 %v1355
    %v1516 = vunpack.c.l.b16 %v1356
    %v1517 = vunpack.c.l.b16 %v1357
    %v1518 = vunpack.c.l.b16 %v1358
    %v1519 = vunpack.c.l.b16 %v1359
    %v1520 = vunpack.c.l.b16 %v1360
    %v1521 = vunpack.c.l.b16 %v1361
    %v1522 = vunpack.c.l.b16 %v1362
    %v1523 = vunpack.c.l.b16 %v1363
    %v1524 = vunpack.c.l.b16 %v1364
    %v1525 = vunpack.c.l.b16 %v1365
    %v1526 = vunpack.c.l.b16 %v1366
    %v1527 = vunpack.c.l.b16 %v1367
    %v1528 = vunpack.c.l.b16 %v1368
    %v1529 = vunpack.c.l.b16 %v1369
    %v1530 = vunpack.c.l.b16 %v1370
    %v1531 = vunpack.c.l.b16 %v1371
    %v1532 = vunpack.c.l.b16 %v1372
    %v1533 = vunpack.c.l.b16 %v1373
    %v1534 = vunpack.c.l.b16 %v1374
    %v1535 = vunpack.c.l.b16 %v1375
    %v1536 = vunpack.c.l.b16 %v1376
    %v1537 = vunpack.c.l.b16 %v1377
    %v1538 = vunpack.c.l.b16 %v1378
    %v1539 = vunpack.c.l.b16 %v1379
    %v1540 = vunpack.c.l.b16 %v1380
    %v1541 = vunpack.c.l.b16 %v1381
    %v1542 = vunpack.c.l.b16 %v1382
    %v1543 = vunpack.c.l.b16 %v1383
    %v1544 = vunpack.c.l.b16 %v1384
    %v1545 = vunpack.c.l.b16 %v1385
    %v1546 = vunpack.c.l.b16 %v1386
    %v1547 = vunpack.c.l.b16 %v1387
    %v1548 = vunpack.c.l.b16 %v1388
    %v1549 = vunpack.c.l.b16 %v1389
    %v1550 = vunpack.c.l.b16 %v1390
    %v1551 = vunpack.c.l.b16 %v1391
    %v1552 = vunpack.c.l.b16 %v1392
    %v1553 = vunpack.c.l.b16 %v1393
    %v1554 = vunpack.c.l.b16 %v1394
    %v1555 = vunpack.c.l.b16 %v1395
    %v1556 = vunpack.c.l.b16 %v1396
    %v1557 = vunpack.c.l.b16 %v1397
    %v1558 = vunpack.c.l.b16 %v1398
    %v1559 = vunpack.c.l.b16 %v1399
    %v1560 = vunpack.c.l.b16 %v1400
    %v1561 = vunpack.c.l.b16 %v1401
    %v1562 = vunpack.c.l.b16 %v1402
    %v1563 = vunpack.c.l.b16 %v1403
    %v1564 = vunpack.c.l.b16 %v1404
    %v1565 = vunpack.c.l.b16 %v1405
    %v1566 = vunpack.c.l.b16 %v1406
    %v1567 = vunpack.c.l.b16 %v1407
    %v1568 = vunpack.c.l.b16 %v1408
    %v1569 = vunpack.c.l.b16 %v1409
    %v1570 = vunpack.c.l.b16 %v1410
    %v1571 = vunpack.c.l.b16 %v1411
    %v1572 = vunpack.c.l.b16 %v1412
    %v1573 = vunpack.c.l.b16 %v1413
    %v1574 = vunpack.c.l.b16 %v1414
    %v1575 = vpack.c.b16 %v1496, %v1495
    %v1576 = vpack.c.b16 %v1498, %v1497
    %v1577 = vpack.c.b16 %v1500, %v1499
    %v1578 = vpack.c.b16 %v1502, %v1501
    %v1579 = vpack.c.b16 %v1504, %v1503
    %v1580 = vpack.c.b16 %v1506, %v1505
    %v1581 = vpack.c.b16 %v1508, %v1507
    %v1582 = vpack.c.b16 %v1510, %v1509
    %v1583 = vpack.c.b16 %v1512, %v1511
    %v1584 = vpack.c.b16 %v1514, %v1513
    %v1585 = vpack.c.b16 %v1516, %v1515
    %v1586 = vpack.c.b16 %v1518, %v1517
    %v1587 = vpack.c.b16 %v1520, %v1519
    %v1588 = vpack.c.b16 %v1522, %v1521
    %v1589 = vpack.c.b16 %v1524, %v1523
    %v1590 = vpack.c.b16 %v1526, %v1525
    %v1591 = vpack.c.b16 %v1528, %v1527
    %v1592 = vpack.c.b16 %v1530, %v1529
    %v1593 = vpack.c.b16 %v1532, %v1531
    %v1594 = vpack.c.b16 %v1534, %v1533
    %v1595 = vpack.c.b16 %v1536, %v1535
    %v1596 = vpack.c.b16 %v1538, %v1537
    %v1597 = vpack.c.b16 %v1540, %v1539
    %v1598 = vpack.c.b16 %v1542, %v1541
    %v1599 = vpack.c.b16 %v1544, %v1543
    %v1600 = vpack.c.b16 %v1546, %v1545
    %v1601 = vpack.c.b16 %v1548, %v1547
    %v1602 = vpack.c.b16 %v1550, %v1549
    %v1603 = vpack.c.b16 %v1552, %v1551
    %v1604 = vpack.c.b16 %v1554, %v1553
    %v1605 = vpack.c.b16 %v1556, %v1555
    %v1606 = vpack.c.b16 %v1558, %v1557
    %v1607 = vpack.c.b16 %v1560, %v1559
    %v1608 = vpack.c.b16 %v1562, %v1561
    %v1609 = vpack.c.b16 %v1564, %v1563
    %v1610 = vpack.c.b16 %v1566, %v1565
    %v1611 = vpack.c.b16 %v1568, %v1567
    %v1612 = vpack.c.b16 %v1570, %v1569
    %v1613 = vpack.c.b16 %v1572, %v1571
    %v1614 = vpack.c.b16 %v1574, %v1573
    %1655 = vmatpush.bf16.msra.mxu0 %v1582
    %1656 = vmatpush.bf16.msra.mxu0 %v1581
    %1657 = vmatpush.bf16.msra.mxu0 %v1580
    %1658 = vmatpush.bf16.msra.mxu0 %v1579
    %1659 = vmatpush.bf16.msra.mxu0 %v1578
    %1660 = vmatpush.bf16.msra.mxu0 %v1577
    %1661 = vmatpush.bf16.msra.mxu0 %v1576
    %1662 = vmatpush.bf16.msra.mxu0 %v1575
    %1663 = vmatmul.bf16.gmra.mxu0 %v141
    %v1664 = vpop.f32.mrf.mxu0
    %v1665 = vadd.f32 0.0, %v1664
    %v1666 = vpop.f32.mrf.mxu0
    %v1667 = vadd.f32 0.0, %v1666
    %1668 = vdwg.mxu0
    %1669 = vmatpush.bf16.msra.mxu0 %v1590
    %1670 = vmatpush.bf16.msra.mxu0 %v1589
    %1671 = vmatpush.bf16.msra.mxu0 %v1588
    %1672 = vmatpush.bf16.msra.mxu0 %v1587
    %1673 = vmatpush.bf16.msra.mxu0 %v1586
    %1674 = vmatpush.bf16.msra.mxu0 %v1585
    %1675 = vmatpush.bf16.msra.mxu0 %v1584
    %1676 = vmatpush.bf16.msra.mxu0 %v1583
    %1677 = vmatmul.bf16.gmra.mxu0 %v142
    %v1678 = vpop.f32.mrf.mxu0
    %v1679 = vadd.f32 %v1665, %v1678
    %v1680 = vpop.f32.mrf.mxu0
    %v1681 = vadd.f32 %v1667, %v1680
    %1682 = vdwg.mxu0
    %1683 = vmatpush.bf16.msra.mxu0 %v1598
    %1684 = vmatpush.bf16.msra.mxu0 %v1597
    %1685 = vmatpush.bf16.msra.mxu0 %v1596
    %1686 = vmatpush.bf16.msra.mxu0 %v1595
    %1687 = vmatpush.bf16.msra.mxu0 %v1594
    %1688 = vmatpush.bf16.msra.mxu0 %v1593
    %1689 = vmatpush.bf16.msra.mxu0 %v1592
    %1690 = vmatpush.bf16.msra.mxu0 %v1591
    %1691 = vmatmul.bf16.gmra.mxu0 %v143
    %v1692 = vpop.f32.mrf.mxu0
    %v1693 = vadd.f32 %v1679, %v1692
    %v1694 = vpop.f32.mrf.mxu0
    %v1695 = vadd.f32 %v1681, %v1694
    %1696 = vdwg.mxu0
    %1697 = vmatpush.bf16.msra.mxu0 %v1606
    %1698 = vmatpush.bf16.msra.mxu0 %v1605
    %1699 = vmatpush.bf16.msra.mxu0 %v1604
    %1700 = vmatpush.bf16.msra.mxu0 %v1603
    %1701 = vmatpush.bf16.msra.mxu0 %v1602
    %1702 = vmatpush.bf16.msra.mxu0 %v1601
    %1703 = vmatpush.bf16.msra.mxu0 %v1600
    %1704 = vmatpush.bf16.msra.mxu0 %v1599
    %1705 = vmatmul.bf16.gmra.mxu0 %v144
    %v1706 = vpop.f32.mrf.mxu0
    %v1707 = vadd.f32 %v1693, %v1706
    %v1708 = vpop.f32.mrf.mxu0
    %v1709 = vadd.f32 %v1695, %v1708
    %1710 = vdwg.mxu0
    %1711 = vmatpush.bf16.msra.mxu0 %v1614
    %1712 = vmatpush.bf16.msra.mxu0 %v1613
    %1713 = vmatpush.bf16.msra.mxu0 %v1612
    %1714 = vmatpush.bf16.msra.mxu0 %v1611
    %1715 = vmatpush.bf16.msra.mxu0 %v1610
    %1716 = vmatpush.bf16.msra.mxu0 %v1609
    %1717 = vmatpush.bf16.msra.mxu0 %v1608
    %1718 = vmatpush.bf16.msra.mxu0 %v1607
    %1719 = vmatmul.bf16.gmra.mxu0 %v145
    %v1720 = vpop.f32.mrf.mxu0
    %v1721 = vadd.f32 %v1707, %v1720
    %v1722 = vpop.f32.mrf.mxu0
    %v1723 = vadd.f32 %v1709, %v1722
    %1724 = vdwg.mxu0
    %s1725 = scalar_lea.vmem %s5, 16
    %1726 = vst.msk [vmem:[%s1725] sm:$0xff] %vm855, %v1721
    %1727 = vst.msk [vmem:[%s1725 + $0x8] sm:$0xff] %vm855, %v1723
    %s1728 = scalar_lea.vmem %s3, 5
    %v1729 = vld [vmem:[%s1728] sm:$0x1f]
    %1731 = vst [vmem:[#allocation1] ss:$9 sm:$0xff] %v1729
    %v1732 = vld [vmem:[#allocation1] sm:$0xff]
    %v1733 = vld [vmem:[#allocation1 + $0x9] sm:$0xff]
    %v1734 = vld [vmem:[#allocation1 + $0x12] sm:$0xff]
    %v1735 = vld [vmem:[#allocation1 + $0x1b] sm:$0xff]
    %v1736 = vld [vmem:[#allocation1 + $0x24] sm:$0xff]
    %1742 = vmatpush.bf16.xpose.msra.mxu0 0
    %1743 = vmatpush.bf16.xpose.msra.mxu0 0
    %1744 = vmatpush.bf16.xpose.msra.mxu0 0
    %1745 = vmatpush.bf16.xpose.msra.mxu0 0
    %1746 = vmatpush.bf16.xpose.msra.mxu0 0
    %1747 = vmatpush.bf16.xpose.msra.mxu0 0
    %1748 = vmatpush.bf16.xpose.msra.mxu0 0
    %1749 = vmatpush.bf16.xpose.msra.mxu0 %v141
    %1750 = vmatmul.bf16.gmra.mxu0 %v1732
    %v1751 = vpop.f32.mrf.mxu0
    %v1752 = vadd.f32 0.0, %v1751
    %v1753 = vpop.f32.mrf.mxu0
    %1754 = vdwg.mxu0
    %1755 = vmatpush.bf16.xpose.msra.mxu0 0
    %1756 = vmatpush.bf16.xpose.msra.mxu0 0
    %1757 = vmatpush.bf16.xpose.msra.mxu0 0
    %1758 = vmatpush.bf16.xpose.msra.mxu0 0
    %1759 = vmatpush.bf16.xpose.msra.mxu0 0
    %1760 = vmatpush.bf16.xpose.msra.mxu0 0
    %1761 = vmatpush.bf16.xpose.msra.mxu0 0
    %1762 = vmatpush.bf16.xpose.msra.mxu0 %v142
    %1763 = vmatmul.bf16.gmra.mxu0 %v1733
    %v1764 = vpop.f32.mrf.mxu0
    %v1765 = vadd.f32 %v1752, %v1764
    %v1766 = vpop.f32.mrf.mxu0
    %1767 = vdwg.mxu0
    %1768 = vmatpush.bf16.xpose.msra.mxu0 0
    %1769 = vmatpush.bf16.xpose.msra.mxu0 0
    %1770 = vmatpush.bf16.xpose.msra.mxu0 0
    %1771 = vmatpush.bf16.xpose.msra.mxu0 0
    %1772 = vmatpush.bf16.xpose.msra.mxu0 0
    %1773 = vmatpush.bf16.xpose.msra.mxu0 0
    %1774 = vmatpush.bf16.xpose.msra.mxu0 0
    %1775 = vmatpush.bf16.xpose.msra.mxu0 %v143
    %1776 = vmatmul.bf16.gmra.mxu0 %v1734
    %v1777 = vpop.f32.mrf.mxu0
    %v1778 = vadd.f32 %v1765, %v1777
    %v1779 = vpop.f32.mrf.mxu0
    %1780 = vdwg.mxu0
    %1781 = vmatpush.bf16.xpose.msra.mxu0 0
    %1782 = vmatpush.bf16.xpose.msra.mxu0 0
    %1783 = vmatpush.bf16.xpose.msra.mxu0 0
    %1784 = vmatpush.bf16.xpose.msra.mxu0 0
    %1785 = vmatpush.bf16.xpose.msra.mxu0 0
    %1786 = vmatpush.bf16.xpose.msra.mxu0 0
    %1787 = vmatpush.bf16.xpose.msra.mxu0 0
    %1788 = vmatpush.bf16.xpose.msra.mxu0 %v144
    %1789 = vmatmul.bf16.gmra.mxu0 %v1735
    %v1790 = vpop.f32.mrf.mxu0
    %v1791 = vadd.f32 %v1778, %v1790
    %v1792 = vpop.f32.mrf.mxu0
    %1793 = vdwg.mxu0
    %1794 = vmatpush.bf16.xpose.msra.mxu0 0
    %1795 = vmatpush.bf16.xpose.msra.mxu0 0
    %1796 = vmatpush.bf16.xpose.msra.mxu0 0
    %1797 = vmatpush.bf16.xpose.msra.mxu0 0
    %1798 = vmatpush.bf16.xpose.msra.mxu0 0
    %1799 = vmatpush.bf16.xpose.msra.mxu0 0
    %1800 = vmatpush.bf16.xpose.msra.mxu0 0
    %1801 = vmatpush.bf16.xpose.msra.mxu0 %v145
    %1802 = vmatmul.bf16.gmra.mxu0 %v1736
    %v1803 = vpop.f32.mrf.mxu0
    %v1804 = vadd.f32 %v1791, %v1803
    %v1805 = vpop.f32.mrf.mxu0
    %1806 = vdwg.mxu0
    %s1807 = scalar_lea.vmem [#allocation6], 1
    %1808 = vst.msk [vmem:[%s1807] sm:$0x1] %vm936, %v1804
    %s1809 = scalar_lea.vmem %s1, 640
    %v1810 = vld [vmem:[%s1809] sm:$0xf]
    %v1811 = vld [vmem:[%s1809 + $0x4] sm:$0xf]
    %v1812 = vld [vmem:[%s1809 + $0x8] sm:$0xf]
    %v1813 = vld [vmem:[%s1809 + $0xc] sm:$0xf]
    %v1814 = vld [vmem:[%s1809 + $0x10] sm:$0xf]
    %v1815 = vld [vmem:[%s1809 + $0x14] sm:$0xf]
    %v1816 = vld [vmem:[%s1809 + $0x18] sm:$0xf]
    %v1817 = vld [vmem:[%s1809 + $0x1c] sm:$0xf]
    %v1818 = vld [vmem:[%s1809 + $0x20] sm:$0xf]
    %v1819 = vld [vmem:[%s1809 + $0x24] sm:$0xf]
    %v1820 = vld [vmem:[%s1809 + $0x28] sm:$0xf]
    %v1821 = vld [vmem:[%s1809 + $0x2c] sm:$0xf]
    %v1822 = vld [vmem:[%s1809 + $0x30] sm:$0xf]
    %v1823 = vld [vmem:[%s1809 + $0x34] sm:$0xf]
    %v1824 = vld [vmem:[%s1809 + $0x38] sm:$0xf]
    %v1825 = vld [vmem:[%s1809 + $0x3c] sm:$0xf]
    %v1826 = vld [vmem:[%s1809 + $0x40] sm:$0xf]
    %v1827 = vld [vmem:[%s1809 + $0x44] sm:$0xf]
    %v1828 = vld [vmem:[%s1809 + $0x48] sm:$0xf]
    %v1829 = vld [vmem:[%s1809 + $0x4c] sm:$0xf]
    %v1830 = vld [vmem:[%s1809 + $0x50] sm:$0xf]
    %v1831 = vld [vmem:[%s1809 + $0x54] sm:$0xf]
    %v1832 = vld [vmem:[%s1809 + $0x58] sm:$0xf]
    %v1833 = vld [vmem:[%s1809 + $0x5c] sm:$0xf]
    %v1834 = vld [vmem:[%s1809 + $0x60] sm:$0xf]
    %v1835 = vld [vmem:[%s1809 + $0x64] sm:$0xf]
    %v1836 = vld [vmem:[%s1809 + $0x68] sm:$0xf]
    %v1837 = vld [vmem:[%s1809 + $0x6c] sm:$0xf]
    %v1838 = vld [vmem:[%s1809 + $0x70] sm:$0xf]
    %v1839 = vld [vmem:[%s1809 + $0x74] sm:$0xf]
    %v1840 = vld [vmem:[%s1809 + $0x78] sm:$0xf]
    %v1841 = vld [vmem:[%s1809 + $0x7c] sm:$0xf]
    %v1842 = vld [vmem:[%s1809 + $0x80] sm:$0xf]
    %v1843 = vld [vmem:[%s1809 + $0x84] sm:$0xf]
    %v1844 = vld [vmem:[%s1809 + $0x88] sm:$0xf]
    %v1845 = vld [vmem:[%s1809 + $0x8c] sm:$0xf]
    %v1846 = vld [vmem:[%s1809 + $0x90] sm:$0xf]
    %v1847 = vld [vmem:[%s1809 + $0x94] sm:$0xf]
    %v1848 = vld [vmem:[%s1809 + $0x98] sm:$0xf]
    %v1849 = vld [vmem:[%s1809 + $0x9c] sm:$0xf]
    %v1850 = vld [vmem:[%s1809 + $0xa0] sm:$0xf]
    %v1851 = vld [vmem:[%s1809 + $0xa4] sm:$0xf]
    %v1852 = vld [vmem:[%s1809 + $0xa8] sm:$0xf]
    %v1853 = vld [vmem:[%s1809 + $0xac] sm:$0xf]
    %v1854 = vld [vmem:[%s1809 + $0xb0] sm:$0xf]
    %v1855 = vld [vmem:[%s1809 + $0xb4] sm:$0xf]
    %v1856 = vld [vmem:[%s1809 + $0xb8] sm:$0xf]
    %v1857 = vld [vmem:[%s1809 + $0xbc] sm:$0xf]
    %v1858 = vld [vmem:[%s1809 + $0xc0] sm:$0xf]
    %v1859 = vld [vmem:[%s1809 + $0xc4] sm:$0xf]
    %v1860 = vld [vmem:[%s1809 + $0xc8] sm:$0xf]
    %v1861 = vld [vmem:[%s1809 + $0xcc] sm:$0xf]
    %v1862 = vld [vmem:[%s1809 + $0xd0] sm:$0xf]
    %v1863 = vld [vmem:[%s1809 + $0xd4] sm:$0xf]
    %v1864 = vld [vmem:[%s1809 + $0xd8] sm:$0xf]
    %v1865 = vld [vmem:[%s1809 + $0xdc] sm:$0xf]
    %v1866 = vld [vmem:[%s1809 + $0xe0] sm:$0xf]
    %v1867 = vld [vmem:[%s1809 + $0xe4] sm:$0xf]
    %v1868 = vld [vmem:[%s1809 + $0xe8] sm:$0xf]
    %v1869 = vld [vmem:[%s1809 + $0xec] sm:$0xf]
    %v1870 = vld [vmem:[%s1809 + $0xf0] sm:$0xf]
    %v1871 = vld [vmem:[%s1809 + $0xf4] sm:$0xf]
    %v1872 = vld [vmem:[%s1809 + $0xf8] sm:$0xf]
    %v1873 = vld [vmem:[%s1809 + $0xfc] sm:$0xf]
    %v1874 = vld [vmem:[%s1809 + $0x100] sm:$0xf]
    %v1875 = vld [vmem:[%s1809 + $0x104] sm:$0xf]
    %v1876 = vld [vmem:[%s1809 + $0x108] sm:$0xf]
    %v1877 = vld [vmem:[%s1809 + $0x10c] sm:$0xf]
    %v1878 = vld [vmem:[%s1809 + $0x110] sm:$0xf]
    %v1879 = vld [vmem:[%s1809 + $0x114] sm:$0xf]
    %v1880 = vld [vmem:[%s1809 + $0x118] sm:$0xf]
    %v1881 = vld [vmem:[%s1809 + $0x11c] sm:$0xf]
    %v1882 = vld [vmem:[%s1809 + $0x120] sm:$0xf]
    %v1883 = vld [vmem:[%s1809 + $0x124] sm:$0xf]
    %v1884 = vld [vmem:[%s1809 + $0x128] sm:$0xf]
    %v1885 = vld [vmem:[%s1809 + $0x12c] sm:$0xf]
    %v1886 = vld [vmem:[%s1809 + $0x130] sm:$0xf]
    %v1887 = vld [vmem:[%s1809 + $0x134] sm:$0xf]
    %v1888 = vld [vmem:[%s1809 + $0x138] sm:$0xf]
    %v1889 = vld [vmem:[%s1809 + $0x13c] sm:$0xf]
    %v1970 = vunpack.c.l.b16 %v1810
    %v1971 = vunpack.c.l.b16 %v1811
    %v1972 = vunpack.c.l.b16 %v1812
    %v1973 = vunpack.c.l.b16 %v1813
    %v1974 = vunpack.c.l.b16 %v1814
    %v1975 = vunpack.c.l.b16 %v1815
    %v1976 = vunpack.c.l.b16 %v1816
    %v1977 = vunpack.c.l.b16 %v1817
    %v1978 = vunpack.c.l.b16 %v1818
    %v1979 = vunpack.c.l.b16 %v1819
    %v1980 = vunpack.c.l.b16 %v1820
    %v1981 = vunpack.c.l.b16 %v1821
    %v1982 = vunpack.c.l.b16 %v1822
    %v1983 = vunpack.c.l.b16 %v1823
    %v1984 = vunpack.c.l.b16 %v1824
    %v1985 = vunpack.c.l.b16 %v1825
    %v1986 = vunpack.c.l.b16 %v1826
    %v1987 = vunpack.c.l.b16 %v1827
    %v1988 = vunpack.c.l.b16 %v1828
    %v1989 = vunpack.c.l.b16 %v1829
    %v1990 = vunpack.c.l.b16 %v1830
    %v1991 = vunpack.c.l.b16 %v1831
    %v1992 = vunpack.c.l.b16 %v1832
    %v1993 = vunpack.c.l.b16 %v1833
    %v1994 = vunpack.c.l.b16 %v1834
    %v1995 = vunpack.c.l.b16 %v1835
    %v1996 = vunpack.c.l.b16 %v1836
    %v1997 = vunpack.c.l.b16 %v1837
    %v1998 = vunpack.c.l.b16 %v1838
    %v1999 = vunpack.c.l.b16 %v1839
    %v2000 = vunpack.c.l.b16 %v1840
    %v2001 = vunpack.c.l.b16 %v1841
    %v2002 = vunpack.c.l.b16 %v1842
    %v2003 = vunpack.c.l.b16 %v1843
    %v2004 = vunpack.c.l.b16 %v1844
    %v2005 = vunpack.c.l.b16 %v1845
    %v2006 = vunpack.c.l.b16 %v1846
    %v2007 = vunpack.c.l.b16 %v1847
    %v2008 = vunpack.c.l.b16 %v1848
    %v2009 = vunpack.c.l.b16 %v1849
    %v2010 = vunpack.c.l.b16 %v1850
    %v2011 = vunpack.c.l.b16 %v1851
    %v2012 = vunpack.c.l.b16 %v1852
    %v2013 = vunpack.c.l.b16 %v1853
    %v2014 = vunpack.c.l.b16 %v1854
    %v2015 = vunpack.c.l.b16 %v1855
    %v2016 = vunpack.c.l.b16 %v1856
    %v2017 = vunpack.c.l.b16 %v1857
    %v2018 = vunpack.c.l.b16 %v1858
    %v2019 = vunpack.c.l.b16 %v1859
    %v2020 = vunpack.c.l.b16 %v1860
    %v2021 = vunpack.c.l.b16 %v1861
    %v2022 = vunpack.c.l.b16 %v1862
    %v2023 = vunpack.c.l.b16 %v1863
    %v2024 = vunpack.c.l.b16 %v1864
    %v2025 = vunpack.c.l.b16 %v1865
    %v2026 = vunpack.c.l.b16 %v1866
    %v2027 = vunpack.c.l.b16 %v1867
    %v2028 = vunpack.c.l.b16 %v1868
    %v2029 = vunpack.c.l.b16 %v1869
    %v2030 = vunpack.c.l.b16 %v1870
    %v2031 = vunpack.c.l.b16 %v1871
    %v2032 = vunpack.c.l.b16 %v1872
    %v2033 = vunpack.c.l.b16 %v1873
    %v2034 = vunpack.c.l.b16 %v1874
    %v2035 = vunpack.c.l.b16 %v1875
    %v2036 = vunpack.c.l.b16 %v1876
    %v2037 = vunpack.c.l.b16 %v1877
    %v2038 = vunpack.c.l.b16 %v1878
    %v2039 = vunpack.c.l.b16 %v1879
    %v2040 = vunpack.c.l.b16 %v1880
    %v2041 = vunpack.c.l.b16 %v1881
    %v2042 = vunpack.c.l.b16 %v1882
    %v2043 = vunpack.c.l.b16 %v1883
    %v2044 = vunpack.c.l.b16 %v1884
    %v2045 = vunpack.c.l.b16 %v1885
    %v2046 = vunpack.c.l.b16 %v1886
    %v2047 = vunpack.c.l.b16 %v1887
    %v2048 = vunpack.c.l.b16 %v1888
    %v2049 = vunpack.c.l.b16 %v1889
    %v2050 = vpack.c.b16 %v1971, %v1970
    %v2051 = vpack.c.b16 %v1973, %v1972
    %v2052 = vpack.c.b16 %v1975, %v1974
    %v2053 = vpack.c.b16 %v1977, %v1976
    %v2054 = vpack.c.b16 %v1979, %v1978
    %v2055 = vpack.c.b16 %v1981, %v1980
    %v2056 = vpack.c.b16 %v1983, %v1982
    %v2057 = vpack.c.b16 %v1985, %v1984
    %v2058 = vpack.c.b16 %v1987, %v1986
    %v2059 = vpack.c.b16 %v1989, %v1988
    %v2060 = vpack.c.b16 %v1991, %v1990
    %v2061 = vpack.c.b16 %v1993, %v1992
    %v2062 = vpack.c.b16 %v1995, %v1994
    %v2063 = vpack.c.b16 %v1997, %v1996
    %v2064 = vpack.c.b16 %v1999, %v1998
    %v2065 = vpack.c.b16 %v2001, %v2000
    %v2066 = vpack.c.b16 %v2003, %v2002
    %v2067 = vpack.c.b16 %v2005, %v2004
    %v2068 = vpack.c.b16 %v2007, %v2006
    %v2069 = vpack.c.b16 %v2009, %v2008
    %v2070 = vpack.c.b16 %v2011, %v2010
    %v2071 = vpack.c.b16 %v2013, %v2012
    %v2072 = vpack.c.b16 %v2015, %v2014
    %v2073 = vpack.c.b16 %v2017, %v2016
    %v2074 = vpack.c.b16 %v2019, %v2018
    %v2075 = vpack.c.b16 %v2021, %v2020
    %v2076 = vpack.c.b16 %v2023, %v2022
    %v2077 = vpack.c.b16 %v2025, %v2024
    %v2078 = vpack.c.b16 %v2027, %v2026
    %v2079 = vpack.c.b16 %v2029, %v2028
    %v2080 = vpack.c.b16 %v2031, %v2030
    %v2081 = vpack.c.b16 %v2033, %v2032
    %v2082 = vpack.c.b16 %v2035, %v2034
    %v2083 = vpack.c.b16 %v2037, %v2036
    %v2084 = vpack.c.b16 %v2039, %v2038
    %v2085 = vpack.c.b16 %v2041, %v2040
    %v2086 = vpack.c.b16 %v2043, %v2042
    %v2087 = vpack.c.b16 %v2045, %v2044
    %v2088 = vpack.c.b16 %v2047, %v2046
    %v2089 = vpack.c.b16 %v2049, %v2048
    %2130 = vmatpush.bf16.msra.mxu0 %v2057
    %2131 = vmatpush.bf16.msra.mxu0 %v2056
    %2132 = vmatpush.bf16.msra.mxu0 %v2055
    %2133 = vmatpush.bf16.msra.mxu0 %v2054
    %2134 = vmatpush.bf16.msra.mxu0 %v2053
    %2135 = vmatpush.bf16.msra.mxu0 %v2052
    %2136 = vmatpush.bf16.msra.mxu0 %v2051
    %2137 = vmatpush.bf16.msra.mxu0 %v2050
    %2138 = vmatmul.bf16.gmra.mxu0 %v141
    %v2139 = vpop.f32.mrf.mxu0
    %v2140 = vadd.f32 0.0, %v2139
    %v2141 = vpop.f32.mrf.mxu0
    %v2142 = vadd.f32 0.0, %v2141
    %2143 = vdwg.mxu0
    %2144 = vmatpush.bf16.msra.mxu0 %v2065
    %2145 = vmatpush.bf16.msra.mxu0 %v2064
    %2146 = vmatpush.bf16.msra.mxu0 %v2063
    %2147 = vmatpush.bf16.msra.mxu0 %v2062
    %2148 = vmatpush.bf16.msra.mxu0 %v2061
    %2149 = vmatpush.bf16.msra.mxu0 %v2060
    %2150 = vmatpush.bf16.msra.mxu0 %v2059
    %2151 = vmatpush.bf16.msra.mxu0 %v2058
    %2152 = vmatmul.bf16.gmra.mxu0 %v142
    %v2153 = vpop.f32.mrf.mxu0
    %v2154 = vadd.f32 %v2140, %v2153
    %v2155 = vpop.f32.mrf.mxu0
    %v2156 = vadd.f32 %v2142, %v2155
    %2157 = vdwg.mxu0
    %2158 = vmatpush.bf16.msra.mxu0 %v2073
    %2159 = vmatpush.bf16.msra.mxu0 %v2072
    %2160 = vmatpush.bf16.msra.mxu0 %v2071
    %2161 = vmatpush.bf16.msra.mxu0 %v2070
    %2162 = vmatpush.bf16.msra.mxu0 %v2069
    %2163 = vmatpush.bf16.msra.mxu0 %v2068
    %2164 = vmatpush.bf16.msra.mxu0 %v2067
    %2165 = vmatpush.bf16.msra.mxu0 %v2066
    %2166 = vmatmul.bf16.gmra.mxu0 %v143
    %v2167 = vpop.f32.mrf.mxu0
    %v2168 = vadd.f32 %v2154, %v2167
    %v2169 = vpop.f32.mrf.mxu0
    %v2170 = vadd.f32 %v2156, %v2169
    %2171 = vdwg.mxu0
    %2172 = vmatpush.bf16.msra.mxu0 %v2081
    %2173 = vmatpush.bf16.msra.mxu0 %v2080
    %2174 = vmatpush.bf16.msra.mxu0 %v2079
    %2175 = vmatpush.bf16.msra.mxu0 %v2078
    %2176 = vmatpush.bf16.msra.mxu0 %v2077
    %2177 = vmatpush.bf16.msra.mxu0 %v2076
    %2178 = vmatpush.bf16.msra.mxu0 %v2075
    %2179 = vmatpush.bf16.msra.mxu0 %v2074
    %2180 = vmatmul.bf16.gmra.mxu0 %v144
    %v2181 = vpop.f32.mrf.mxu0
    %v2182 = vadd.f32 %v2168, %v2181
    %v2183 = vpop.f32.mrf.mxu0
    %v2184 = vadd.f32 %v2170, %v2183
    %2185 = vdwg.mxu0
    %2186 = vmatpush.bf16.msra.mxu0 %v2089
    %2187 = vmatpush.bf16.msra.mxu0 %v2088
    %2188 = vmatpush.bf16.msra.mxu0 %v2087
    %2189 = vmatpush.bf16.msra.mxu0 %v2086
    %2190 = vmatpush.bf16.msra.mxu0 %v2085
    %2191 = vmatpush.bf16.msra.mxu0 %v2084
    %2192 = vmatpush.bf16.msra.mxu0 %v2083
    %2193 = vmatpush.bf16.msra.mxu0 %v2082
    %2194 = vmatmul.bf16.gmra.mxu0 %v145
    %v2195 = vpop.f32.mrf.mxu0
    %v2196 = vadd.f32 %v2182, %v2195
    %v2197 = vpop.f32.mrf.mxu0
    %v2198 = vadd.f32 %v2184, %v2197
    %2199 = vdwg.mxu0
    %v2200 = vpack.c.bf16 %v2196, %v2196
    %v2201 = vpack.c.bf16 %v2198, %v2198
    %s2202 = scalar_lea.vmem [#allocation5], 16
    %2203 = vst [vmem:[%s2202] sm:$0xf] %v2200
    %2204 = vst [vmem:[%s2202 + $0x4] sm:$0xf] %v2201
    %s2205 = scalar_lea.vmem %s2, 640
    %v2206 = vld [vmem:[%s2205] sm:$0xf]
    %v2207 = vld [vmem:[%s2205 + $0x4] sm:$0xf]
    %v2208 = vld [vmem:[%s2205 + $0x8] sm:$0xf]
    %v2209 = vld [vmem:[%s2205 + $0xc] sm:$0xf]
    %v2210 = vld [vmem:[%s2205 + $0x10] sm:$0xf]
    %v2211 = vld [vmem:[%s2205 + $0x14] sm:$0xf]
    %v2212 = vld [vmem:[%s2205 + $0x18] sm:$0xf]
    %v2213 = vld [vmem:[%s2205 + $0x1c] sm:$0xf]
    %v2214 = vld [vmem:[%s2205 + $0x20] sm:$0xf]
    %v2215 = vld [vmem:[%s2205 + $0x24] sm:$0xf]
    %v2216 = vld [vmem:[%s2205 + $0x28] sm:$0xf]
    %v2217 = vld [vmem:[%s2205 + $0x2c] sm:$0xf]
    %v2218 = vld [vmem:[%s2205 + $0x30] sm:$0xf]
    %v2219 = vld [vmem:[%s2205 + $0x34] sm:$0xf]
    %v2220 = vld [vmem:[%s2205 + $0x38] sm:$0xf]
    %v2221 = vld [vmem:[%s2205 + $0x3c] sm:$0xf]
    %v2222 = vld [vmem:[%s2205 + $0x40] sm:$0xf]
    %v2223 = vld [vmem:[%s2205 + $0x44] sm:$0xf]
    %v2224 = vld [vmem:[%s2205 + $0x48] sm:$0xf]
    %v2225 = vld [vmem:[%s2205 + $0x4c] sm:$0xf]
    %v2226 = vld [vmem:[%s2205 + $0x50] sm:$0xf]
    %v2227 = vld [vmem:[%s2205 + $0x54] sm:$0xf]
    %v2228 = vld [vmem:[%s2205 + $0x58] sm:$0xf]
    %v2229 = vld [vmem:[%s2205 + $0x5c] sm:$0xf]
    %v2230 = vld [vmem:[%s2205 + $0x60] sm:$0xf]
    %v2231 = vld [vmem:[%s2205 + $0x64] sm:$0xf]
    %v2232 = vld [vmem:[%s2205 + $0x68] sm:$0xf]
    %v2233 = vld [vmem:[%s2205 + $0x6c] sm:$0xf]
    %v2234 = vld [vmem:[%s2205 + $0x70] sm:$0xf]
    %v2235 = vld [vmem:[%s2205 + $0x74] sm:$0xf]
    %v2236 = vld [vmem:[%s2205 + $0x78] sm:$0xf]
    %v2237 = vld [vmem:[%s2205 + $0x7c] sm:$0xf]
    %v2238 = vld [vmem:[%s2205 + $0x80] sm:$0xf]
    %v2239 = vld [vmem:[%s2205 + $0x84] sm:$0xf]
    %v2240 = vld [vmem:[%s2205 + $0x88] sm:$0xf]
    %v2241 = vld [vmem:[%s2205 + $0x8c] sm:$0xf]
    %v2242 = vld [vmem:[%s2205 + $0x90] sm:$0xf]
    %v2243 = vld [vmem:[%s2205 + $0x94] sm:$0xf]
    %v2244 = vld [vmem:[%s2205 + $0x98] sm:$0xf]
    %v2245 = vld [vmem:[%s2205 + $0x9c] sm:$0xf]
    %v2246 = vld [vmem:[%s2205 + $0xa0] sm:$0xf]
    %v2247 = vld [vmem:[%s2205 + $0xa4] sm:$0xf]
    %v2248 = vld [vmem:[%s2205 + $0xa8] sm:$0xf]
    %v2249 = vld [vmem:[%s2205 + $0xac] sm:$0xf]
    %v2250 = vld [vmem:[%s2205 + $0xb0] sm:$0xf]
    %v2251 = vld [vmem:[%s2205 + $0xb4] sm:$0xf]
    %v2252 = vld [vmem:[%s2205 + $0xb8] sm:$0xf]
    %v2253 = vld [vmem:[%s2205 + $0xbc] sm:$0xf]
    %v2254 = vld [vmem:[%s2205 + $0xc0] sm:$0xf]
    %v2255 = vld [vmem:[%s2205 + $0xc4] sm:$0xf]
    %v2256 = vld [vmem:[%s2205 + $0xc8] sm:$0xf]
    %v2257 = vld [vmem:[%s2205 + $0xcc] sm:$0xf]
    %v2258 = vld [vmem:[%s2205 + $0xd0] sm:$0xf]
    %v2259 = vld [vmem:[%s2205 + $0xd4] sm:$0xf]
    %v2260 = vld [vmem:[%s2205 + $0xd8] sm:$0xf]
    %v2261 = vld [vmem:[%s2205 + $0xdc] sm:$0xf]
    %v2262 = vld [vmem:[%s2205 + $0xe0] sm:$0xf]
    %v2263 = vld [vmem:[%s2205 + $0xe4] sm:$0xf]
    %v2264 = vld [vmem:[%s2205 + $0xe8] sm:$0xf]
    %v2265 = vld [vmem:[%s2205 + $0xec] sm:$0xf]
    %v2266 = vld [vmem:[%s2205 + $0xf0] sm:$0xf]
    %v2267 = vld [vmem:[%s2205 + $0xf4] sm:$0xf]
    %v2268 = vld [vmem:[%s2205 + $0xf8] sm:$0xf]
    %v2269 = vld [vmem:[%s2205 + $0xfc] sm:$0xf]
    %v2270 = vld [vmem:[%s2205 + $0x100] sm:$0xf]
    %v2271 = vld [vmem:[%s2205 + $0x104] sm:$0xf]
    %v2272 = vld [vmem:[%s2205 + $0x108] sm:$0xf]
    %v2273 = vld [vmem:[%s2205 + $0x10c] sm:$0xf]
    %v2274 = vld [vmem:[%s2205 + $0x110] sm:$0xf]
    %v2275 = vld [vmem:[%s2205 + $0x114] sm:$0xf]
    %v2276 = vld [vmem:[%s2205 + $0x118] sm:$0xf]
    %v2277 = vld [vmem:[%s2205 + $0x11c] sm:$0xf]
    %v2278 = vld [vmem:[%s2205 + $0x120] sm:$0xf]
    %v2279 = vld [vmem:[%s2205 + $0x124] sm:$0xf]
    %v2280 = vld [vmem:[%s2205 + $0x128] sm:$0xf]
    %v2281 = vld [vmem:[%s2205 + $0x12c] sm:$0xf]
    %v2282 = vld [vmem:[%s2205 + $0x130] sm:$0xf]
    %v2283 = vld [vmem:[%s2205 + $0x134] sm:$0xf]
    %v2284 = vld [vmem:[%s2205 + $0x138] sm:$0xf]
    %v2285 = vld [vmem:[%s2205 + $0x13c] sm:$0xf]
    %v2366 = vunpack.c.l.b16 %v2206
    %v2367 = vunpack.c.l.b16 %v2207
    %v2368 = vunpack.c.l.b16 %v2208
    %v2369 = vunpack.c.l.b16 %v2209
    %v2370 = vunpack.c.l.b16 %v2210
    %v2371 = vunpack.c.l.b16 %v2211
    %v2372 = vunpack.c.l.b16 %v2212
    %v2373 = vunpack.c.l.b16 %v2213
    %v2374 = vunpack.c.l.b16 %v2214
    %v2375 = vunpack.c.l.b16 %v2215
    %v2376 = vunpack.c.l.b16 %v2216
    %v2377 = vunpack.c.l.b16 %v2217
    %v2378 = vunpack.c.l.b16 %v2218
    %v2379 = vunpack.c.l.b16 %v2219
    %v2380 = vunpack.c.l.b16 %v2220
    %v2381 = vunpack.c.l.b16 %v2221
    %v2382 = vunpack.c.l.b16 %v2222
    %v2383 = vunpack.c.l.b16 %v2223
    %v2384 = vunpack.c.l.b16 %v2224
    %v2385 = vunpack.c.l.b16 %v2225
    %v2386 = vunpack.c.l.b16 %v2226
    %v2387 = vunpack.c.l.b16 %v2227
    %v2388 = vunpack.c.l.b16 %v2228
    %v2389 = vunpack.c.l.b16 %v2229
    %v2390 = vunpack.c.l.b16 %v2230
    %v2391 = vunpack.c.l.b16 %v2231
    %v2392 = vunpack.c.l.b16 %v2232
    %v2393 = vunpack.c.l.b16 %v2233
    %v2394 = vunpack.c.l.b16 %v2234
    %v2395 = vunpack.c.l.b16 %v2235
    %v2396 = vunpack.c.l.b16 %v2236
    %v2397 = vunpack.c.l.b16 %v2237
    %v2398 = vunpack.c.l.b16 %v2238
    %v2399 = vunpack.c.l.b16 %v2239
    %v2400 = vunpack.c.l.b16 %v2240
    %v2401 = vunpack.c.l.b16 %v2241
    %v2402 = vunpack.c.l.b16 %v2242
    %v2403 = vunpack.c.l.b16 %v2243
    %v2404 = vunpack.c.l.b16 %v2244
    %v2405 = vunpack.c.l.b16 %v2245
    %v2406 = vunpack.c.l.b16 %v2246
    %v2407 = vunpack.c.l.b16 %v2247
    %v2408 = vunpack.c.l.b16 %v2248
    %v2409 = vunpack.c.l.b16 %v2249
    %v2410 = vunpack.c.l.b16 %v2250
    %v2411 = vunpack.c.l.b16 %v2251
    %v2412 = vunpack.c.l.b16 %v2252
    %v2413 = vunpack.c.l.b16 %v2253
    %v2414 = vunpack.c.l.b16 %v2254
    %v2415 = vunpack.c.l.b16 %v2255
    %v2416 = vunpack.c.l.b16 %v2256
    %v2417 = vunpack.c.l.b16 %v2257
    %v2418 = vunpack.c.l.b16 %v2258
    %v2419 = vunpack.c.l.b16 %v2259
    %v2420 = vunpack.c.l.b16 %v2260
    %v2421 = vunpack.c.l.b16 %v2261
    %v2422 = vunpack.c.l.b16 %v2262
    %v2423 = vunpack.c.l.b16 %v2263
    %v2424 = vunpack.c.l.b16 %v2264
    %v2425 = vunpack.c.l.b16 %v2265
    %v2426 = vunpack.c.l.b16 %v2266
    %v2427 = vunpack.c.l.b16 %v2267
    %v2428 = vunpack.c.l.b16 %v2268
    %v2429 = vunpack.c.l.b16 %v2269
    %v2430 = vunpack.c.l.b16 %v2270
    %v2431 = vunpack.c.l.b16 %v2271
    %v2432 = vunpack.c.l.b16 %v2272
    %v2433 = vunpack.c.l.b16 %v2273
    %v2434 = vunpack.c.l.b16 %v2274
    %v2435 = vunpack.c.l.b16 %v2275
    %v2436 = vunpack.c.l.b16 %v2276
    %v2437 = vunpack.c.l.b16 %v2277
    %v2438 = vunpack.c.l.b16 %v2278
    %v2439 = vunpack.c.l.b16 %v2279
    %v2440 = vunpack.c.l.b16 %v2280
    %v2441 = vunpack.c.l.b16 %v2281
    %v2442 = vunpack.c.l.b16 %v2282
    %v2443 = vunpack.c.l.b16 %v2283
    %v2444 = vunpack.c.l.b16 %v2284
    %v2445 = vunpack.c.l.b16 %v2285
    %v2446 = vpack.c.b16 %v2367, %v2366
    %v2447 = vpack.c.b16 %v2369, %v2368
    %v2448 = vpack.c.b16 %v2371, %v2370
    %v2449 = vpack.c.b16 %v2373, %v2372
    %v2450 = vpack.c.b16 %v2375, %v2374
    %v2451 = vpack.c.b16 %v2377, %v2376
    %v2452 = vpack.c.b16 %v2379, %v2378
    %v2453 = vpack.c.b16 %v2381, %v2380
    %v2454 = vpack.c.b16 %v2383, %v2382
    %v2455 = vpack.c.b16 %v2385, %v2384
    %v2456 = vpack.c.b16 %v2387, %v2386
    %v2457 = vpack.c.b16 %v2389, %v2388
    %v2458 = vpack.c.b16 %v2391, %v2390
    %v2459 = vpack.c.b16 %v2393, %v2392
    %v2460 = vpack.c.b16 %v2395, %v2394
    %v2461 = vpack.c.b16 %v2397, %v2396
    %v2462 = vpack.c.b16 %v2399, %v2398
    %v2463 = vpack.c.b16 %v2401, %v2400
    %v2464 = vpack.c.b16 %v2403, %v2402
    %v2465 = vpack.c.b16 %v2405, %v2404
    %v2466 = vpack.c.b16 %v2407, %v2406
    %v2467 = vpack.c.b16 %v2409, %v2408
    %v2468 = vpack.c.b16 %v2411, %v2410
    %v2469 = vpack.c.b16 %v2413, %v2412
    %v2470 = vpack.c.b16 %v2415, %v2414
    %v2471 = vpack.c.b16 %v2417, %v2416
    %v2472 = vpack.c.b16 %v2419, %v2418
    %v2473 = vpack.c.b16 %v2421, %v2420
    %v2474 = vpack.c.b16 %v2423, %v2422
    %v2475 = vpack.c.b16 %v2425, %v2424
    %v2476 = vpack.c.b16 %v2427, %v2426
    %v2477 = vpack.c.b16 %v2429, %v2428
    %v2478 = vpack.c.b16 %v2431, %v2430
    %v2479 = vpack.c.b16 %v2433, %v2432
    %v2480 = vpack.c.b16 %v2435, %v2434
    %v2481 = vpack.c.b16 %v2437, %v2436
    %v2482 = vpack.c.b16 %v2439, %v2438
    %v2483 = vpack.c.b16 %v2441, %v2440
    %v2484 = vpack.c.b16 %v2443, %v2442
    %v2485 = vpack.c.b16 %v2445, %v2444
    %2526 = vmatpush.bf16.msra.mxu0 %v2453
    %2527 = vmatpush.bf16.msra.mxu0 %v2452
    %2528 = vmatpush.bf16.msra.mxu0 %v2451
    %2529 = vmatpush.bf16.msra.mxu0 %v2450
    %2530 = vmatpush.bf16.msra.mxu0 %v2449
    %2531 = vmatpush.bf16.msra.mxu0 %v2448
    %2532 = vmatpush.bf16.msra.mxu0 %v2447
    %2533 = vmatpush.bf16.msra.mxu0 %v2446
    %2534 = vmatmul.bf16.gmra.mxu0 %v141
    %v2535 = vpop.f32.mrf.mxu0
    %v2536 = vadd.f32 0.0, %v2535
    %v2537 = vpop.f32.mrf.mxu0
    %v2538 = vadd.f32 0.0, %v2537
    %2539 = vdwg.mxu0
    %2540 = vmatpush.bf16.msra.mxu0 %v2461
    %2541 = vmatpush.bf16.msra.mxu0 %v2460
    %2542 = vmatpush.bf16.msra.mxu0 %v2459
    %2543 = vmatpush.bf16.msra.mxu0 %v2458
    %2544 = vmatpush.bf16.msra.mxu0 %v2457
    %2545 = vmatpush.bf16.msra.mxu0 %v2456
    %2546 = vmatpush.bf16.msra.mxu0 %v2455
    %2547 = vmatpush.bf16.msra.mxu0 %v2454
    %2548 = vmatmul.bf16.gmra.mxu0 %v142
    %v2549 = vpop.f32.mrf.mxu0
    %v2550 = vadd.f32 %v2536, %v2549
    %v2551 = vpop.f32.mrf.mxu0
    %v2552 = vadd.f32 %v2538, %v2551
    %2553 = vdwg.mxu0
    %2554 = vmatpush.bf16.msra.mxu0 %v2469
    %2555 = vmatpush.bf16.msra.mxu0 %v2468
    %2556 = vmatpush.bf16.msra.mxu0 %v2467
    %2557 = vmatpush.bf16.msra.mxu0 %v2466
    %2558 = vmatpush.bf16.msra.mxu0 %v2465
    %2559 = vmatpush.bf16.msra.mxu0 %v2464
    %2560 = vmatpush.bf16.msra.mxu0 %v2463
    %2561 = vmatpush.bf16.msra.mxu0 %v2462
    %2562 = vmatmul.bf16.gmra.mxu0 %v143
    %v2563 = vpop.f32.mrf.mxu0
    %v2564 = vadd.f32 %v2550, %v2563
    %v2565 = vpop.f32.mrf.mxu0
    %v2566 = vadd.f32 %v2552, %v2565
    %2567 = vdwg.mxu0
    %2568 = vmatpush.bf16.msra.mxu0 %v2477
    %2569 = vmatpush.bf16.msra.mxu0 %v2476
    %2570 = vmatpush.bf16.msra.mxu0 %v2475
    %2571 = vmatpush.bf16.msra.mxu0 %v2474
    %2572 = vmatpush.bf16.msra.mxu0 %v2473
    %2573 = vmatpush.bf16.msra.mxu0 %v2472
    %2574 = vmatpush.bf16.msra.mxu0 %v2471
    %2575 = vmatpush.bf16.msra.mxu0 %v2470
    %2576 = vmatmul.bf16.gmra.mxu0 %v144
    %v2577 = vpop.f32.mrf.mxu0
    %v2578 = vadd.f32 %v2564, %v2577
    %v2579 = vpop.f32.mrf.mxu0
    %v2580 = vadd.f32 %v2566, %v2579
    %2581 = vdwg.mxu0
    %2582 = vmatpush.bf16.msra.mxu0 %v2485
    %2583 = vmatpush.bf16.msra.mxu0 %v2484
    %2584 = vmatpush.bf16.msra.mxu0 %v2483
    %2585 = vmatpush.bf16.msra.mxu0 %v2482
    %2586 = vmatpush.bf16.msra.mxu0 %v2481
    %2587 = vmatpush.bf16.msra.mxu0 %v2480
    %2588 = vmatpush.bf16.msra.mxu0 %v2479
    %2589 = vmatpush.bf16.msra.mxu0 %v2478
    %2590 = vmatmul.bf16.gmra.mxu0 %v145
    %v2591 = vpop.f32.mrf.mxu0
    %v2592 = vadd.f32 %v2578, %v2591
    %v2593 = vpop.f32.mrf.mxu0
    %v2594 = vadd.f32 %v2580, %v2593
    %2595 = vdwg.mxu0
    %s2596 = scalar_lea.vmem %s5, 32
    %2597 = vst.msk [vmem:[%s2596] sm:$0xff] %vm855, %v2592
    %2598 = vst.msk [vmem:[%s2596 + $0x8] sm:$0xff] %vm855, %v2594
    %s2599 = scalar_lea.vmem %s3, 10
    %v2600 = vld [vmem:[%s2599] sm:$0x1f]
    %2602 = vst [vmem:[#allocation1] ss:$9 sm:$0xff] %v2600
    %v2603 = vld [vmem:[#allocation1] sm:$0xff]
    %v2604 = vld [vmem:[#allocation1 + $0x9] sm:$0xff]
    %v2605 = vld [vmem:[#allocation1 + $0x12] sm:$0xff]
    %v2606 = vld [vmem:[#allocation1 + $0x1b] sm:$0xff]
    %v2607 = vld [vmem:[#allocation1 + $0x24] sm:$0xff]
    %2613 = vmatpush.bf16.xpose.msra.mxu0 0
    %2614 = vmatpush.bf16.xpose.msra.mxu0 0
    %2615 = vmatpush.bf16.xpose.msra.mxu0 0
    %2616 = vmatpush.bf16.xpose.msra.mxu0 0
    %2617 = vmatpush.bf16.xpose.msra.mxu0 0
    %2618 = vmatpush.bf16.xpose.msra.mxu0 0
    %2619 = vmatpush.bf16.xpose.msra.mxu0 0
    %2620 = vmatpush.bf16.xpose.msra.mxu0 %v141
    %2621 = vmatmul.bf16.gmra.mxu0 %v2603
    %v2622 = vpop.f32.mrf.mxu0
    %v2623 = vadd.f32 0.0, %v2622
    %v2624 = vpop.f32.mrf.mxu0
    %2625 = vdwg.mxu0
    %2626 = vmatpush.bf16.xpose.msra.mxu0 0
    %2627 = vmatpush.bf16.xpose.msra.mxu0 0
    %2628 = vmatpush.bf16.xpose.msra.mxu0 0
    %2629 = vmatpush.bf16.xpose.msra.mxu0 0
    %2630 = vmatpush.bf16.xpose.msra.mxu0 0
    %2631 = vmatpush.bf16.xpose.msra.mxu0 0
    %2632 = vmatpush.bf16.xpose.msra.mxu0 0
    %2633 = vmatpush.bf16.xpose.msra.mxu0 %v142
    %2634 = vmatmul.bf16.gmra.mxu0 %v2604
    %v2635 = vpop.f32.mrf.mxu0
    %v2636 = vadd.f32 %v2623, %v2635
    %v2637 = vpop.f32.mrf.mxu0
    %2638 = vdwg.mxu0
    %2639 = vmatpush.bf16.xpose.msra.mxu0 0
    %2640 = vmatpush.bf16.xpose.msra.mxu0 0
    %2641 = vmatpush.bf16.xpose.msra.mxu0 0
    %2642 = vmatpush.bf16.xpose.msra.mxu0 0
    %2643 = vmatpush.bf16.xpose.msra.mxu0 0
    %2644 = vmatpush.bf16.xpose.msra.mxu0 0
    %2645 = vmatpush.bf16.xpose.msra.mxu0 0
    %2646 = vmatpush.bf16.xpose.msra.mxu0 %v143
    %2647 = vmatmul.bf16.gmra.mxu0 %v2605
    %v2648 = vpop.f32.mrf.mxu0
    %v2649 = vadd.f32 %v2636, %v2648
    %v2650 = vpop.f32.mrf.mxu0
    %2651 = vdwg.mxu0
    %2652 = vmatpush.bf16.xpose.msra.mxu0 0
    %2653 = vmatpush.bf16.xpose.msra.mxu0 0
    %2654 = vmatpush.bf16.xpose.msra.mxu0 0
    %2655 = vmatpush.bf16.xpose.msra.mxu0 0
    %2656 = vmatpush.bf16.xpose.msra.mxu0 0
    %2657 = vmatpush.bf16.xpose.msra.mxu0 0
    %2658 = vmatpush.bf16.xpose.msra.mxu0 0
    %2659 = vmatpush.bf16.xpose.msra.mxu0 %v144
    %2660 = vmatmul.bf16.gmra.mxu0 %v2606
    %v2661 = vpop.f32.mrf.mxu0
    %v2662 = vadd.f32 %v2649, %v2661
    %v2663 = vpop.f32.mrf.mxu0
    %2664 = vdwg.mxu0
    %2665 = vmatpush.bf16.xpose.msra.mxu0 0
    %2666 = vmatpush.bf16.xpose.msra.mxu0 0
    %2667 = vmatpush.bf16.xpose.msra.mxu0 0
    %2668 = vmatpush.bf16.xpose.msra.mxu0 0
    %2669 = vmatpush.bf16.xpose.msra.mxu0 0
    %2670 = vmatpush.bf16.xpose.msra.mxu0 0
    %2671 = vmatpush.bf16.xpose.msra.mxu0 0
    %2672 = vmatpush.bf16.xpose.msra.mxu0 %v145
    %2673 = vmatmul.bf16.gmra.mxu0 %v2607
    %v2674 = vpop.f32.mrf.mxu0
    %v2675 = vadd.f32 %v2662, %v2674
    %v2676 = vpop.f32.mrf.mxu0
    %2677 = vdwg.mxu0
    %s2678 = scalar_lea.vmem [#allocation6], 2
    %2679 = vst.msk [vmem:[%s2678] sm:$0x1] %vm936, %v2675
    %s2680 = scalar_lea.vmem %s1, 960
    %v2681 = vld [vmem:[%s2680] sm:$0xf]
    %v2682 = vld [vmem:[%s2680 + $0x4] sm:$0xf]
    %v2683 = vld [vmem:[%s2680 + $0x8] sm:$0xf]
    %v2684 = vld [vmem:[%s2680 + $0xc] sm:$0xf]
    %v2685 = vld [vmem:[%s2680 + $0x10] sm:$0xf]
    %v2686 = vld [vmem:[%s2680 + $0x14] sm:$0xf]
    %v2687 = vld [vmem:[%s2680 + $0x18] sm:$0xf]
    %v2688 = vld [vmem:[%s2680 + $0x1c] sm:$0xf]
    %v2689 = vld [vmem:[%s2680 + $0x20] sm:$0xf]
    %v2690 = vld [vmem:[%s2680 + $0x24] sm:$0xf]
    %v2691 = vld [vmem:[%s2680 + $0x28] sm:$0xf]
    %v2692 = vld [vmem:[%s2680 + $0x2c] sm:$0xf]
    %v2693 = vld [vmem:[%s2680 + $0x30] sm:$0xf]
    %v2694 = vld [vmem:[%s2680 + $0x34] sm:$0xf]
    %v2695 = vld [vmem:[%s2680 + $0x38] sm:$0xf]
    %v2696 = vld [vmem:[%s2680 + $0x3c] sm:$0xf]
    %v2697 = vld [vmem:[%s2680 + $0x40] sm:$0xf]
    %v2698 = vld [vmem:[%s2680 + $0x44] sm:$0xf]
    %v2699 = vld [vmem:[%s2680 + $0x48] sm:$0xf]
    %v2700 = vld [vmem:[%s2680 + $0x4c] sm:$0xf]
    %v2701 = vld [vmem:[%s2680 + $0x50] sm:$0xf]
    %v2702 = vld [vmem:[%s2680 + $0x54] sm:$0xf]
    %v2703 = vld [vmem:[%s2680 + $0x58] sm:$0xf]
    %v2704 = vld [vmem:[%s2680 + $0x5c] sm:$0xf]
    %v2705 = vld [vmem:[%s2680 + $0x60] sm:$0xf]
    %v2706 = vld [vmem:[%s2680 + $0x64] sm:$0xf]
    %v2707 = vld [vmem:[%s2680 + $0x68] sm:$0xf]
    %v2708 = vld [vmem:[%s2680 + $0x6c] sm:$0xf]
    %v2709 = vld [vmem:[%s2680 + $0x70] sm:$0xf]
    %v2710 = vld [vmem:[%s2680 + $0x74] sm:$0xf]
    %v2711 = vld [vmem:[%s2680 + $0x78] sm:$0xf]
    %v2712 = vld [vmem:[%s2680 + $0x7c] sm:$0xf]
    %v2713 = vld [vmem:[%s2680 + $0x80] sm:$0xf]
    %v2714 = vld [vmem:[%s2680 + $0x84] sm:$0xf]
    %v2715 = vld [vmem:[%s2680 + $0x88] sm:$0xf]
    %v2716 = vld [vmem:[%s2680 + $0x8c] sm:$0xf]
    %v2717 = vld [vmem:[%s2680 + $0x90] sm:$0xf]
    %v2718 = vld [vmem:[%s2680 + $0x94] sm:$0xf]
    %v2719 = vld [vmem:[%s2680 + $0x98] sm:$0xf]
    %v2720 = vld [vmem:[%s2680 + $0x9c] sm:$0xf]
    %v2721 = vld [vmem:[%s2680 + $0xa0] sm:$0xf]
    %v2722 = vld [vmem:[%s2680 + $0xa4] sm:$0xf]
    %v2723 = vld [vmem:[%s2680 + $0xa8] sm:$0xf]
    %v2724 = vld [vmem:[%s2680 + $0xac] sm:$0xf]
    %v2725 = vld [vmem:[%s2680 + $0xb0] sm:$0xf]
    %v2726 = vld [vmem:[%s2680 + $0xb4] sm:$0xf]
    %v2727 = vld [vmem:[%s2680 + $0xb8] sm:$0xf]
    %v2728 = vld [vmem:[%s2680 + $0xbc] sm:$0xf]
    %v2729 = vld [vmem:[%s2680 + $0xc0] sm:$0xf]
    %v2730 = vld [vmem:[%s2680 + $0xc4] sm:$0xf]
    %v2731 = vld [vmem:[%s2680 + $0xc8] sm:$0xf]
    %v2732 = vld [vmem:[%s2680 + $0xcc] sm:$0xf]
    %v2733 = vld [vmem:[%s2680 + $0xd0] sm:$0xf]
    %v2734 = vld [vmem:[%s2680 + $0xd4] sm:$0xf]
    %v2735 = vld [vmem:[%s2680 + $0xd8] sm:$0xf]
    %v2736 = vld [vmem:[%s2680 + $0xdc] sm:$0xf]
    %v2737 = vld [vmem:[%s2680 + $0xe0] sm:$0xf]
    %v2738 = vld [vmem:[%s2680 + $0xe4] sm:$0xf]
    %v2739 = vld [vmem:[%s2680 + $0xe8] sm:$0xf]
    %v2740 = vld [vmem:[%s2680 + $0xec] sm:$0xf]
    %v2741 = vld [vmem:[%s2680 + $0xf0] sm:$0xf]
    %v2742 = vld [vmem:[%s2680 + $0xf4] sm:$0xf]
    %v2743 = vld [vmem:[%s2680 + $0xf8] sm:$0xf]
    %v2744 = vld [vmem:[%s2680 + $0xfc] sm:$0xf]
    %v2745 = vld [vmem:[%s2680 + $0x100] sm:$0xf]
    %v2746 = vld [vmem:[%s2680 + $0x104] sm:$0xf]
    %v2747 = vld [vmem:[%s2680 + $0x108] sm:$0xf]
    %v2748 = vld [vmem:[%s2680 + $0x10c] sm:$0xf]
    %v2749 = vld [vmem:[%s2680 + $0x110] sm:$0xf]
    %v2750 = vld [vmem:[%s2680 + $0x114] sm:$0xf]
    %v2751 = vld [vmem:[%s2680 + $0x118] sm:$0xf]
    %v2752 = vld [vmem:[%s2680 + $0x11c] sm:$0xf]
    %v2753 = vld [vmem:[%s2680 + $0x120] sm:$0xf]
    %v2754 = vld [vmem:[%s2680 + $0x124] sm:$0xf]
    %v2755 = vld [vmem:[%s2680 + $0x128] sm:$0xf]
    %v2756 = vld [vmem:[%s2680 + $0x12c] sm:$0xf]
    %v2757 = vld [vmem:[%s2680 + $0x130] sm:$0xf]
    %v2758 = vld [vmem:[%s2680 + $0x134] sm:$0xf]
    %v2759 = vld [vmem:[%s2680 + $0x138] sm:$0xf]
    %v2760 = vld [vmem:[%s2680 + $0x13c] sm:$0xf]
    %v2841 = vunpack.c.l.b16 %v2681
    %v2842 = vunpack.c.l.b16 %v2682
    %v2843 = vunpack.c.l.b16 %v2683
    %v2844 = vunpack.c.l.b16 %v2684
    %v2845 = vunpack.c.l.b16 %v2685
    %v2846 = vunpack.c.l.b16 %v2686
    %v2847 = vunpack.c.l.b16 %v2687
    %v2848 = vunpack.c.l.b16 %v2688
    %v2849 = vunpack.c.l.b16 %v2689
    %v2850 = vunpack.c.l.b16 %v2690
    %v2851 = vunpack.c.l.b16 %v2691
    %v2852 = vunpack.c.l.b16 %v2692
    %v2853 = vunpack.c.l.b16 %v2693
    %v2854 = vunpack.c.l.b16 %v2694
    %v2855 = vunpack.c.l.b16 %v2695
    %v2856 = vunpack.c.l.b16 %v2696
    %v2857 = vunpack.c.l.b16 %v2697
    %v2858 = vunpack.c.l.b16 %v2698
    %v2859 = vunpack.c.l.b16 %v2699
    %v2860 = vunpack.c.l.b16 %v2700
    %v2861 = vunpack.c.l.b16 %v2701
    %v2862 = vunpack.c.l.b16 %v2702
    %v2863 = vunpack.c.l.b16 %v2703
    %v2864 = vunpack.c.l.b16 %v2704
    %v2865 = vunpack.c.l.b16 %v2705
    %v2866 = vunpack.c.l.b16 %v2706
    %v2867 = vunpack.c.l.b16 %v2707
    %v2868 = vunpack.c.l.b16 %v2708
    %v2869 = vunpack.c.l.b16 %v2709
    %v2870 = vunpack.c.l.b16 %v2710
    %v2871 = vunpack.c.l.b16 %v2711
    %v2872 = vunpack.c.l.b16 %v2712
    %v2873 = vunpack.c.l.b16 %v2713
    %v2874 = vunpack.c.l.b16 %v2714
    %v2875 = vunpack.c.l.b16 %v2715
    %v2876 = vunpack.c.l.b16 %v2716
    %v2877 = vunpack.c.l.b16 %v2717
    %v2878 = vunpack.c.l.b16 %v2718
    %v2879 = vunpack.c.l.b16 %v2719
    %v2880 = vunpack.c.l.b16 %v2720
    %v2881 = vunpack.c.l.b16 %v2721
    %v2882 = vunpack.c.l.b16 %v2722
    %v2883 = vunpack.c.l.b16 %v2723
    %v2884 = vunpack.c.l.b16 %v2724
    %v2885 = vunpack.c.l.b16 %v2725
    %v2886 = vunpack.c.l.b16 %v2726
    %v2887 = vunpack.c.l.b16 %v2727
    %v2888 = vunpack.c.l.b16 %v2728
    %v2889 = vunpack.c.l.b16 %v2729
    %v2890 = vunpack.c.l.b16 %v2730
    %v2891 = vunpack.c.l.b16 %v2731
    %v2892 = vunpack.c.l.b16 %v2732
    %v2893 = vunpack.c.l.b16 %v2733
    %v2894 = vunpack.c.l.b16 %v2734
    %v2895 = vunpack.c.l.b16 %v2735
    %v2896 = vunpack.c.l.b16 %v2736
    %v2897 = vunpack.c.l.b16 %v2737
    %v2898 = vunpack.c.l.b16 %v2738
    %v2899 = vunpack.c.l.b16 %v2739
    %v2900 = vunpack.c.l.b16 %v2740
    %v2901 = vunpack.c.l.b16 %v2741
    %v2902 = vunpack.c.l.b16 %v2742
    %v2903 = vunpack.c.l.b16 %v2743
    %v2904 = vunpack.c.l.b16 %v2744
    %v2905 = vunpack.c.l.b16 %v2745
    %v2906 = vunpack.c.l.b16 %v2746
    %v2907 = vunpack.c.l.b16 %v2747
    %v2908 = vunpack.c.l.b16 %v2748
    %v2909 = vunpack.c.l.b16 %v2749
    %v2910 = vunpack.c.l.b16 %v2750
    %v2911 = vunpack.c.l.b16 %v2751
    %v2912 = vunpack.c.l.b16 %v2752
    %v2913 = vunpack.c.l.b16 %v2753
    %v2914 = vunpack.c.l.b16 %v2754
    %v2915 = vunpack.c.l.b16 %v2755
    %v2916 = vunpack.c.l.b16 %v2756
    %v2917 = vunpack.c.l.b16 %v2757
    %v2918 = vunpack.c.l.b16 %v2758
    %v2919 = vunpack.c.l.b16 %v2759
    %v2920 = vunpack.c.l.b16 %v2760
    %v2921 = vpack.c.b16 %v2842, %v2841
    %v2922 = vpack.c.b16 %v2844, %v2843
    %v2923 = vpack.c.b16 %v2846, %v2845
    %v2924 = vpack.c.b16 %v2848, %v2847
    %v2925 = vpack.c.b16 %v2850, %v2849
    %v2926 = vpack.c.b16 %v2852, %v2851
    %v2927 = vpack.c.b16 %v2854, %v2853
    %v2928 = vpack.c.b16 %v2856, %v2855
    %v2929 = vpack.c.b16 %v2858, %v2857
    %v2930 = vpack.c.b16 %v2860, %v2859
    %v2931 = vpack.c.b16 %v2862, %v2861
    %v2932 = vpack.c.b16 %v2864, %v2863
    %v2933 = vpack.c.b16 %v2866, %v2865
    %v2934 = vpack.c.b16 %v2868, %v2867
    %v2935 = vpack.c.b16 %v2870, %v2869
    %v2936 = vpack.c.b16 %v2872, %v2871
    %v2937 = vpack.c.b16 %v2874, %v2873
    %v2938 = vpack.c.b16 %v2876, %v2875
    %v2939 = vpack.c.b16 %v2878, %v2877
    %v2940 = vpack.c.b16 %v2880, %v2879
    %v2941 = vpack.c.b16 %v2882, %v2881
    %v2942 = vpack.c.b16 %v2884, %v2883
    %v2943 = vpack.c.b16 %v2886, %v2885
    %v2944 = vpack.c.b16 %v2888, %v2887
    %v2945 = vpack.c.b16 %v2890, %v2889
    %v2946 = vpack.c.b16 %v2892, %v2891
    %v2947 = vpack.c.b16 %v2894, %v2893
    %v2948 = vpack.c.b16 %v2896, %v2895
    %v2949 = vpack.c.b16 %v2898, %v2897
    %v2950 = vpack.c.b16 %v2900, %v2899
    %v2951 = vpack.c.b16 %v2902, %v2901
    %v2952 = vpack.c.b16 %v2904, %v2903
    %v2953 = vpack.c.b16 %v2906, %v2905
    %v2954 = vpack.c.b16 %v2908, %v2907
    %v2955 = vpack.c.b16 %v2910, %v2909
    %v2956 = vpack.c.b16 %v2912, %v2911
    %v2957 = vpack.c.b16 %v2914, %v2913
    %v2958 = vpack.c.b16 %v2916, %v2915
    %v2959 = vpack.c.b16 %v2918, %v2917
    %v2960 = vpack.c.b16 %v2920, %v2919
    %3001 = vmatpush.bf16.msra.mxu0 %v2928
    %3002 = vmatpush.bf16.msra.mxu0 %v2927
    %3003 = vmatpush.bf16.msra.mxu0 %v2926
    %3004 = vmatpush.bf16.msra.mxu0 %v2925
    %3005 = vmatpush.bf16.msra.mxu0 %v2924
    %3006 = vmatpush.bf16.msra.mxu0 %v2923
    %3007 = vmatpush.bf16.msra.mxu0 %v2922
    %3008 = vmatpush.bf16.msra.mxu0 %v2921
    %3009 = vmatmul.bf16.gmra.mxu0 %v141
    %v3010 = vpop.f32.mrf.mxu0
    %v3011 = vadd.f32 0.0, %v3010
    %v3012 = vpop.f32.mrf.mxu0
    %v3013 = vadd.f32 0.0, %v3012
    %3014 = vdwg.mxu0
    %3015 = vmatpush.bf16.msra.mxu0 %v2936
    %3016 = vmatpush.bf16.msra.mxu0 %v2935
    %3017 = vmatpush.bf16.msra.mxu0 %v2934
    %3018 = vmatpush.bf16.msra.mxu0 %v2933
    %3019 = vmatpush.bf16.msra.mxu0 %v2932
    %3020 = vmatpush.bf16.msra.mxu0 %v2931
    %3021 = vmatpush.bf16.msra.mxu0 %v2930
    %3022 = vmatpush.bf16.msra.mxu0 %v2929
    %3023 = vmatmul.bf16.gmra.mxu0 %v142
    %v3024 = vpop.f32.mrf.mxu0
    %v3025 = vadd.f32 %v3011, %v3024
    %v3026 = vpop.f32.mrf.mxu0
    %v3027 = vadd.f32 %v3013, %v3026
    %3028 = vdwg.mxu0
    %3029 = vmatpush.bf16.msra.mxu0 %v2944
    %3030 = vmatpush.bf16.msra.mxu0 %v2943
    %3031 = vmatpush.bf16.msra.mxu0 %v2942
    %3032 = vmatpush.bf16.msra.mxu0 %v2941
    %3033 = vmatpush.bf16.msra.mxu0 %v2940
    %3034 = vmatpush.bf16.msra.mxu0 %v2939
    %3035 = vmatpush.bf16.msra.mxu0 %v2938
    %3036 = vmatpush.bf16.msra.mxu0 %v2937
    %3037 = vmatmul.bf16.gmra.mxu0 %v143
    %v3038 = vpop.f32.mrf.mxu0
    %v3039 = vadd.f32 %v3025, %v3038
    %v3040 = vpop.f32.mrf.mxu0
    %v3041 = vadd.f32 %v3027, %v3040
    %3042 = vdwg.mxu0
    %3043 = vmatpush.bf16.msra.mxu0 %v2952
    %3044 = vmatpush.bf16.msra.mxu0 %v2951
    %3045 = vmatpush.bf16.msra.mxu0 %v2950
    %3046 = vmatpush.bf16.msra.mxu0 %v2949
    %3047 = vmatpush.bf16.msra.mxu0 %v2948
    %3048 = vmatpush.bf16.msra.mxu0 %v2947
    %3049 = vmatpush.bf16.msra.mxu0 %v2946
    %3050 = vmatpush.bf16.msra.mxu0 %v2945
    %3051 = vmatmul.bf16.gmra.mxu0 %v144
    %v3052 = vpop.f32.mrf.mxu0
    %v3053 = vadd.f32 %v3039, %v3052
    %v3054 = vpop.f32.mrf.mxu0
    %v3055 = vadd.f32 %v3041, %v3054
    %3056 = vdwg.mxu0
    %3057 = vmatpush.bf16.msra.mxu0 %v2960
    %3058 = vmatpush.bf16.msra.mxu0 %v2959
    %3059 = vmatpush.bf16.msra.mxu0 %v2958
    %3060 = vmatpush.bf16.msra.mxu0 %v2957
    %3061 = vmatpush.bf16.msra.mxu0 %v2956
    %3062 = vmatpush.bf16.msra.mxu0 %v2955
    %3063 = vmatpush.bf16.msra.mxu0 %v2954
    %3064 = vmatpush.bf16.msra.mxu0 %v2953
    %3065 = vmatmul.bf16.gmra.mxu0 %v145
    %v3066 = vpop.f32.mrf.mxu0
    %v3067 = vadd.f32 %v3053, %v3066
    %v3068 = vpop.f32.mrf.mxu0
    %v3069 = vadd.f32 %v3055, %v3068
    %3070 = vdwg.mxu0
    %v3071 = vpack.c.bf16 %v3067, %v3067
    %v3072 = vpack.c.bf16 %v3069, %v3069
    %s3073 = scalar_lea.vmem [#allocation5], 24
    %3074 = vst [vmem:[%s3073] sm:$0xf] %v3071
    %3075 = vst [vmem:[%s3073 + $0x4] sm:$0xf] %v3072
    %s3076 = scalar_lea.vmem %s2, 960
    %v3077 = vld [vmem:[%s3076] sm:$0xf]
    %v3078 = vld [vmem:[%s3076 + $0x4] sm:$0xf]
    %v3079 = vld [vmem:[%s3076 + $0x8] sm:$0xf]
    %v3080 = vld [vmem:[%s3076 + $0xc] sm:$0xf]
    %v3081 = vld [vmem:[%s3076 + $0x10] sm:$0xf]
    %v3082 = vld [vmem:[%s3076 + $0x14] sm:$0xf]
    %v3083 = vld [vmem:[%s3076 + $0x18] sm:$0xf]
    %v3084 = vld [vmem:[%s3076 + $0x1c] sm:$0xf]
    %v3085 = vld [vmem:[%s3076 + $0x20] sm:$0xf]
    %v3086 = vld [vmem:[%s3076 + $0x24] sm:$0xf]
    %v3087 = vld [vmem:[%s3076 + $0x28] sm:$0xf]
    %v3088 = vld [vmem:[%s3076 + $0x2c] sm:$0xf]
    %v3089 = vld [vmem:[%s3076 + $0x30] sm:$0xf]
    %v3090 = vld [vmem:[%s3076 + $0x34] sm:$0xf]
    %v3091 = vld [vmem:[%s3076 + $0x38] sm:$0xf]
    %v3092 = vld [vmem:[%s3076 + $0x3c] sm:$0xf]
    %v3093 = vld [vmem:[%s3076 + $0x40] sm:$0xf]
    %v3094 = vld [vmem:[%s3076 + $0x44] sm:$0xf]
    %v3095 = vld [vmem:[%s3076 + $0x48] sm:$0xf]
    %v3096 = vld [vmem:[%s3076 + $0x4c] sm:$0xf]
    %v3097 = vld [vmem:[%s3076 + $0x50] sm:$0xf]
    %v3098 = vld [vmem:[%s3076 + $0x54] sm:$0xf]
    %v3099 = vld [vmem:[%s3076 + $0x58] sm:$0xf]
    %v3100 = vld [vmem:[%s3076 + $0x5c] sm:$0xf]
    %v3101 = vld [vmem:[%s3076 + $0x60] sm:$0xf]
    %v3102 = vld [vmem:[%s3076 + $0x64] sm:$0xf]
    %v3103 = vld [vmem:[%s3076 + $0x68] sm:$0xf]
    %v3104 = vld [vmem:[%s3076 + $0x6c] sm:$0xf]
    %v3105 = vld [vmem:[%s3076 + $0x70] sm:$0xf]
    %v3106 = vld [vmem:[%s3076 + $0x74] sm:$0xf]
    %v3107 = vld [vmem:[%s3076 + $0x78] sm:$0xf]
    %v3108 = vld [vmem:[%s3076 + $0x7c] sm:$0xf]
    %v3109 = vld [vmem:[%s3076 + $0x80] sm:$0xf]
    %v3110 = vld [vmem:[%s3076 + $0x84] sm:$0xf]
    %v3111 = vld [vmem:[%s3076 + $0x88] sm:$0xf]
    %v3112 = vld [vmem:[%s3076 + $0x8c] sm:$0xf]
    %v3113 = vld [vmem:[%s3076 + $0x90] sm:$0xf]
    %v3114 = vld [vmem:[%s3076 + $0x94] sm:$0xf]
    %v3115 = vld [vmem:[%s3076 + $0x98] sm:$0xf]
    %v3116 = vld [vmem:[%s3076 + $0x9c] sm:$0xf]
    %v3117 = vld [vmem:[%s3076 + $0xa0] sm:$0xf]
    %v3118 = vld [vmem:[%s3076 + $0xa4] sm:$0xf]
    %v3119 = vld [vmem:[%s3076 + $0xa8] sm:$0xf]
    %v3120 = vld [vmem:[%s3076 + $0xac] sm:$0xf]
    %v3121 = vld [vmem:[%s3076 + $0xb0] sm:$0xf]
    %v3122 = vld [vmem:[%s3076 + $0xb4] sm:$0xf]
    %v3123 = vld [vmem:[%s3076 + $0xb8] sm:$0xf]
    %v3124 = vld [vmem:[%s3076 + $0xbc] sm:$0xf]
    %v3125 = vld [vmem:[%s3076 + $0xc0] sm:$0xf]
    %v3126 = vld [vmem:[%s3076 + $0xc4] sm:$0xf]
    %v3127 = vld [vmem:[%s3076 + $0xc8] sm:$0xf]
    %v3128 = vld [vmem:[%s3076 + $0xcc] sm:$0xf]
    %v3129 = vld [vmem:[%s3076 + $0xd0] sm:$0xf]
    %v3130 = vld [vmem:[%s3076 + $0xd4] sm:$0xf]
    %v3131 = vld [vmem:[%s3076 + $0xd8] sm:$0xf]
    %v3132 = vld [vmem:[%s3076 + $0xdc] sm:$0xf]
    %v3133 = vld [vmem:[%s3076 + $0xe0] sm:$0xf]
    %v3134 = vld [vmem:[%s3076 + $0xe4] sm:$0xf]
    %v3135 = vld [vmem:[%s3076 + $0xe8] sm:$0xf]
    %v3136 = vld [vmem:[%s3076 + $0xec] sm:$0xf]
    %v3137 = vld [vmem:[%s3076 + $0xf0] sm:$0xf]
    %v3138 = vld [vmem:[%s3076 + $0xf4] sm:$0xf]
    %v3139 = vld [vmem:[%s3076 + $0xf8] sm:$0xf]
    %v3140 = vld [vmem:[%s3076 + $0xfc] sm:$0xf]
    %v3141 = vld [vmem:[%s3076 + $0x100] sm:$0xf]
    %v3142 = vld [vmem:[%s3076 + $0x104] sm:$0xf]
    %v3143 = vld [vmem:[%s3076 + $0x108] sm:$0xf]
    %v3144 = vld [vmem:[%s3076 + $0x10c] sm:$0xf]
    %v3145 = vld [vmem:[%s3076 + $0x110] sm:$0xf]
    %v3146 = vld [vmem:[%s3076 + $0x114] sm:$0xf]
    %v3147 = vld [vmem:[%s3076 + $0x118] sm:$0xf]
    %v3148 = vld [vmem:[%s3076 + $0x11c] sm:$0xf]
    %v3149 = vld [vmem:[%s3076 + $0x120] sm:$0xf]
    %v3150 = vld [vmem:[%s3076 + $0x124] sm:$0xf]
    %v3151 = vld [vmem:[%s3076 + $0x128] sm:$0xf]
    %v3152 = vld [vmem:[%s3076 + $0x12c] sm:$0xf]
    %v3153 = vld [vmem:[%s3076 + $0x130] sm:$0xf]
    %v3154 = vld [vmem:[%s3076 + $0x134] sm:$0xf]
    %v3155 = vld [vmem:[%s3076 + $0x138] sm:$0xf]
    %v3156 = vld [vmem:[%s3076 + $0x13c] sm:$0xf]
    %v3237 = vunpack.c.l.b16 %v3077
    %v3238 = vunpack.c.l.b16 %v3078
    %v3239 = vunpack.c.l.b16 %v3079
    %v3240 = vunpack.c.l.b16 %v3080
    %v3241 = vunpack.c.l.b16 %v3081
    %v3242 = vunpack.c.l.b16 %v3082
    %v3243 = vunpack.c.l.b16 %v3083
    %v3244 = vunpack.c.l.b16 %v3084
    %v3245 = vunpack.c.l.b16 %v3085
    %v3246 = vunpack.c.l.b16 %v3086
    %v3247 = vunpack.c.l.b16 %v3087
    %v3248 = vunpack.c.l.b16 %v3088
    %v3249 = vunpack.c.l.b16 %v3089
    %v3250 = vunpack.c.l.b16 %v3090
    %v3251 = vunpack.c.l.b16 %v3091
    %v3252 = vunpack.c.l.b16 %v3092
    %v3253 = vunpack.c.l.b16 %v3093
    %v3254 = vunpack.c.l.b16 %v3094
    %v3255 = vunpack.c.l.b16 %v3095
    %v3256 = vunpack.c.l.b16 %v3096
    %v3257 = vunpack.c.l.b16 %v3097
    %v3258 = vunpack.c.l.b16 %v3098
    %v3259 = vunpack.c.l.b16 %v3099
    %v3260 = vunpack.c.l.b16 %v3100
    %v3261 = vunpack.c.l.b16 %v3101
    %v3262 = vunpack.c.l.b16 %v3102
    %v3263 = vunpack.c.l.b16 %v3103
    %v3264 = vunpack.c.l.b16 %v3104
    %v3265 = vunpack.c.l.b16 %v3105
    %v3266 = vunpack.c.l.b16 %v3106
    %v3267 = vunpack.c.l.b16 %v3107
    %v3268 = vunpack.c.l.b16 %v3108
    %v3269 = vunpack.c.l.b16 %v3109
    %v3270 = vunpack.c.l.b16 %v3110
    %v3271 = vunpack.c.l.b16 %v3111
    %v3272 = vunpack.c.l.b16 %v3112
    %v3273 = vunpack.c.l.b16 %v3113
    %v3274 = vunpack.c.l.b16 %v3114
    %v3275 = vunpack.c.l.b16 %v3115
    %v3276 = vunpack.c.l.b16 %v3116
    %v3277 = vunpack.c.l.b16 %v3117
    %v3278 = vunpack.c.l.b16 %v3118
    %v3279 = vunpack.c.l.b16 %v3119
    %v3280 = vunpack.c.l.b16 %v3120
    %v3281 = vunpack.c.l.b16 %v3121
    %v3282 = vunpack.c.l.b16 %v3122
    %v3283 = vunpack.c.l.b16 %v3123
    %v3284 = vunpack.c.l.b16 %v3124
    %v3285 = vunpack.c.l.b16 %v3125
    %v3286 = vunpack.c.l.b16 %v3126
    %v3287 = vunpack.c.l.b16 %v3127
    %v3288 = vunpack.c.l.b16 %v3128
    %v3289 = vunpack.c.l.b16 %v3129
    %v3290 = vunpack.c.l.b16 %v3130
    %v3291 = vunpack.c.l.b16 %v3131
    %v3292 = vunpack.c.l.b16 %v3132
    %v3293 = vunpack.c.l.b16 %v3133
    %v3294 = vunpack.c.l.b16 %v3134
    %v3295 = vunpack.c.l.b16 %v3135
    %v3296 = vunpack.c.l.b16 %v3136
    %v3297 = vunpack.c.l.b16 %v3137
    %v3298 = vunpack.c.l.b16 %v3138
    %v3299 = vunpack.c.l.b16 %v3139
    %v3300 = vunpack.c.l.b16 %v3140
    %v3301 = vunpack.c.l.b16 %v3141
    %v3302 = vunpack.c.l.b16 %v3142
    %v3303 = vunpack.c.l.b16 %v3143
    %v3304 = vunpack.c.l.b16 %v3144
    %v3305 = vunpack.c.l.b16 %v3145
    %v3306 = vunpack.c.l.b16 %v3146
    %v3307 = vunpack.c.l.b16 %v3147
    %v3308 = vunpack.c.l.b16 %v3148
    %v3309 = vunpack.c.l.b16 %v3149
    %v3310 = vunpack.c.l.b16 %v3150
    %v3311 = vunpack.c.l.b16 %v3151
    %v3312 = vunpack.c.l.b16 %v3152
    %v3313 = vunpack.c.l.b16 %v3153
    %v3314 = vunpack.c.l.b16 %v3154
    %v3315 = vunpack.c.l.b16 %v3155
    %v3316 = vunpack.c.l.b16 %v3156
    %v3317 = vpack.c.b16 %v3238, %v3237
    %v3318 = vpack.c.b16 %v3240, %v3239
    %v3319 = vpack.c.b16 %v3242, %v3241
    %v3320 = vpack.c.b16 %v3244, %v3243
    %v3321 = vpack.c.b16 %v3246, %v3245
    %v3322 = vpack.c.b16 %v3248, %v3247
    %v3323 = vpack.c.b16 %v3250, %v3249
    %v3324 = vpack.c.b16 %v3252, %v3251
    %v3325 = vpack.c.b16 %v3254, %v3253
    %v3326 = vpack.c.b16 %v3256, %v3255
    %v3327 = vpack.c.b16 %v3258, %v3257
    %v3328 = vpack.c.b16 %v3260, %v3259
    %v3329 = vpack.c.b16 %v3262, %v3261
    %v3330 = vpack.c.b16 %v3264, %v3263
    %v3331 = vpack.c.b16 %v3266, %v3265
    %v3332 = vpack.c.b16 %v3268, %v3267
    %v3333 = vpack.c.b16 %v3270, %v3269
    %v3334 = vpack.c.b16 %v3272, %v3271
    %v3335 = vpack.c.b16 %v3274, %v3273
    %v3336 = vpack.c.b16 %v3276, %v3275
    %v3337 = vpack.c.b16 %v3278, %v3277
    %v3338 = vpack.c.b16 %v3280, %v3279
    %v3339 = vpack.c.b16 %v3282, %v3281
    %v3340 = vpack.c.b16 %v3284, %v3283
    %v3341 = vpack.c.b16 %v3286, %v3285
    %v3342 = vpack.c.b16 %v3288, %v3287
    %v3343 = vpack.c.b16 %v3290, %v3289
    %v3344 = vpack.c.b16 %v3292, %v3291
    %v3345 = vpack.c.b16 %v3294, %v3293
    %v3346 = vpack.c.b16 %v3296, %v3295
    %v3347 = vpack.c.b16 %v3298, %v3297
    %v3348 = vpack.c.b16 %v3300, %v3299
    %v3349 = vpack.c.b16 %v3302, %v3301
    %v3350 = vpack.c.b16 %v3304, %v3303
    %v3351 = vpack.c.b16 %v3306, %v3305
    %v3352 = vpack.c.b16 %v3308, %v3307
    %v3353 = vpack.c.b16 %v3310, %v3309
    %v3354 = vpack.c.b16 %v3312, %v3311
    %v3355 = vpack.c.b16 %v3314, %v3313
    %v3356 = vpack.c.b16 %v3316, %v3315
    %3397 = vmatpush.bf16.msra.mxu0 %v3324
    %3398 = vmatpush.bf16.msra.mxu0 %v3323
    %3399 = vmatpush.bf16.msra.mxu0 %v3322
    %3400 = vmatpush.bf16.msra.mxu0 %v3321
    %3401 = vmatpush.bf16.msra.mxu0 %v3320
    %3402 = vmatpush.bf16.msra.mxu0 %v3319
    %3403 = vmatpush.bf16.msra.mxu0 %v3318
    %3404 = vmatpush.bf16.msra.mxu0 %v3317
    %3405 = vmatmul.bf16.gmra.mxu0 %v141
    %v3406 = vpop.f32.mrf.mxu0
    %v3407 = vadd.f32 0.0, %v3406
    %v3408 = vpop.f32.mrf.mxu0
    %v3409 = vadd.f32 0.0, %v3408
    %3410 = vdwg.mxu0
    %3411 = vmatpush.bf16.msra.mxu0 %v3332
    %3412 = vmatpush.bf16.msra.mxu0 %v3331
    %3413 = vmatpush.bf16.msra.mxu0 %v3330
    %3414 = vmatpush.bf16.msra.mxu0 %v3329
    %3415 = vmatpush.bf16.msra.mxu0 %v3328
    %3416 = vmatpush.bf16.msra.mxu0 %v3327
    %3417 = vmatpush.bf16.msra.mxu0 %v3326
    %3418 = vmatpush.bf16.msra.mxu0 %v3325
    %3419 = vmatmul.bf16.gmra.mxu0 %v142
    %v3420 = vpop.f32.mrf.mxu0
    %v3421 = vadd.f32 %v3407, %v3420
    %v3422 = vpop.f32.mrf.mxu0
    %v3423 = vadd.f32 %v3409, %v3422
    %3424 = vdwg.mxu0
    %3425 = vmatpush.bf16.msra.mxu0 %v3340
    %3426 = vmatpush.bf16.msra.mxu0 %v3339
    %3427 = vmatpush.bf16.msra.mxu0 %v3338
    %3428 = vmatpush.bf16.msra.mxu0 %v3337
    %3429 = vmatpush.bf16.msra.mxu0 %v3336
    %3430 = vmatpush.bf16.msra.mxu0 %v3335
    %3431 = vmatpush.bf16.msra.mxu0 %v3334
    %3432 = vmatpush.bf16.msra.mxu0 %v3333
    %3433 = vmatmul.bf16.gmra.mxu0 %v143
    %v3434 = vpop.f32.mrf.mxu0
    %v3435 = vadd.f32 %v3421, %v3434
    %v3436 = vpop.f32.mrf.mxu0
    %v3437 = vadd.f32 %v3423, %v3436
    %3438 = vdwg.mxu0
    %3439 = vmatpush.bf16.msra.mxu0 %v3348
    %3440 = vmatpush.bf16.msra.mxu0 %v3347
    %3441 = vmatpush.bf16.msra.mxu0 %v3346
    %3442 = vmatpush.bf16.msra.mxu0 %v3345
    %3443 = vmatpush.bf16.msra.mxu0 %v3344
    %3444 = vmatpush.bf16.msra.mxu0 %v3343
    %3445 = vmatpush.bf16.msra.mxu0 %v3342
    %3446 = vmatpush.bf16.msra.mxu0 %v3341
    %3447 = vmatmul.bf16.gmra.mxu0 %v144
    %v3448 = vpop.f32.mrf.mxu0
    %v3449 = vadd.f32 %v3435, %v3448
    %v3450 = vpop.f32.mrf.mxu0
    %v3451 = vadd.f32 %v3437, %v3450
    %3452 = vdwg.mxu0
    %3453 = vmatpush.bf16.msra.mxu0 %v3356
    %3454 = vmatpush.bf16.msra.mxu0 %v3355
    %3455 = vmatpush.bf16.msra.mxu0 %v3354
    %3456 = vmatpush.bf16.msra.mxu0 %v3353
    %3457 = vmatpush.bf16.msra.mxu0 %v3352
    %3458 = vmatpush.bf16.msra.mxu0 %v3351
    %3459 = vmatpush.bf16.msra.mxu0 %v3350
    %3460 = vmatpush.bf16.msra.mxu0 %v3349
    %3461 = vmatmul.bf16.gmra.mxu0 %v145
    %v3462 = vpop.f32.mrf.mxu0
    %v3463 = vadd.f32 %v3449, %v3462
    %v3464 = vpop.f32.mrf.mxu0
    %v3465 = vadd.f32 %v3451, %v3464
    %3466 = vdwg.mxu0
    %s3467 = scalar_lea.vmem %s5, 48
    %3468 = vst.msk [vmem:[%s3467] sm:$0xff] %vm855, %v3463
    %3469 = vst.msk [vmem:[%s3467 + $0x8] sm:$0xff] %vm855, %v3465
    %s3470 = scalar_lea.vmem %s3, 15
    %v3471 = vld [vmem:[%s3470] sm:$0x1f]
    %3473 = vst [vmem:[#allocation1] ss:$9 sm:$0xff] %v3471
    %v3474 = vld [vmem:[#allocation1] sm:$0xff]
    %v3475 = vld [vmem:[#allocation1 + $0x9] sm:$0xff]
    %v3476 = vld [vmem:[#allocation1 + $0x12] sm:$0xff]
    %v3477 = vld [vmem:[#allocation1 + $0x1b] sm:$0xff]
    %v3478 = vld [vmem:[#allocation1 + $0x24] sm:$0xff]
    %3484 = vmatpush.bf16.xpose.msra.mxu0 0
    %3485 = vmatpush.bf16.xpose.msra.mxu0 0
    %3486 = vmatpush.bf16.xpose.msra.mxu0 0
    %3487 = vmatpush.bf16.xpose.msra.mxu0 0
    %3488 = vmatpush.bf16.xpose.msra.mxu0 0
    %3489 = vmatpush.bf16.xpose.msra.mxu0 0
    %3490 = vmatpush.bf16.xpose.msra.mxu0 0
    %3491 = vmatpush.bf16.xpose.msra.mxu0 %v141
    %3492 = vmatmul.bf16.gmra.mxu0 %v3474
    %v3493 = vpop.f32.mrf.mxu0
    %v3494 = vadd.f32 0.0, %v3493
    %v3495 = vpop.f32.mrf.mxu0
    %3496 = vdwg.mxu0
    %3497 = vmatpush.bf16.xpose.msra.mxu0 0
    %3498 = vmatpush.bf16.xpose.msra.mxu0 0
    %3499 = vmatpush.bf16.xpose.msra.mxu0 0
    %3500 = vmatpush.bf16.xpose.msra.mxu0 0
    %3501 = vmatpush.bf16.xpose.msra.mxu0 0
    %3502 = vmatpush.bf16.xpose.msra.mxu0 0
    %3503 = vmatpush.bf16.xpose.msra.mxu0 0
    %3504 = vmatpush.bf16.xpose.msra.mxu0 %v142
    %3505 = vmatmul.bf16.gmra.mxu0 %v3475
    %v3506 = vpop.f32.mrf.mxu0
    %v3507 = vadd.f32 %v3494, %v3506
    %v3508 = vpop.f32.mrf.mxu0
    %3509 = vdwg.mxu0
    %3510 = vmatpush.bf16.xpose.msra.mxu0 0
    %3511 = vmatpush.bf16.xpose.msra.mxu0 0
    %3512 = vmatpush.bf16.xpose.msra.mxu0 0
    %3513 = vmatpush.bf16.xpose.msra.mxu0 0
    %3514 = vmatpush.bf16.xpose.msra.mxu0 0
    %3515 = vmatpush.bf16.xpose.msra.mxu0 0
    %3516 = vmatpush.bf16.xpose.msra.mxu0 0
    %3517 = vmatpush.bf16.xpose.msra.mxu0 %v143
    %3518 = vmatmul.bf16.gmra.mxu0 %v3476
    %v3519 = vpop.f32.mrf.mxu0
    %v3520 = vadd.f32 %v3507, %v3519
    %v3521 = vpop.f32.mrf.mxu0
    %3522 = vdwg.mxu0
    %3523 = vmatpush.bf16.xpose.msra.mxu0 0
    %3524 = vmatpush.bf16.xpose.msra.mxu0 0
    %3525 = vmatpush.bf16.xpose.msra.mxu0 0
    %3526 = vmatpush.bf16.xpose.msra.mxu0 0
    %3527 = vmatpush.bf16.xpose.msra.mxu0 0
    %3528 = vmatpush.bf16.xpose.msra.mxu0 0
    %3529 = vmatpush.bf16.xpose.msra.mxu0 0
    %3530 = vmatpush.bf16.xpose.msra.mxu0 %v144
    %3531 = vmatmul.bf16.gmra.mxu0 %v3477
    %v3532 = vpop.f32.mrf.mxu0
    %v3533 = vadd.f32 %v3520, %v3532
    %v3534 = vpop.f32.mrf.mxu0
    %3535 = vdwg.mxu0
    %3536 = vmatpush.bf16.xpose.msra.mxu0 0
    %3537 = vmatpush.bf16.xpose.msra.mxu0 0
    %3538 = vmatpush.bf16.xpose.msra.mxu0 0
    %3539 = vmatpush.bf16.xpose.msra.mxu0 0
    %3540 = vmatpush.bf16.xpose.msra.mxu0 0
    %3541 = vmatpush.bf16.xpose.msra.mxu0 0
    %3542 = vmatpush.bf16.xpose.msra.mxu0 0
    %3543 = vmatpush.bf16.xpose.msra.mxu0 %v145
    %3544 = vmatmul.bf16.gmra.mxu0 %v3478
    %v3545 = vpop.f32.mrf.mxu0
    %v3546 = vadd.f32 %v3533, %v3545
    %v3547 = vpop.f32.mrf.mxu0
    %3548 = vdwg.mxu0
    %s3549 = scalar_lea.vmem [#allocation6], 3
    %3550 = vst.msk [vmem:[%s3549] sm:$0x1] %vm936, %v3546
    // Predicated region
    $region22: #{tpu_custom_call.1} parent=1 // pred_check
      _
    $region23: #{tpu_custom_call.1} parent=1 // pred_check_branch
      %3552 = sbr.rel (0) target = $region25
    $region24: #{tpu_custom_call.1} parent=1 // pred_region
      %3554 = vsyncadd [#allocation4], 0
      %s3555 = sshll.u32 [#allocation5], 4
      %s3556 = int_to_ptr.vmem [resolvable:$true] %s3555
      %s3557 = sshll.u32 %s4, 4
      %s3558 = int_to_ptr.hbm [resolvable:$true] %s3557
      %3563 = dma.vmem_to_hbm [thread:$0]  %s3556, 512, %s3558, [#allocation4], 64, 64, 4
    $region25: #{tpu_custom_call.1} parent=1 // pred_fallthru
      _
    // Predicated region
    $region26: #{tpu_custom_call.1} parent=1 // pred_check
      _
    $region27: #{tpu_custom_call.1} parent=1 // pred_check_branch
      %3565 = sbr.rel (0) target = $region29
    $region28: #{tpu_custom_call.1} parent=1 // pred_region
      _
    $region29: #{tpu_custom_call.1} parent=1 // pred_fallthru
      _
    // Predicated region
    $region30: #{tpu_custom_call.1} parent=1 // pred_check
      _
    $region31: #{tpu_custom_call.1} parent=1 // pred_check_branch
      %3567 = sbr.rel (0) target = $region33
    $region32: #{tpu_custom_call.1} parent=1 // pred_region
      %3569 = vsyncadd [#allocation7], 0
      %s3570 = sshll.u32 [#allocation6], 4
      %s3571 = int_to_ptr.vmem [resolvable:$true] %s3570
      %s3572 = sshll.u32 %s6, 4
      %s3573 = int_to_ptr.hbm [resolvable:$true] %s3572
      %3578 = dma.vmem_to_hbm [thread:$0]  %s3571, 64, %s3573, [#allocation7], 16, 16, 1
    $region33: #{tpu_custom_call.1} parent=1 // pred_fallthru
      _
    // Predicated region
    $region34: #{tpu_custom_call.1} parent=1 // pred_check
      _
    $region35: #{tpu_custom_call.1} parent=1 // pred_check_branch
      %3580 = sbr.rel (0) target = $region37
    $region36: #{tpu_custom_call.1} parent=1 // pred_region
      %3582 = dma.done [#allocation4], 512
    $region37: #{tpu_custom_call.1} parent=1 // pred_fallthru
      _
    // Predicated region
    $region38: #{tpu_custom_call.1} parent=1 // pred_check
      _
    $region39: #{tpu_custom_call.1} parent=1 // pred_check_branch
      %3584 = sbr.rel (0) target = $region41
    $region40: #{tpu_custom_call.1} parent=1 // pred_region
      _
    $region41: #{tpu_custom_call.1} parent=1 // pred_fallthru
      _
    // Predicated region
    $region42: #{tpu_custom_call.1} parent=1 // pred_check
      _
    $region43: #{tpu_custom_call.1} parent=1 // pred_check_branch
      %3586 = sbr.rel (0) target = $region45
    $region44: #{tpu_custom_call.1} parent=1 // pred_region
      %3588 = dma.done [#allocation7], 64
    $region45: #{tpu_custom_call.1} parent=1 // pred_fallthru
      _
    %3589 = vsyncpa [#allocation3], 1
    %3590 = vsyncpa [#allocation4], 1
    %3591 = vsyncpa [#allocation7], 1

</llo_original>
